<compile_context>
chip_gen: v6e
topology: v6e:2x2x1
jax: 0.10.0
libtpu: 0.0.40
codegen_flags: <defaults>
</compile_context>

<pallas_src>
import functools

import jax
import jax.numpy as jnp
from jax import lax
from jax.experimental import pallas as pl
from jax.experimental.pallas import tpu as pltpu


def _resblock_kernel(x0_ref, xh_ref, w1_ref, b1_ref, w2_ref, b2_ref, o_ref,
                     *, td, wp, span, margin):
    # x0_ref : (td, Cin, Lp)   padded depth slabs [i*td, i*td+td)
    # xh_ref : (2,  Cin, Lp)   depth halo slabs  [i*td+td, i*td+td+2)  (same HBM buffer as x0)
    # w1_ref : (3, 9*Cmid, Cin)   conv1 weights, rows ordered (kh, kw, cmid)
    # b1_ref : (Cmid, 1);  w2_ref: (Cin, Cmid);  b2_ref: (Cin, 1)
    # o_ref  : (td, Cin, span)    lane layout = flattened (n, h_pad, w_pad)
    cmid = b1_ref.shape[0]
    b1 = b1_ref[...]
    b2 = b2_ref[...]
    w2 = w2_ref[...]

    def raw_slab(j):                      # local padded depth j in [0, td+2)
        return x0_ref[j] if j < td else xh_ref[j - td]   # (Cin, Lp)

    # lane offsets of the 9 (kh, kw) taps in the flattened (n, h, w) layout
    deltas = [(kh - 1) * wp + (kw - 1) for kh in range(3) for kw in range(3)]

    accs = [jnp.zeros((cmid, span), jnp.float32) for _ in range(td)]
    for j in range(td + 2):
        # Pre-activation ReLU (relu(0)=0, so applying it to zero-padded data is equivalent).
        act = jnp.maximum(raw_slab(j), 0.0)                       # (Cin, Lp)
        for kd in range(3):
            t = j - kd
            if 0 <= t < td:
                # One MXU pass mixes channels for all 9 (kh, kw) taps of this kd at once.
                # NOTE(precision): Mosaic's default f32 matmul path matched the HIGHEST-precision
                # reference to <1e-4 in the previous run; precision arg deliberately omitted.
                p = jnp.dot(w1_ref[kd], act,
                            preferred_element_type=jnp.float32)   # (9*Cmid, Lp)
                upd = accs[t]
                for tap, delta in enumerate(deltas):
                    s = margin + delta                            # static lane offset, [0, 2*margin]
                    upd = upd + p[tap * cmid:(tap + 1) * cmid, s:s + span]
                accs[t] = upd

    for t in range(td):
        h = jnp.maximum(accs[t] + b1, 0.0)                        # bias + ReLU after conv1
        y = jnp.dot(w2, h, preferred_element_type=jnp.float32) + b2   # 1x1x1 conv + bias
        resid = raw_slab(t + 1)[:, margin:margin + span]          # un-ReLU'd input, centre depth
        o_ref[t] = (y + resid).astype(o_ref.dtype)


def resblock_forward(x, w1_oidhw, b1, w2_oi, b2, *, block_d=None):
    """x: (N, Cin, D, H, W). Weights in PyTorch layouts:
       w1 (Cmid, Cin, 3, 3, 3), b1 (Cmid,), w2 (Cin, Cmid), b2 (Cin,). Returns NCDHW."""
    n, cin, d, hh, ww = x.shape
    cmid = w1_oidhw.shape[0]
    if block_d is None:
        for cand in (4, 2, 8, 6, 10, 12, 16):
            if d % cand == 0:
                block_d = cand
                break
        else:
            # TODO(synk): odd depths would need a 1-slab halo operand; not needed for these shapes.
            raise ValueError("D must have an even divisor <= 16 for the depth-halo tiling")
    td = block_d
    assert d % td == 0 and td % 2 == 0

    hp, wp = hh + 2, ww + 2
    span = n * hp * wp                 # flattened (n, h_pad, w_pad) lane extent of one depth slab
    margin = wp + 1                    # max |lane shift| of a 3x3 (kh, kw) tap
    lp = span + 2 * margin

    # Glue: NCDHW -> (depth, channel, lane-flattened spatial), zero-padded once (fused by XLA).
    xt = jnp.transpose(x, (2, 1, 0, 3, 4))                                   # (D, Cin, N, H, W)
    xp = jnp.pad(xt, ((1, 1), (0, 0), (0, 0), (1, 1), (1, 1)))               # (D+2, Cin, N, Hp, Wp)
    xe = jnp.pad(xp.reshape(d + 2, cin, span),
                 ((0, 0), (0, 0), (margin, margin)))                         # (D+2, Cin, Lp)

    # conv1 weights: (Cmid, Cin, kd, kh, kw) -> (kd, 9*Cmid, Cin) with rows = (kh, kw, cmid)
    w1g = jnp.transpose(w1_oidhw, (2, 3, 4, 0, 1)).reshape(3, 9 * cmid, cin)
    b1c = b1.reshape(cmid, 1)
    b2c = b2.reshape(cin, 1)

    kernel = functools.partial(_resblock_kernel, td=td, wp=wp, span=span, margin=margin)

    out = pl.pallas_call(
        kernel,
        out_shape=jax.ShapeDtypeStruct((d, cin, span), x.dtype),
        grid_spec=pltpu.PrefetchScalarGridSpec(
            num_scalar_prefetch=0,
            grid=(d // td,),
            in_specs=[
                # body slabs [i*td, i*td+td)
                pl.BlockSpec((td, cin, lp), lambda i: (i, 0, 0)),
                # depth halo [i*td+td, i*td+td+2)  (same buffer, different window)
                pl.BlockSpec((2, cin, lp), lambda i: (i * (td // 2) + td // 2, 0, 0)),
                pl.BlockSpec((3, 9 * cmid, cin), lambda i: (0, 0, 0)),
                pl.BlockSpec((cmid, 1), lambda i: (0, 0)),
                pl.BlockSpec((cin, cmid), lambda i: (0, 0)),
                pl.BlockSpec((cin, 1), lambda i: (0, 0)),
            ],
            out_specs=pl.BlockSpec((td, cin, span), lambda i: (i, 0, 0)),
        ),
        compiler_params=pltpu.CompilerParams(
            dimension_semantics=("parallel",),
            vmem_limit_bytes=32 * 1024 * 1024,
        ),
    )(xe, xe, w1g, b1c, w2_oi, b2c)

    o = out.reshape(d, cin, n, hp, wp)[:, :, :, 1:hh + 1, 1:ww + 1]          # drop spatial padding
    return jnp.transpose(o, (2, 1, 0, 3, 4))                                 # back to NCDHW


def resblock_reference(x, w1_oidhw, b1, w2_oi, b2):
    """Pure-JAX reference (lax.conv_general_dilated) matching the PyTorch module."""
    xc = jnp.transpose(x, (0, 2, 3, 4, 1))                                   # NDHWC
    dn = ('NDHWC', 'DHWIO', 'NDHWC')
    w1_dhwio = jnp.transpose(w1_oidhw, (2, 3, 4, 1, 0))                      # (3,3,3,Cin,Cmid)
    h = lax.conv_general_dilated(jnp.maximum(xc, 0.0), w1_dhwio, (1, 1, 1), 'SAME',
                                 dimension_numbers=dn, precision=lax.Precision.HIGHEST)
    h = jnp.maximum(h + b1, 0.0)
    cin, cmid = w2_oi.shape
    w2_dhwio = jnp.transpose(w2_oi).reshape(1, 1, 1, cmid, cin)
    y = lax.conv_general_dilated(h, w2_dhwio, (1, 1, 1), 'SAME',
                                 dimension_numbers=dn, precision=lax.Precision.HIGHEST)
    y = y + b2 + xc
    return jnp.transpose(y, (0, 4, 1, 2, 3))


if __name__ == "__main__":
    key = jax.random.PRNGKey(0)
    n, cin, cmid = 2, 4, 8            # in_channel=4, channel=8
    d = hh = ww = 8
    kx, kw1, kw2, kb1, kb2 = jax.random.split(key, 5)

    x = jax.random.normal(kx, (n, cin, d, hh, ww), jnp.float32)

    # xavier_uniform-style conv weights (PyTorch layouts); small non-zero biases so the bias
    # path is actually exercised (random_init zeroes them, which would hide bias bugs).
    bound1 = (6.0 / (cin * 27 + cmid * 27)) ** 0.5
    w1 = jax.random.uniform(kw1, (cmid, cin, 3, 3, 3), jnp.float32, -bound1, bound1)
    bound2 = (6.0 / (cin + cmid)) ** 0.5
    w2 = jax.random.uniform(kw2, (cin, cmid), jnp.float32, -bound2, bound2)
    b1 = 0.1 * jax.random.normal(kb1, (cmid,), jnp.float32)
    b2 = 0.1 * jax.random.normal(kb2, (cin,), jnp.float32)

    fwd = jax.jit(resblock_forward)
    ref_fn = jax.jit(resblock_reference)

    out = jax.block_until_ready(fwd(x, w1, b1, w2, b2))
    ref = jax.block_until_ready(ref_fn(x, w1, b1, w2, b2))

    assert out.shape == x.shape and out.dtype == x.dtype
    err = float(jnp.max(jnp.abs(out - ref)))
    if not jnp.allclose(out, ref, atol=2e-4, rtol=2e-3):
        raise SystemExit("kernel/reference mismatch: max err = %e" % err)
    print("KERNEL_OK")
</pallas_src>

<mosaic_0001>
module attributes {stable_mosaic.version = 11 : i64} {
  func.func @_resblock_kernel(%arg0: i32, %arg1: memref<4x4x222xf32, #tpu.memory_space<vmem>>, %arg2: memref<2x4x222xf32, #tpu.memory_space<vmem>>, %arg3: memref<3x72x4xf32, #tpu.memory_space<vmem>>, %arg4: memref<8x1xf32, #tpu.memory_space<vmem>>, %arg5: memref<4x8xf32, #tpu.memory_space<vmem>>, %arg6: memref<4x1xf32, #tpu.memory_space<vmem>>, %arg7: memref<4x4x200xf32, #tpu.memory_space<vmem>>) attributes {dimension_semantics = [#tpu.dimension_semantics<parallel>], iteration_bounds = array<i64: 2>, scalar_prefetch = 0 : i64, scratch_operands = 0 : i64, tpu.core_type = #tpu.core_type<tc>, window_params = [{transform_indices = @transform_0, window_bounds = array<i64: 4, 4, 222>}, {transform_indices = @transform_1, window_bounds = array<i64: 2, 4, 222>}, {pipeline_mode = #tpu.pipeline_mode<synchronous>, transform_indices = @transform_2, window_bounds = array<i64: 3, 72, 4>}, {pipeline_mode = #tpu.pipeline_mode<synchronous>, transform_indices = @transform_3, window_bounds = array<i64: 8, 1>}, {pipeline_mode = #tpu.pipeline_mode<synchronous>, transform_indices = @transform_4, window_bounds = array<i64: 4, 8>}, {pipeline_mode = #tpu.pipeline_mode<synchronous>, transform_indices = @transform_5, window_bounds = array<i64: 4, 1>}, {transform_indices = @transform_6, window_bounds = array<i64: 4, 4, 200>}]} {
    %c0 = arith.constant 0 : index
    %c0_0 = arith.constant 0 : index
    %0 = vector.load %arg4[%c0, %c0_0] : memref<8x1xf32, #tpu.memory_space<vmem>>, vector<8x1xf32>
    %c0_1 = arith.constant 0 : index
    %c0_2 = arith.constant 0 : index
    %1 = vector.load %arg6[%c0_1, %c0_2] : memref<4x1xf32, #tpu.memory_space<vmem>>, vector<4x1xf32>
    %c0_3 = arith.constant 0 : index
    %c0_4 = arith.constant 0 : index
    %2 = vector.load %arg5[%c0_3, %c0_4] : memref<4x8xf32, #tpu.memory_space<vmem>>, vector<4x8xf32>
    %cst = arith.constant 0.000000e+00 : f32
    %3 = vector.broadcast %cst : f32 to vector<8x200xf32>
    %cst_5 = arith.constant 0.000000e+00 : f32
    %4 = vector.broadcast %cst_5 : f32 to vector<8x200xf32>
    %cst_6 = arith.constant 0.000000e+00 : f32
    %5 = vector.broadcast %cst_6 : f32 to vector<8x200xf32>
    %cst_7 = arith.constant 0.000000e+00 : f32
    %6 = vector.broadcast %cst_7 : f32 to vector<8x200xf32>
    %c0_8 = arith.constant 0 : index
    %c0_9 = arith.constant 0 : index
    %c0_10 = arith.constant 0 : index
    %7 = vector.load %arg1[%c0_8, %c0_9, %c0_10] : memref<4x4x222xf32, #tpu.memory_space<vmem>>, vector<1x4x222xf32>
    %8 = vector.shape_cast %7 : vector<1x4x222xf32> to vector<4x222xf32>
    %cst_11 = arith.constant 0.000000e+00 : f32
    %9 = vector.broadcast %cst_11 : f32 to vector<4x222xf32>
    %10 = arith.maximumf %8, %9 : vector<4x222xf32>
    %c0_12 = arith.constant 0 : index
    %c0_13 = arith.constant 0 : index
    %c0_14 = arith.constant 0 : index
    %11 = vector.load %arg3[%c0_12, %c0_13, %c0_14] : memref<3x72x4xf32, #tpu.memory_space<vmem>>, vector<1x72x4xf32>
    %12 = vector.shape_cast %11 : vector<1x72x4xf32> to vector<72x4xf32>
    %cst_15 = arith.constant dense<0.000000e+00> : vector<72x222xf32>
    %13 = tpu.matmul %12, %10, %cst_15 {dimension_numbers = #tpu.dot_dimension_numbers<[1], [0], [0], [1], [0, 0, 1, 1], [], []>} : vector<72x4xf32>, vector<4x222xf32>, vector<72x222xf32> -> vector<72x222xf32>
    %14 = vector.extract_strided_slice %13 {offsets = [0, 0], sizes = [8, 200], strides = [1, 1]} : vector<72x222xf32> to vector<8x200xf32>
    %15 = arith.addf %3, %14 : vector<8x200xf32>
    %16 = vector.extract_strided_slice %13 {offsets = [8, 1], sizes = [8, 200], strides = [1, 1]} : vector<72x222xf32> to vector<8x200xf32>
    %17 = arith.addf %15, %16 : vector<8x200xf32>
    %18 = vector.extract_strided_slice %13 {offsets = [16, 2], sizes = [8, 200], strides = [1, 1]} : vector<72x222xf32> to vector<8x200xf32>
    %19 = arith.addf %17, %18 : vector<8x200xf32>
    %20 = vector.extract_strided_slice %13 {offsets = [24, 10], sizes = [8, 200], strides = [1, 1]} : vector<72x222xf32> to vector<8x200xf32>
    %21 = arith.addf %19, %20 : vector<8x200xf32>
    %22 = vector.extract_strided_slice %13 {offsets = [32, 11], sizes = [8, 200], strides = [1, 1]} : vector<72x222xf32> to vector<8x200xf32>
    %23 = arith.addf %21, %22 : vector<8x200xf32>
    %24 = vector.extract_strided_slice %13 {offsets = [40, 12], sizes = [8, 200], strides = [1, 1]} : vector<72x222xf32> to vector<8x200xf32>
    %25 = arith.addf %23, %24 : vector<8x200xf32>
    %26 = vector.extract_strided_slice %13 {offsets = [48, 20], sizes = [8, 200], strides = [1, 1]} : vector<72x222xf32> to vector<8x200xf32>
    %27 = arith.addf %25, %26 : vector<8x200xf32>
    %28 = vector.extract_strided_slice %13 {offsets = [56, 21], sizes = [8, 200], strides = [1, 1]} : vector<72x222xf32> to vector<8x200xf32>
    %29 = arith.addf %27, %28 : vector<8x200xf32>
    %30 = vector.extract_strided_slice %13 {offsets = [64, 22], sizes = [8, 200], strides = [1, 1]} : vector<72x222xf32> to vector<8x200xf32>
    %31 = arith.addf %29, %30 : vector<8x200xf32>
    %c1 = arith.constant 1 : index
    %c0_16 = arith.constant 0 : index
    %c0_17 = arith.constant 0 : index
    %32 = vector.load %arg1[%c1, %c0_16, %c0_17] : memref<4x4x222xf32, #tpu.memory_space<vmem>>, vector<1x4x222xf32>
    %33 = vector.shape_cast %32 : vector<1x4x222xf32> to vector<4x222xf32>
    %cst_18 = arith.constant 0.000000e+00 : f32
    %34 = vector.broadcast %cst_18 : f32 to vector<4x222xf32>
    %35 = arith.maximumf %33, %34 : vector<4x222xf32>
    %c0_19 = arith.constant 0 : index
    %c0_20 = arith.constant 0 : index
    %c0_21 = arith.constant 0 : index
    %36 = vector.load %arg3[%c0_19, %c0_20, %c0_21] : memref<3x72x4xf32, #tpu.memory_space<vmem>>, vector<1x72x4xf32>
    %37 = vector.shape_cast %36 : vector<1x72x4xf32> to vector<72x4xf32>
    %cst_22 = arith.constant dense<0.000000e+00> : vector<72x222xf32>
    %38 = tpu.matmul %37, %35, %cst_22 {dimension_numbers = #tpu.dot_dimension_numbers<[1], [0], [0], [1], [0, 0, 1, 1], [], []>} : vector<72x4xf32>, vector<4x222xf32>, vector<72x222xf32> -> vector<72x222xf32>
    %39 = vector.extract_strided_slice %38 {offsets = [0, 0], sizes = [8, 200], strides = [1, 1]} : vector<72x222xf32> to vector<8x200xf32>
    %40 = arith.addf %4, %39 : vector<8x200xf32>
    %41 = vector.extract_strided_slice %38 {offsets = [8, 1], sizes = [8, 200], strides = [1, 1]} : vector<72x222xf32> to vector<8x200xf32>
    %42 = arith.addf %40, %41 : vector<8x200xf32>
    %43 = vector.extract_strided_slice %38 {offsets = [16, 2], sizes = [8, 200], strides = [1, 1]} : vector<72x222xf32> to vector<8x200xf32>
    %44 = arith.addf %42, %43 : vector<8x200xf32>
    %45 = vector.extract_strided_slice %38 {offsets = [24, 10], sizes = [8, 200], strides = [1, 1]} : vector<72x222xf32> to vector<8x200xf32>
    %46 = arith.addf %44, %45 : vector<8x200xf32>
    %47 = vector.extract_strided_slice %38 {offsets = [32, 11], sizes = [8, 200], strides = [1, 1]} : vector<72x222xf32> to vector<8x200xf32>
    %48 = arith.addf %46, %47 : vector<8x200xf32>
    %49 = vector.extract_strided_slice %38 {offsets = [40, 12], sizes = [8, 200], strides = [1, 1]} : vector<72x222xf32> to vector<8x200xf32>
    %50 = arith.addf %48, %49 : vector<8x200xf32>
    %51 = vector.extract_strided_slice %38 {offsets = [48, 20], sizes = [8, 200], strides = [1, 1]} : vector<72x222xf32> to vector<8x200xf32>
    %52 = arith.addf %50, %51 : vector<8x200xf32>
    %53 = vector.extract_strided_slice %38 {offsets = [56, 21], sizes = [8, 200], strides = [1, 1]} : vector<72x222xf32> to vector<8x200xf32>
    %54 = arith.addf %52, %53 : vector<8x200xf32>
    %55 = vector.extract_strided_slice %38 {offsets = [64, 22], sizes = [8, 200], strides = [1, 1]} : vector<72x222xf32> to vector<8x200xf32>
    %56 = arith.addf %54, %55 : vector<8x200xf32>
    %c1_23 = arith.constant 1 : index
    %c0_24 = arith.constant 0 : index
    %c0_25 = arith.constant 0 : index
    %57 = vector.load %arg3[%c1_23, %c0_24, %c0_25] : memref<3x72x4xf32, #tpu.memory_space<vmem>>, vector<1x72x4xf32>
    %58 = vector.shape_cast %57 : vector<1x72x4xf32> to vector<72x4xf32>
    %cst_26 = arith.constant dense<0.000000e+00> : vector<72x222xf32>
    %59 = tpu.matmul %58, %35, %cst_26 {dimension_numbers = #tpu.dot_dimension_numbers<[1], [0], [0], [1], [0, 0, 1, 1], [], []>} : vector<72x4xf32>, vector<4x222xf32>, vector<72x222xf32> -> vector<72x222xf32>
    %60 = vector.extract_strided_slice %59 {offsets = [0, 0], sizes = [8, 200], strides = [1, 1]} : vector<72x222xf32> to vector<8x200xf32>
    %61 = arith.addf %31, %60 : vector<8x200xf32>
    %62 = vector.extract_strided_slice %59 {offsets = [8, 1], sizes = [8, 200], strides = [1, 1]} : vector<72x222xf32> to vector<8x200xf32>
    %63 = arith.addf %61, %62 : vector<8x200xf32>
    %64 = vector.extract_strided_slice %59 {offsets = [16, 2], sizes = [8, 200], strides = [1, 1]} : vector<72x222xf32> to vector<8x200xf32>
    %65 = arith.addf %63, %64 : vector<8x200xf32>
    %66 = vector.extract_strided_slice %59 {offsets = [24, 10], sizes = [8, 200], strides = [1, 1]} : vector<72x222xf32> to vector<8x200xf32>
    %67 = arith.addf %65, %66 : vector<8x200xf32>
    %68 = vector.extract_strided_slice %59 {offsets = [32, 11], sizes = [8, 200], strides = [1, 1]} : vector<72x222xf32> to vector<8x200xf32>
    %69 = arith.addf %67, %68 : vector<8x200xf32>
    %70 = vector.extract_strided_slice %59 {offsets = [40, 12], sizes = [8, 200], strides = [1, 1]} : vector<72x222xf32> to vector<8x200xf32>
    %71 = arith.addf %69, %70 : vector<8x200xf32>
    %72 = vector.extract_strided_slice %59 {offsets = [48, 20], sizes = [8, 200], strides = [1, 1]} : vector<72x222xf32> to vector<8x200xf32>
    %73 = arith.addf %71, %72 : vector<8x200xf32>
    %74 = vector.extract_strided_slice %59 {offsets = [56, 21], sizes = [8, 200], strides = [1, 1]} : vector<72x222xf32> to vector<8x200xf32>
    %75 = arith.addf %73, %74 : vector<8x200xf32>
    %76 = vector.extract_strided_slice %59 {offsets = [64, 22], sizes = [8, 200], strides = [1, 1]} : vector<72x222xf32> to vector<8x200xf32>
    %77 = arith.addf %75, %76 : vector<8x200xf32>
    %c2 = arith.constant 2 : index
    %c0_27 = arith.constant 0 : index
    %c0_28 = arith.constant 0 : index
    %78 = vector.load %arg1[%c2, %c0_27, %c0_28] : memref<4x4x222xf32, #tpu.memory_space<vmem>>, vector<1x4x222xf32>
    %79 = vector.shape_cast %78 : vector<1x4x222xf32> to vector<4x222xf32>
    %cst_29 = arith.constant 0.000000e+00 : f32
    %80 = vector.broadcast %cst_29 : f32 to vector<4x222xf32>
    %81 = arith.maximumf %79, %80 : vector<4x222xf32>
    %c0_30 = arith.constant 0 : index
    %c0_31 = arith.constant 0 : index
    %c0_32 = arith.constant 0 : index
    %82 = vector.load %arg3[%c0_30, %c0_31, %c0_32] : memref<3x72x4xf32, #tpu.memory_space<vmem>>, vector<1x72x4xf32>
    %83 = vector.shape_cast %82 : vector<1x72x4xf32> to vector<72x4xf32>
    %cst_33 = arith.constant dense<0.000000e+00> : vector<72x222xf32>
    %84 = tpu.matmul %83, %81, %cst_33 {dimension_numbers = #tpu.dot_dimension_numbers<[1], [0], [0], [1], [0, 0, 1, 1], [], []>} : vector<72x4xf32>, vector<4x222xf32>, vector<72x222xf32> -> vector<72x222xf32>
    %85 = vector.extract_strided_slice %84 {offsets = [0, 0], sizes = [8, 200], strides = [1, 1]} : vector<72x222xf32> to vector<8x200xf32>
    %86 = arith.addf %5, %85 : vector<8x200xf32>
    %87 = vector.extract_strided_slice %84 {offsets = [8, 1], sizes = [8, 200], strides = [1, 1]} : vector<72x222xf32> to vector<8x200xf32>
    %88 = arith.addf %86, %87 : vector<8x200xf32>
    %89 = vector.extract_strided_slice %84 {offsets = [16, 2], sizes = [8, 200], strides = [1, 1]} : vector<72x222xf32> to vector<8x200xf32>
    %90 = arith.addf %88, %89 : vector<8x200xf32>
    %91 = vector.extract_strided_slice %84 {offsets = [24, 10], sizes = [8, 200], strides = [1, 1]} : vector<72x222xf32> to vector<8x200xf32>
    %92 = arith.addf %90, %91 : vector<8x200xf32>
    %93 = vector.extract_strided_slice %84 {offsets = [32, 11], sizes = [8, 200], strides = [1, 1]} : vector<72x222xf32> to vector<8x200xf32>
    %94 = arith.addf %92, %93 : vector<8x200xf32>
    %95 = vector.extract_strided_slice %84 {offsets = [40, 12], sizes = [8, 200], strides = [1, 1]} : vector<72x222xf32> to vector<8x200xf32>
    %96 = arith.addf %94, %95 : vector<8x200xf32>
    %97 = vector.extract_strided_slice %84 {offsets = [48, 20], sizes = [8, 200], strides = [1, 1]} : vector<72x222xf32> to vector<8x200xf32>
    %98 = arith.addf %96, %97 : vector<8x200xf32>
    %99 = vector.extract_strided_slice %84 {offsets = [56, 21], sizes = [8, 200], strides = [1, 1]} : vector<72x222xf32> to vector<8x200xf32>
    %100 = arith.addf %98, %99 : vector<8x200xf32>
    %101 = vector.extract_strided_slice %84 {offsets = [64, 22], sizes = [8, 200], strides = [1, 1]} : vector<72x222xf32> to vector<8x200xf32>
    %102 = arith.addf %100, %101 : vector<8x200xf32>
    %c1_34 = arith.constant 1 : index
    %c0_35 = arith.constant 0 : index
    %c0_36 = arith.constant 0 : index
    %103 = vector.load %arg3[%c1_34, %c0_35, %c0_36] : memref<3x72x4xf32, #tpu.memory_space<vmem>>, vector<1x72x4xf32>
    %104 = vector.shape_cast %103 : vector<1x72x4xf32> to vector<72x4xf32>
    %cst_37 = arith.constant dense<0.000000e+00> : vector<72x222xf32>
    %105 = tpu.matmul %104, %81, %cst_37 {dimension_numbers = #tpu.dot_dimension_numbers<[1], [0], [0], [1], [0, 0, 1, 1], [], []>} : vector<72x4xf32>, vector<4x222xf32>, vector<72x222xf32> -> vector<72x222xf32>
    %106 = vector.extract_strided_slice %105 {offsets = [0, 0], sizes = [8, 200], strides = [1, 1]} : vector<72x222xf32> to vector<8x200xf32>
    %107 = arith.addf %56, %106 : vector<8x200xf32>
    %108 = vector.extract_strided_slice %105 {offsets = [8, 1], sizes = [8, 200], strides = [1, 1]} : vector<72x222xf32> to vector<8x200xf32>
    %109 = arith.addf %107, %108 : vector<8x200xf32>
    %110 = vector.extract_strided_slice %105 {offsets = [16, 2], sizes = [8, 200], strides = [1, 1]} : vector<72x222xf32> to vector<8x200xf32>
    %111 = arith.addf %109, %110 : vector<8x200xf32>
    %112 = vector.extract_strided_slice %105 {offsets = [24, 10], sizes = [8, 200], strides = [1, 1]} : vector<72x222xf32> to vector<8x200xf32>
    %113 = arith.addf %111, %112 : vector<8x200xf32>
    %114 = vector.extract_strided_slice %105 {offsets = [32, 11], sizes = [8, 200], strides = [1, 1]} : vector<72x222xf32> to vector<8x200xf32>
    %115 = arith.addf %113, %114 : vector<8x200xf32>
    %116 = vector.extract_strided_slice %105 {offsets = [40, 12], sizes = [8, 200], strides = [1, 1]} : vector<72x222xf32> to vector<8x200xf32>
    %117 = arith.addf %115, %116 : vector<8x200xf32>
    %118 = vector.extract_strided_slice %105 {offsets = [48, 20], sizes = [8, 200], strides = [1, 1]} : vector<72x222xf32> to vector<8x200xf32>
    %119 = arith.addf %117, %118 : vector<8x200xf32>
    %120 = vector.extract_strided_slice %105 {offsets = [56, 21], sizes = [8, 200], strides = [1, 1]} : vector<72x222xf32> to vector<8x200xf32>
    %121 = arith.addf %119, %120 : vector<8x200xf32>
    %122 = vector.extract_strided_slice %105 {offsets = [64, 22], sizes = [8, 200], strides = [1, 1]} : vector<72x222xf32> to vector<8x200xf32>
    %123 = arith.addf %121, %122 : vector<8x200xf32>
    %c2_38 = arith.constant 2 : index
    %c0_39 = arith.constant 0 : index
    %c0_40 = arith.constant 0 : index
    %124 = vector.load %arg3[%c2_38, %c0_39, %c0_40] : memref<3x72x4xf32, #tpu.memory_space<vmem>>, vector<1x72x4xf32>
    %125 = vector.shape_cast %124 : vector<1x72x4xf32> to vector<72x4xf32>
    %cst_41 = arith.constant dense<0.000000e+00> : vector<72x222xf32>
    %126 = tpu.matmul %125, %81, %cst_41 {dimension_numbers = #tpu.dot_dimension_numbers<[1], [0], [0], [1], [0, 0, 1, 1], [], []>} : vector<72x4xf32>, vector<4x222xf32>, vector<72x222xf32> -> vector<72x222xf32>
    %127 = vector.extract_strided_slice %126 {offsets = [0, 0], sizes = [8, 200], strides = [1, 1]} : vector<72x222xf32> to vector<8x200xf32>
    %128 = arith.addf %77, %127 : vector<8x200xf32>
    %129 = vector.extract_strided_slice %126 {offsets = [8, 1], sizes = [8, 200], strides = [1, 1]} : vector<72x222xf32> to vector<8x200xf32>
    %130 = arith.addf %128, %129 : vector<8x200xf32>
    %131 = vector.extract_strided_slice %126 {offsets = [16, 2], sizes = [8, 200], strides = [1, 1]} : vector<72x222xf32> to vector<8x200xf32>
    %132 = arith.addf %130, %131 : vector<8x200xf32>
    %133 = vector.extract_strided_slice %126 {offsets = [24, 10], sizes = [8, 200], strides = [1, 1]} : vector<72x222xf32> to vector<8x200xf32>
    %134 = arith.addf %132, %133 : vector<8x200xf32>
    %135 = vector.extract_strided_slice %126 {offsets = [32, 11], sizes = [8, 200], strides = [1, 1]} : vector<72x222xf32> to vector<8x200xf32>
    %136 = arith.addf %134, %135 : vector<8x200xf32>
    %137 = vector.extract_strided_slice %126 {offsets = [40, 12], sizes = [8, 200], strides = [1, 1]} : vector<72x222xf32> to vector<8x200xf32>
    %138 = arith.addf %136, %137 : vector<8x200xf32>
    %139 = vector.extract_strided_slice %126 {offsets = [48, 20], sizes = [8, 200], strides = [1, 1]} : vector<72x222xf32> to vector<8x200xf32>
    %140 = arith.addf %138, %139 : vector<8x200xf32>
    %141 = vector.extract_strided_slice %126 {offsets = [56, 21], sizes = [8, 200], strides = [1, 1]} : vector<72x222xf32> to vector<8x200xf32>
    %142 = arith.addf %140, %141 : vector<8x200xf32>
    %143 = vector.extract_strided_slice %126 {offsets = [64, 22], sizes = [8, 200], strides = [1, 1]} : vector<72x222xf32> to vector<8x200xf32>
    %144 = arith.addf %142, %143 : vector<8x200xf32>
    %c3 = arith.constant 3 : index
    %c0_42 = arith.constant 0 : index
    %c0_43 = arith.constant 0 : index
    %145 = vector.load %arg1[%c3, %c0_42, %c0_43] : memref<4x4x222xf32, #tpu.memory_space<vmem>>, vector<1x4x222xf32>
    %146 = vector.shape_cast %145 : vector<1x4x222xf32> to vector<4x222xf32>
    %cst_44 = arith.constant 0.000000e+00 : f32
    %147 = vector.broadcast %cst_44 : f32 to vector<4x222xf32>
    %148 = arith.maximumf %146, %147 : vector<4x222xf32>
    %c0_45 = arith.constant 0 : index
    %c0_46 = arith.constant 0 : index
    %c0_47 = arith.constant 0 : index
    %149 = vector.load %arg3[%c0_45, %c0_46, %c0_47] : memref<3x72x4xf32, #tpu.memory_space<vmem>>, vector<1x72x4xf32>
    %150 = vector.shape_cast %149 : vector<1x72x4xf32> to vector<72x4xf32>
    %cst_48 = arith.constant dense<0.000000e+00> : vector<72x222xf32>
    %151 = tpu.matmul %150, %148, %cst_48 {dimension_numbers = #tpu.dot_dimension_numbers<[1], [0], [0], [1], [0, 0, 1, 1], [], []>} : vector<72x4xf32>, vector<4x222xf32>, vector<72x222xf32> -> vector<72x222xf32>
    %152 = vector.extract_strided_slice %151 {offsets = [0, 0], sizes = [8, 200], strides = [1, 1]} : vector<72x222xf32> to vector<8x200xf32>
    %153 = arith.addf %6, %152 : vector<8x200xf32>
    %154 = vector.extract_strided_slice %151 {offsets = [8, 1], sizes = [8, 200], strides = [1, 1]} : vector<72x222xf32> to vector<8x200xf32>
    %155 = arith.addf %153, %154 : vector<8x200xf32>
    %156 = vector.extract_strided_slice %151 {offsets = [16, 2], sizes = [8, 200], strides = [1, 1]} : vector<72x222xf32> to vector<8x200xf32>
    %157 = arith.addf %155, %156 : vector<8x200xf32>
    %158 = vector.extract_strided_slice %151 {offsets = [24, 10], sizes = [8, 200], strides = [1, 1]} : vector<72x222xf32> to vector<8x200xf32>
    %159 = arith.addf %157, %158 : vector<8x200xf32>
    %160 = vector.extract_strided_slice %151 {offsets = [32, 11], sizes = [8, 200], strides = [1, 1]} : vector<72x222xf32> to vector<8x200xf32>
    %161 = arith.addf %159, %160 : vector<8x200xf32>
    %162 = vector.extract_strided_slice %151 {offsets = [40, 12], sizes = [8, 200], strides = [1, 1]} : vector<72x222xf32> to vector<8x200xf32>
    %163 = arith.addf %161, %162 : vector<8x200xf32>
    %164 = vector.extract_strided_slice %151 {offsets = [48, 20], sizes = [8, 200], strides = [1, 1]} : vector<72x222xf32> to vector<8x200xf32>
    %165 = arith.addf %163, %164 : vector<8x200xf32>
    %166 = vector.extract_strided_slice %151 {offsets = [56, 21], sizes = [8, 200], strides = [1, 1]} : vector<72x222xf32> to vector<8x200xf32>
    %167 = arith.addf %165, %166 : vector<8x200xf32>
    %168 = vector.extract_strided_slice %151 {offsets = [64, 22], sizes = [8, 200], strides = [1, 1]} : vector<72x222xf32> to vector<8x200xf32>
    %169 = arith.addf %167, %168 : vector<8x200xf32>
    %c1_49 = arith.constant 1 : index
    %c0_50 = arith.constant 0 : index
    %c0_51 = arith.constant 0 : index
    %170 = vector.load %arg3[%c1_49, %c0_50, %c0_51] : memref<3x72x4xf32, #tpu.memory_space<vmem>>, vector<1x72x4xf32>
    %171 = vector.shape_cast %170 : vector<1x72x4xf32> to vector<72x4xf32>
    %cst_52 = arith.constant dense<0.000000e+00> : vector<72x222xf32>
    %172 = tpu.matmul %171, %148, %cst_52 {dimension_numbers = #tpu.dot_dimension_numbers<[1], [0], [0], [1], [0, 0, 1, 1], [], []>} : vector<72x4xf32>, vector<4x222xf32>, vector<72x222xf32> -> vector<72x222xf32>
    %173 = vector.extract_strided_slice %172 {offsets = [0, 0], sizes = [8, 200], strides = [1, 1]} : vector<72x222xf32> to vector<8x200xf32>
    %174 = arith.addf %102, %173 : vector<8x200xf32>
    %175 = vector.extract_strided_slice %172 {offsets = [8, 1], sizes = [8, 200], strides = [1, 1]} : vector<72x222xf32> to vector<8x200xf32>
    %176 = arith.addf %174, %175 : vector<8x200xf32>
    %177 = vector.extract_strided_slice %172 {offsets = [16, 2], sizes = [8, 200], strides = [1, 1]} : vector<72x222xf32> to vector<8x200xf32>
    %178 = arith.addf %176, %177 : vector<8x200xf32>
    %179 = vector.extract_strided_slice %172 {offsets = [24, 10], sizes = [8, 200], strides = [1, 1]} : vector<72x222xf32> to vector<8x200xf32>
    %180 = arith.addf %178, %179 : vector<8x200xf32>
    %181 = vector.extract_strided_slice %172 {offsets = [32, 11], sizes = [8, 200], strides = [1, 1]} : vector<72x222xf32> to vector<8x200xf32>
    %182 = arith.addf %180, %181 : vector<8x200xf32>
    %183 = vector.extract_strided_slice %172 {offsets = [40, 12], sizes = [8, 200], strides = [1, 1]} : vector<72x222xf32> to vector<8x200xf32>
    %184 = arith.addf %182, %183 : vector<8x200xf32>
    %185 = vector.extract_strided_slice %172 {offsets = [48, 20], sizes = [8, 200], strides = [1, 1]} : vector<72x222xf32> to vector<8x200xf32>
    %186 = arith.addf %184, %185 : vector<8x200xf32>
    %187 = vector.extract_strided_slice %172 {offsets = [56, 21], sizes = [8, 200], strides = [1, 1]} : vector<72x222xf32> to vector<8x200xf32>
    %188 = arith.addf %186, %187 : vector<8x200xf32>
    %189 = vector.extract_strided_slice %172 {offsets = [64, 22], sizes = [8, 200], strides = [1, 1]} : vector<72x222xf32> to vector<8x200xf32>
    %190 = arith.addf %188, %189 : vector<8x200xf32>
    %c2_53 = arith.constant 2 : index
    %c0_54 = arith.constant 0 : index
    %c0_55 = arith.constant 0 : index
    %191 = vector.load %arg3[%c2_53, %c0_54, %c0_55] : memref<3x72x4xf32, #tpu.memory_space<vmem>>, vector<1x72x4xf32>
    %192 = vector.shape_cast %191 : vector<1x72x4xf32> to vector<72x4xf32>
    %cst_56 = arith.constant dense<0.000000e+00> : vector<72x222xf32>
    %193 = tpu.matmul %192, %148, %cst_56 {dimension_numbers = #tpu.dot_dimension_numbers<[1], [0], [0], [1], [0, 0, 1, 1], [], []>} : vector<72x4xf32>, vector<4x222xf32>, vector<72x222xf32> -> vector<72x222xf32>
    %194 = vector.extract_strided_slice %193 {offsets = [0, 0], sizes = [8, 200], strides = [1, 1]} : vector<72x222xf32> to vector<8x200xf32>
    %195 = arith.addf %123, %194 : vector<8x200xf32>
    %196 = vector.extract_strided_slice %193 {offsets = [8, 1], sizes = [8, 200], strides = [1, 1]} : vector<72x222xf32> to vector<8x200xf32>
    %197 = arith.addf %195, %196 : vector<8x200xf32>
    %198 = vector.extract_strided_slice %193 {offsets = [16, 2], sizes = [8, 200], strides = [1, 1]} : vector<72x222xf32> to vector<8x200xf32>
    %199 = arith.addf %197, %198 : vector<8x200xf32>
    %200 = vector.extract_strided_slice %193 {offsets = [24, 10], sizes = [8, 200], strides = [1, 1]} : vector<72x222xf32> to vector<8x200xf32>
    %201 = arith.addf %199, %200 : vector<8x200xf32>
    %202 = vector.extract_strided_slice %193 {offsets = [32, 11], sizes = [8, 200], strides = [1, 1]} : vector<72x222xf32> to vector<8x200xf32>
    %203 = arith.addf %201, %202 : vector<8x200xf32>
    %204 = vector.extract_strided_slice %193 {offsets = [40, 12], sizes = [8, 200], strides = [1, 1]} : vector<72x222xf32> to vector<8x200xf32>
    %205 = arith.addf %203, %204 : vector<8x200xf32>
    %206 = vector.extract_strided_slice %193 {offsets = [48, 20], sizes = [8, 200], strides = [1, 1]} : vector<72x222xf32> to vector<8x200xf32>
    %207 = arith.addf %205, %206 : vector<8x200xf32>
    %208 = vector.extract_strided_slice %193 {offsets = [56, 21], sizes = [8, 200], strides = [1, 1]} : vector<72x222xf32> to vector<8x200xf32>
    %209 = arith.addf %207, %208 : vector<8x200xf32>
    %210 = vector.extract_strided_slice %193 {offsets = [64, 22], sizes = [8, 200], strides = [1, 1]} : vector<72x222xf32> to vector<8x200xf32>
    %211 = arith.addf %209, %210 : vector<8x200xf32>
    %c0_57 = arith.constant 0 : index
    %c0_58 = arith.constant 0 : index
    %c0_59 = arith.constant 0 : index
    %212 = vector.load %arg2[%c0_57, %c0_58, %c0_59] : memref<2x4x222xf32, #tpu.memory_space<vmem>>, vector<1x4x222xf32>
    %213 = vector.shape_cast %212 : vector<1x4x222xf32> to vector<4x222xf32>
    %cst_60 = arith.constant 0.000000e+00 : f32
    %214 = vector.broadcast %cst_60 : f32 to vector<4x222xf32>
    %215 = arith.maximumf %213, %214 : vector<4x222xf32>
    %c1_61 = arith.constant 1 : index
    %c0_62 = arith.constant 0 : index
    %c0_63 = arith.constant 0 : index
    %216 = vector.load %arg3[%c1_61, %c0_62, %c0_63] : memref<3x72x4xf32, #tpu.memory_space<vmem>>, vector<1x72x4xf32>
    %217 = vector.shape_cast %216 : vector<1x72x4xf32> to vector<72x4xf32>
    %cst_64 = arith.constant dense<0.000000e+00> : vector<72x222xf32>
    %218 = tpu.matmul %217, %215, %cst_64 {dimension_numbers = #tpu.dot_dimension_numbers<[1], [0], [0], [1], [0, 0, 1, 1], [], []>} : vector<72x4xf32>, vector<4x222xf32>, vector<72x222xf32> -> vector<72x222xf32>
    %219 = vector.extract_strided_slice %218 {offsets = [0, 0], sizes = [8, 200], strides = [1, 1]} : vector<72x222xf32> to vector<8x200xf32>
    %220 = arith.addf %169, %219 : vector<8x200xf32>
    %221 = vector.extract_strided_slice %218 {offsets = [8, 1], sizes = [8, 200], strides = [1, 1]} : vector<72x222xf32> to vector<8x200xf32>
    %222 = arith.addf %220, %221 : vector<8x200xf32>
    %223 = vector.extract_strided_slice %218 {offsets = [16, 2], sizes = [8, 200], strides = [1, 1]} : vector<72x222xf32> to vector<8x200xf32>
    %224 = arith.addf %222, %223 : vector<8x200xf32>
    %225 = vector.extract_strided_slice %218 {offsets = [24, 10], sizes = [8, 200], strides = [1, 1]} : vector<72x222xf32> to vector<8x200xf32>
    %226 = arith.addf %224, %225 : vector<8x200xf32>
    %227 = vector.extract_strided_slice %218 {offsets = [32, 11], sizes = [8, 200], strides = [1, 1]} : vector<72x222xf32> to vector<8x200xf32>
    %228 = arith.addf %226, %227 : vector<8x200xf32>
    %229 = vector.extract_strided_slice %218 {offsets = [40, 12], sizes = [8, 200], strides = [1, 1]} : vector<72x222xf32> to vector<8x200xf32>
    %230 = arith.addf %228, %229 : vector<8x200xf32>
    %231 = vector.extract_strided_slice %218 {offsets = [48, 20], sizes = [8, 200], strides = [1, 1]} : vector<72x222xf32> to vector<8x200xf32>
    %232 = arith.addf %230, %231 : vector<8x200xf32>
    %233 = vector.extract_strided_slice %218 {offsets = [56, 21], sizes = [8, 200], strides = [1, 1]} : vector<72x222xf32> to vector<8x200xf32>
    %234 = arith.addf %232, %233 : vector<8x200xf32>
    %235 = vector.extract_strided_slice %218 {offsets = [64, 22], sizes = [8, 200], strides = [1, 1]} : vector<72x222xf32> to vector<8x200xf32>
    %236 = arith.addf %234, %235 : vector<8x200xf32>
    %c2_65 = arith.constant 2 : index
    %c0_66 = arith.constant 0 : index
    %c0_67 = arith.constant 0 : index
    %237 = vector.load %arg3[%c2_65, %c0_66, %c0_67] : memref<3x72x4xf32, #tpu.memory_space<vmem>>, vector<1x72x4xf32>
    %238 = vector.shape_cast %237 : vector<1x72x4xf32> to vector<72x4xf32>
    %cst_68 = arith.constant dense<0.000000e+00> : vector<72x222xf32>
    %239 = tpu.matmul %238, %215, %cst_68 {dimension_numbers = #tpu.dot_dimension_numbers<[1], [0], [0], [1], [0, 0, 1, 1], [], []>} : vector<72x4xf32>, vector<4x222xf32>, vector<72x222xf32> -> vector<72x222xf32>
    %240 = vector.extract_strided_slice %239 {offsets = [0, 0], sizes = [8, 200], strides = [1, 1]} : vector<72x222xf32> to vector<8x200xf32>
    %241 = arith.addf %190, %240 : vector<8x200xf32>
    %242 = vector.extract_strided_slice %239 {offsets = [8, 1], sizes = [8, 200], strides = [1, 1]} : vector<72x222xf32> to vector<8x200xf32>
    %243 = arith.addf %241, %242 : vector<8x200xf32>
    %244 = vector.extract_strided_slice %239 {offsets = [16, 2], sizes = [8, 200], strides = [1, 1]} : vector<72x222xf32> to vector<8x200xf32>
    %245 = arith.addf %243, %244 : vector<8x200xf32>
    %246 = vector.extract_strided_slice %239 {offsets = [24, 10], sizes = [8, 200], strides = [1, 1]} : vector<72x222xf32> to vector<8x200xf32>
    %247 = arith.addf %245, %246 : vector<8x200xf32>
    %248 = vector.extract_strided_slice %239 {offsets = [32, 11], sizes = [8, 200], strides = [1, 1]} : vector<72x222xf32> to vector<8x200xf32>
    %249 = arith.addf %247, %248 : vector<8x200xf32>
    %250 = vector.extract_strided_slice %239 {offsets = [40, 12], sizes = [8, 200], strides = [1, 1]} : vector<72x222xf32> to vector<8x200xf32>
    %251 = arith.addf %249, %250 : vector<8x200xf32>
    %252 = vector.extract_strided_slice %239 {offsets = [48, 20], sizes = [8, 200], strides = [1, 1]} : vector<72x222xf32> to vector<8x200xf32>
    %253 = arith.addf %251, %252 : vector<8x200xf32>
    %254 = vector.extract_strided_slice %239 {offsets = [56, 21], sizes = [8, 200], strides = [1, 1]} : vector<72x222xf32> to vector<8x200xf32>
    %255 = arith.addf %253, %254 : vector<8x200xf32>
    %256 = vector.extract_strided_slice %239 {offsets = [64, 22], sizes = [8, 200], strides = [1, 1]} : vector<72x222xf32> to vector<8x200xf32>
    %257 = arith.addf %255, %256 : vector<8x200xf32>
    %c1_69 = arith.constant 1 : index
    %c0_70 = arith.constant 0 : index
    %c0_71 = arith.constant 0 : index
    %258 = vector.load %arg2[%c1_69, %c0_70, %c0_71] : memref<2x4x222xf32, #tpu.memory_space<vmem>>, vector<1x4x222xf32>
    %259 = vector.shape_cast %258 : vector<1x4x222xf32> to vector<4x222xf32>
    %cst_72 = arith.constant 0.000000e+00 : f32
    %260 = vector.broadcast %cst_72 : f32 to vector<4x222xf32>
    %261 = arith.maximumf %259, %260 : vector<4x222xf32>
    %c2_73 = arith.constant 2 : index
    %c0_74 = arith.constant 0 : index
    %c0_75 = arith.constant 0 : index
    %262 = vector.load %arg3[%c2_73, %c0_74, %c0_75] : memref<3x72x4xf32, #tpu.memory_space<vmem>>, vector<1x72x4xf32>
    %263 = vector.shape_cast %262 : vector<1x72x4xf32> to vector<72x4xf32>
    %cst_76 = arith.constant dense<0.000000e+00> : vector<72x222xf32>
    %264 = tpu.matmul %263, %261, %cst_76 {dimension_numbers = #tpu.dot_dimension_numbers<[1], [0], [0], [1], [0, 0, 1, 1], [], []>} : vector<72x4xf32>, vector<4x222xf32>, vector<72x222xf32> -> vector<72x222xf32>
    %265 = vector.extract_strided_slice %264 {offsets = [0, 0], sizes = [8, 200], strides = [1, 1]} : vector<72x222xf32> to vector<8x200xf32>
    %266 = arith.addf %236, %265 : vector<8x200xf32>
    %267 = vector.extract_strided_slice %264 {offsets = [8, 1], sizes = [8, 200], strides = [1, 1]} : vector<72x222xf32> to vector<8x200xf32>
    %268 = arith.addf %266, %267 : vector<8x200xf32>
    %269 = vector.extract_strided_slice %264 {offsets = [16, 2], sizes = [8, 200], strides = [1, 1]} : vector<72x222xf32> to vector<8x200xf32>
    %270 = arith.addf %268, %269 : vector<8x200xf32>
    %271 = vector.extract_strided_slice %264 {offsets = [24, 10], sizes = [8, 200], strides = [1, 1]} : vector<72x222xf32> to vector<8x200xf32>
    %272 = arith.addf %270, %271 : vector<8x200xf32>
    %273 = vector.extract_strided_slice %264 {offsets = [32, 11], sizes = [8, 200], strides = [1, 1]} : vector<72x222xf32> to vector<8x200xf32>
    %274 = arith.addf %272, %273 : vector<8x200xf32>
    %275 = vector.extract_strided_slice %264 {offsets = [40, 12], sizes = [8, 200], strides = [1, 1]} : vector<72x222xf32> to vector<8x200xf32>
    %276 = arith.addf %274, %275 : vector<8x200xf32>
    %277 = vector.extract_strided_slice %264 {offsets = [48, 20], sizes = [8, 200], strides = [1, 1]} : vector<72x222xf32> to vector<8x200xf32>
    %278 = arith.addf %276, %277 : vector<8x200xf32>
    %279 = vector.extract_strided_slice %264 {offsets = [56, 21], sizes = [8, 200], strides = [1, 1]} : vector<72x222xf32> to vector<8x200xf32>
    %280 = arith.addf %278, %279 : vector<8x200xf32>
    %281 = vector.extract_strided_slice %264 {offsets = [64, 22], sizes = [8, 200], strides = [1, 1]} : vector<72x222xf32> to vector<8x200xf32>
    %282 = arith.addf %280, %281 : vector<8x200xf32>
    %283 = vector.broadcast %0 : vector<8x1xf32> to vector<8x200xf32>
    %284 = arith.addf %144, %283 : vector<8x200xf32>
    %cst_77 = arith.constant 0.000000e+00 : f32
    %285 = vector.broadcast %cst_77 : f32 to vector<8x200xf32>
    %286 = arith.maximumf %284, %285 : vector<8x200xf32>
    %cst_78 = arith.constant dense<0.000000e+00> : vector<4x200xf32>
    %287 = tpu.matmul %2, %286, %cst_78 {dimension_numbers = #tpu.dot_dimension_numbers<[1], [0], [0], [1], [0, 0, 1, 1], [], []>} : vector<4x8xf32>, vector<8x200xf32>, vector<4x200xf32> -> vector<4x200xf32>
    %288 = vector.broadcast %1 : vector<4x1xf32> to vector<4x200xf32>
    %289 = arith.addf %287, %288 : vector<4x200xf32>
    %c1_79 = arith.constant 1 : index
    %c0_80 = arith.constant 0 : index
    %c0_81 = arith.constant 0 : index
    %290 = vector.load %arg1[%c1_79, %c0_80, %c0_81] : memref<4x4x222xf32, #tpu.memory_space<vmem>>, vector<1x4x222xf32>
    %291 = vector.shape_cast %290 : vector<1x4x222xf32> to vector<4x222xf32>
    %292 = vector.extract_strided_slice %291 {offsets = [0, 11], sizes = [4, 200], strides = [1, 1]} : vector<4x222xf32> to vector<4x200xf32>
    %293 = arith.addf %289, %292 : vector<4x200xf32>
    %c0_82 = arith.constant 0 : index
    %c0_83 = arith.constant 0 : index
    %c0_84 = arith.constant 0 : index
    %294 = vector.load %arg7[%c0_82, %c0_83, %c0_84] : memref<4x4x200xf32, #tpu.memory_space<vmem>>, vector<1x4x200xf32>
    %295 = vector.shape_cast %294 : vector<1x4x200xf32> to vector<4x200xf32>
    %296 = vector.shape_cast %293 : vector<4x200xf32> to vector<1x4x200xf32>
    tpu.vector_store %arg7[%c0_82, %c0_83, %c0_84], %296 {strides = array<i32>} : memref<4x4x200xf32, #tpu.memory_space<vmem>>, vector<1x4x200xf32>,
    %297 = vector.broadcast %0 : vector<8x1xf32> to vector<8x200xf32>
    %298 = arith.addf %211, %297 : vector<8x200xf32>
    %cst_85 = arith.constant 0.000000e+00 : f32
    %299 = vector.broadcast %cst_85 : f32 to vector<8x200xf32>
    %300 = arith.maximumf %298, %299 : vector<8x200xf32>
    %cst_86 = arith.constant dense<0.000000e+00> : vector<4x200xf32>
    %301 = tpu.matmul %2, %300, %cst_86 {dimension_numbers = #tpu.dot_dimension_numbers<[1], [0], [0], [1], [0, 0, 1, 1], [], []>} : vector<4x8xf32>, vector<8x200xf32>, vector<4x200xf32> -> vector<4x200xf32>
    %302 = vector.broadcast %1 : vector<4x1xf32> to vector<4x200xf32>
    %303 = arith.addf %301, %302 : vector<4x200xf32>
    %c2_87 = arith.constant 2 : index
    %c0_88 = arith.constant 0 : index
    %c0_89 = arith.constant 0 : index
    %304 = vector.load %arg1[%c2_87, %c0_88, %c0_89] : memref<4x4x222xf32, #tpu.memory_space<vmem>>, vector<1x4x222xf32>
    %305 = vector.shape_cast %304 : vector<1x4x222xf32> to vector<4x222xf32>
    %306 = vector.extract_strided_slice %305 {offsets = [0, 11], sizes = [4, 200], strides = [1, 1]} : vector<4x222xf32> to vector<4x200xf32>
    %307 = arith.addf %303, %306 : vector<4x200xf32>
    %c1_90 = arith.constant 1 : index
    %c0_91 = arith.constant 0 : index
    %c0_92 = arith.constant 0 : index
    %308 = vector.load %arg7[%c1_90, %c0_91, %c0_92] : memref<4x4x200xf32, #tpu.memory_space<vmem>>, vector<1x4x200xf32>
    %309 = vector.shape_cast %308 : vector<1x4x200xf32> to vector<4x200xf32>
    %310 = vector.shape_cast %307 : vector<4x200xf32> to vector<1x4x200xf32>
    tpu.vector_store %arg7[%c1_90, %c0_91, %c0_92], %310 {strides = array<i32>} : memref<4x4x200xf32, #tpu.memory_space<vmem>>, vector<1x4x200xf32>,
    %311 = vector.broadcast %0 : vector<8x1xf32> to vector<8x200xf32>
    %312 = arith.addf %257, %311 : vector<8x200xf32>
    %cst_93 = arith.constant 0.000000e+00 : f32
    %313 = vector.broadcast %cst_93 : f32 to vector<8x200xf32>
    %314 = arith.maximumf %312, %313 : vector<8x200xf32>
    %cst_94 = arith.constant dense<0.000000e+00> : vector<4x200xf32>
    %315 = tpu.matmul %2, %314, %cst_94 {dimension_numbers = #tpu.dot_dimension_numbers<[1], [0], [0], [1], [0, 0, 1, 1], [], []>} : vector<4x8xf32>, vector<8x200xf32>, vector<4x200xf32> -> vector<4x200xf32>
    %316 = vector.broadcast %1 : vector<4x1xf32> to vector<4x200xf32>
    %317 = arith.addf %315, %316 : vector<4x200xf32>
    %c3_95 = arith.constant 3 : index
    %c0_96 = arith.constant 0 : index
    %c0_97 = arith.constant 0 : index
    %318 = vector.load %arg1[%c3_95, %c0_96, %c0_97] : memref<4x4x222xf32, #tpu.memory_space<vmem>>, vector<1x4x222xf32>
    %319 = vector.shape_cast %318 : vector<1x4x222xf32> to vector<4x222xf32>
    %320 = vector.extract_strided_slice %319 {offsets = [0, 11], sizes = [4, 200], strides = [1, 1]} : vector<4x222xf32> to vector<4x200xf32>
    %321 = arith.addf %317, %320 : vector<4x200xf32>
    %c2_98 = arith.constant 2 : index
    %c0_99 = arith.constant 0 : index
    %c0_100 = arith.constant 0 : index
    %322 = vector.load %arg7[%c2_98, %c0_99, %c0_100] : memref<4x4x200xf32, #tpu.memory_space<vmem>>, vector<1x4x200xf32>
    %323 = vector.shape_cast %322 : vector<1x4x200xf32> to vector<4x200xf32>
    %324 = vector.shape_cast %321 : vector<4x200xf32> to vector<1x4x200xf32>
    tpu.vector_store %arg7[%c2_98, %c0_99, %c0_100], %324 {strides = array<i32>} : memref<4x4x200xf32, #tpu.memory_space<vmem>>, vector<1x4x200xf32>,
    %325 = vector.broadcast %0 : vector<8x1xf32> to vector<8x200xf32>
    %326 = arith.addf %282, %325 : vector<8x200xf32>
    %cst_101 = arith.constant 0.000000e+00 : f32
    %327 = vector.broadcast %cst_101 : f32 to vector<8x200xf32>
    %328 = arith.maximumf %326, %327 : vector<8x200xf32>
    %cst_102 = arith.constant dense<0.000000e+00> : vector<4x200xf32>
    %329 = tpu.matmul %2, %328, %cst_102 {dimension_numbers = #tpu.dot_dimension_numbers<[1], [0], [0], [1], [0, 0, 1, 1], [], []>} : vector<4x8xf32>, vector<8x200xf32>, vector<4x200xf32> -> vector<4x200xf32>
    %330 = vector.broadcast %1 : vector<4x1xf32> to vector<4x200xf32>
    %331 = arith.addf %329, %330 : vector<4x200xf32>
    %c0_103 = arith.constant 0 : index
    %c0_104 = arith.constant 0 : index
    %c0_105 = arith.constant 0 : index
    %332 = vector.load %arg2[%c0_103, %c0_104, %c0_105] : memref<2x4x222xf32, #tpu.memory_space<vmem>>, vector<1x4x222xf32>
    %333 = vector.shape_cast %332 : vector<1x4x222xf32> to vector<4x222xf32>
    %334 = vector.extract_strided_slice %333 {offsets = [0, 11], sizes = [4, 200], strides = [1, 1]} : vector<4x222xf32> to vector<4x200xf32>
    %335 = arith.addf %331, %334 : vector<4x200xf32>
    %c3_106 = arith.constant 3 : index
    %c0_107 = arith.constant 0 : index
    %c0_108 = arith.constant 0 : index
    %336 = vector.load %arg7[%c3_106, %c0_107, %c0_108] : memref<4x4x200xf32, #tpu.memory_space<vmem>>, vector<1x4x200xf32>
    %337 = vector.shape_cast %336 : vector<1x4x200xf32> to vector<4x200xf32>
    %338 = vector.shape_cast %335 : vector<4x200xf32> to vector<1x4x200xf32>
    tpu.vector_store %arg7[%c3_106, %c0_107, %c0_108], %338 {strides = array<i32>} : memref<4x4x200xf32, #tpu.memory_space<vmem>>, vector<1x4x200xf32>,
    return
  }
  func.func @transform_0(%arg0: i32) -> (i32, i32, i32) {
    %c0_i32 = arith.constant 0 : i32
    %c0_i32_0 = arith.constant 0 : i32
    %c0_i32_1 = arith.constant 0 : i32
    return %arg0, %c0_i32, %c0_i32_0 : i32, i32, i32
  }
  func.func @transform_1(%arg0: i32) -> (i32, i32, i32) {
    %c2_i32 = arith.constant 2 : i32
    %0 = arith.muli %arg0, %c2_i32 : i32
    %c2_i32_0 = arith.constant 2 : i32
    %1 = arith.addi %0, %c2_i32_0 : i32
    %c0_i32 = arith.constant 0 : i32
    %c0_i32_1 = arith.constant 0 : i32
    %c0_i32_2 = arith.constant 0 : i32
    return %1, %c0_i32, %c0_i32_1 : i32, i32, i32
  }
  func.func @transform_2(%arg0: i32) -> (i32, i32, i32) {
    %c0_i32 = arith.constant 0 : i32
    %c0_i32_0 = arith.constant 0 : i32
    %c0_i32_1 = arith.constant 0 : i32
    %c0_i32_2 = arith.constant 0 : i32
    return %c0_i32, %c0_i32_0, %c0_i32_1 : i32, i32, i32
  }
  func.func @transform_3(%arg0: i32) -> (i32, i32) {
    %c0_i32 = arith.constant 0 : i32
    %c0_i32_0 = arith.constant 0 : i32
    %c0_i32_1 = arith.constant 0 : i32
    return %c0_i32, %c0_i32_0 : i32, i32
  }
  func.func @transform_4(%arg0: i32) -> (i32, i32) {
    %c0_i32 = arith.constant 0 : i32
    %c0_i32_0 = arith.constant 0 : i32
    %c0_i32_1 = arith.constant 0 : i32
    return %c0_i32, %c0_i32_0 : i32, i32
  }
  func.func @transform_5(%arg0: i32) -> (i32, i32) {
    %c0_i32 = arith.constant 0 : i32
    %c0_i32_0 = arith.constant 0 : i32
    %c0_i32_1 = arith.constant 0 : i32
    return %c0_i32, %c0_i32_0 : i32, i32
  }
  func.func @transform_6(%arg0: i32) -> (i32, i32, i32) {
    %c0_i32 = arith.constant 0 : i32
    %c0_i32_0 = arith.constant 0 : i32
    %c0_i32_1 = arith.constant 0 : i32
    return %arg0, %c0_i32, %c0_i32_0 : i32, i32, i32
  }
}

</mosaic_0001>

<llo_original>
// kernel: resblock_forward.1
$region0: #{resblock_forward.1}
  #allocation0 [shape = 'u32[]', space=smem, size = 0x4, offset = 0x4, fixed_abs, tag = 'smem constant byte address 0x4 - core index']
  #allocation1 [shape = 'u32[144,128]{1,0:T(1,128)}', space=vmem, size = 0x12000, scoped, tag = 'internal scratch']
  %s0 = inlined_call_operand.vmem [shape: f32[10,4,222], index: 0, kind: input, shape index: {}, may-alias: {0,1}]
  %s1 = inlined_call_operand.vmem [shape: f32[10,4,222], index: 1, kind: input, shape index: {}, may-alias: {0,1}]
  %s2 = inlined_call_operand.vmem [shape: f32[3,72,4], index: 2, kind: input, shape index: {}]
  %s3 = inlined_call_operand.vmem [shape: f32[8,1], index: 3, kind: input, shape index: {}]
  %s4 = inlined_call_operand.vmem [shape: f32[4,8], index: 4, kind: input, shape index: {}]
  %s5 = inlined_call_operand.vmem [shape: f32[4,1], index: 5, kind: input, shape index: {}]
  %s6 = inlined_call_operand.vmem [shape: f32[8,4,200], index: 6, kind: output, shape index: {}]
  %s7 = sld [smem:[#allocation0]]
  $region57: #{resblock_forward.1} parent=0
    _
  %s9 = ssub.s32 1, %s7
  %s10 = scalar_select 0, %s9, %s7
  loop: start=0, step=1, limit=4
  $region2: #{resblock_forward.1} parent=0 // loop_pre_header
    _
  $region3: #{resblock_forward.1} parent=0 // loop_header
    %s12 = sphi 0, %s16
    %p13 = scmp.ge.s32.totalorder %s12, 4
    %s22 = sphi 0, %s24
    %s25 = sphi 0, %s22
    %s26 = sphi 0, %s25
    %s42 = sphi 0, %s26
    %s52 = sphi 0, %s54
    %s55 = sphi 0, %s52
    %s56 = sphi 0, %s55
    %s72 = sphi 0, %s56
    %s76 = sphi 0, %s76
    %s78 = sphi 0, %s76
    %s79 = sphi 0, %s78
    %s93 = sphi 0, %s79
    %s97 = sphi 0, %s97
    %s99 = sphi 0, %s97
    %s100 = sphi 0, %s99
    %s114 = sphi 0, %s100
    %s118 = sphi 0, %s118
    %s120 = sphi 0, %s118
    %s121 = sphi 0, %s120
    %s135 = sphi 0, %s121
    %s139 = sphi 0, %s139
    %s141 = sphi 0, %s139
    %s142 = sphi 0, %s141
    %s156 = sphi 0, %s142
    %s162 = sphi 0, %s164
    %s165 = sphi 0, %s162
    %s166 = sphi 0, %s165
    %s182 = sphi 0, %s166
  $region4: #{resblock_forward.1} parent=0 // loop_header_branch
    %15 = sbr.rel (%p13) target = $region8
  $region5: #{resblock_forward.1} parent=0 // loop_body
    %s17 = ssub.s32 %s12, 1
    %s18 = ssub.s32 %s12, 2
    %s19 = sadd.s32 %s12, 1
    %s20 = ssub.s32 %s12, %s19
    %p21 = scmp.eq.s32.totalorder %s20, 0
    %s23 = sadd.s32 %s22, 1
    %s24 = scalar_select %p21, %s22, %s23
    %p27 = pneg %p21
    %p28 = scmp.eq.s32.totalorder %s12, 1
    %p29 = por %p27, %p28
    %p30 = scmp.ne.s32.totalorder %s22, %s25
    %p31 = scmp.eq.s32.totalorder %s12, 0
    %p32 = por %p30, %p31
    %p33 = scmp.ne.s32.totalorder %s22, %s25
    %p34 = scmp.eq.s32.totalorder %s17, 1
    %p35 = por %p33, %p34
    %p36 = scmp.ne.s32.totalorder %s25, %s26
    %p37 = scmp.eq.s32.totalorder %s17, 0
    %p38 = por %p36, %p37
    %p39 = scmp.ne.s32.totalorder %s25, %s26
    %p40 = scmp.eq.s32.totalorder %s18, 1
    %p41 = por %p39, %p40
    %p43 = scmp.ne.s32.totalorder %s26, %s42
    %p44 = scmp.eq.s32.totalorder %s18, 0
    %p45 = por %p43, %p44
    %s46 = smul.u32 %s12, 2
    %s47 = sadd.s32 %s46, 2
    %s48 = smul.u32 %s19, 2
    %s49 = sadd.s32 %s48, 2
    %s50 = ssub.s32 %s47, %s49
    %p51 = scmp.eq.s32.totalorder %s50, 0
    %s53 = sadd.s32 %s52, 1
    %s54 = scalar_select %p51, %s52, %s53
    %p57 = pneg %p51
    %p58 = scmp.eq.s32.totalorder %s12, 1
    %p59 = por %p57, %p58
    %p60 = scmp.ne.s32.totalorder %s52, %s55
    %p61 = scmp.eq.s32.totalorder %s12, 0
    %p62 = por %p60, %p61
    %p63 = scmp.ne.s32.totalorder %s52, %s55
    %p64 = scmp.eq.s32.totalorder %s17, 1
    %p65 = por %p63, %p64
    %p66 = scmp.ne.s32.totalorder %s55, %s56
    %p67 = scmp.eq.s32.totalorder %s17, 0
    %p68 = por %p66, %p67
    %p69 = scmp.ne.s32.totalorder %s55, %s56
    %p70 = scmp.eq.s32.totalorder %s18, 1
    %p71 = por %p69, %p70
    %p73 = scmp.ne.s32.totalorder %s56, %s72
    %p74 = scmp.eq.s32.totalorder %s18, 0
    %p75 = por %p73, %p74
    %s77 = sadd.s32 %s76, 1
    %p80 = scmp.eq.s32.totalorder %s12, 1
    %p81 = scmp.ne.s32.totalorder %s76, %s78
    %p82 = scmp.eq.s32.totalorder %s12, 0
    %p83 = por %p81, %p82
    %p84 = scmp.ne.s32.totalorder %s76, %s78
    %p85 = scmp.eq.s32.totalorder %s17, 1
    %p86 = por %p84, %p85
    %p87 = scmp.ne.s32.totalorder %s78, %s79
    %p88 = scmp.eq.s32.totalorder %s17, 0
    %p89 = por %p87, %p88
    %p90 = scmp.ne.s32.totalorder %s78, %s79
    %p91 = scmp.eq.s32.totalorder %s18, 1
    %p92 = por %p90, %p91
    %p94 = scmp.ne.s32.totalorder %s79, %s93
    %p95 = scmp.eq.s32.totalorder %s18, 0
    %p96 = por %p94, %p95
    %s98 = sadd.s32 %s97, 1
    %p101 = scmp.eq.s32.totalorder %s12, 1
    %p102 = scmp.ne.s32.totalorder %s97, %s99
    %p103 = scmp.eq.s32.totalorder %s12, 0
    %p104 = por %p102, %p103
    %p105 = scmp.ne.s32.totalorder %s97, %s99
    %p106 = scmp.eq.s32.totalorder %s17, 1
    %p107 = por %p105, %p106
    %p108 = scmp.ne.s32.totalorder %s99, %s100
    %p109 = scmp.eq.s32.totalorder %s17, 0
    %p110 = por %p108, %p109
    %p111 = scmp.ne.s32.totalorder %s99, %s100
    %p112 = scmp.eq.s32.totalorder %s18, 1
    %p113 = por %p111, %p112
    %p115 = scmp.ne.s32.totalorder %s100, %s114
    %p116 = scmp.eq.s32.totalorder %s18, 0
    %p117 = por %p115, %p116
    %s119 = sadd.s32 %s118, 1
    %p122 = scmp.eq.s32.totalorder %s12, 1
    %p123 = scmp.ne.s32.totalorder %s118, %s120
    %p124 = scmp.eq.s32.totalorder %s12, 0
    %p125 = por %p123, %p124
    %p126 = scmp.ne.s32.totalorder %s118, %s120
    %p127 = scmp.eq.s32.totalorder %s17, 1
    %p128 = por %p126, %p127
    %p129 = scmp.ne.s32.totalorder %s120, %s121
    %p130 = scmp.eq.s32.totalorder %s17, 0
    %p131 = por %p129, %p130
    %p132 = scmp.ne.s32.totalorder %s120, %s121
    %p133 = scmp.eq.s32.totalorder %s18, 1
    %p134 = por %p132, %p133
    %p136 = scmp.ne.s32.totalorder %s121, %s135
    %p137 = scmp.eq.s32.totalorder %s18, 0
    %p138 = por %p136, %p137
    %s140 = sadd.s32 %s139, 1
    %p143 = scmp.eq.s32.totalorder %s12, 1
    %p144 = scmp.ne.s32.totalorder %s139, %s141
    %p145 = scmp.eq.s32.totalorder %s12, 0
    %p146 = por %p144, %p145
    %p147 = scmp.ne.s32.totalorder %s139, %s141
    %p148 = scmp.eq.s32.totalorder %s17, 1
    %p149 = por %p147, %p148
    %p150 = scmp.ne.s32.totalorder %s141, %s142
    %p151 = scmp.eq.s32.totalorder %s17, 0
    %p152 = por %p150, %p151
    %p153 = scmp.ne.s32.totalorder %s141, %s142
    %p154 = scmp.eq.s32.totalorder %s18, 1
    %p155 = por %p153, %p154
    %p157 = scmp.ne.s32.totalorder %s142, %s156
    %p158 = scmp.eq.s32.totalorder %s18, 0
    %p159 = por %p157, %p158
    %s160 = ssub.s32 %s12, %s19
    %p161 = scmp.eq.s32.totalorder %s160, 0
    %s163 = sadd.s32 %s162, 1
    %s164 = scalar_select %p161, %s162, %s163
    %p167 = pneg %p161
    %p168 = scmp.eq.s32.totalorder %s12, 1
    %p169 = por %p167, %p168
    %p170 = scmp.ne.s32.totalorder %s162, %s165
    %p171 = scmp.eq.s32.totalorder %s12, 0
    %p172 = por %p170, %p171
    %p173 = scmp.ne.s32.totalorder %s162, %s165
    %p174 = scmp.eq.s32.totalorder %s17, 1
    %p175 = por %p173, %p174
    %p176 = scmp.ne.s32.totalorder %s165, %s166
    %p177 = scmp.eq.s32.totalorder %s17, 0
    %p178 = por %p176, %p177
    %p179 = scmp.ne.s32.totalorder %s165, %s166
    %p180 = scmp.eq.s32.totalorder %s18, 1
    %p181 = por %p179, %p180
    %p183 = scmp.ne.s32.totalorder %s166, %s182
    %p184 = scmp.eq.s32.totalorder %s18, 0
    %p185 = por %p183, %p184
    %p186 = scmp.le.s32.totalorder 1, %s12
    %p187 = scmp.lt.s32.totalorder %s12, 3
    %p188 = pnand %p186, %p187
    %p189 = pneg %p188
    // Predicated region
    $region9: #{resblock_forward.1} parent=5 // pred_check
      _
    $region10: #{resblock_forward.1} parent=5 // pred_check_branch
      %191 = sbr.rel (%p188) target = $region12
    $region11: #{resblock_forward.1} parent=5 // pred_region
      %s192 = ssub.s32 %s12, 1
      // Predicated region
      $region13: #{resblock_forward.1} parent=11 // pred_check
        %p193 = pneg %p89
      $region14: #{resblock_forward.1} parent=11 // pred_check_branch
        %195 = sbr.rel (%p193) target = $region16
      $region15: #{resblock_forward.1} parent=11 // pred_region
        _
      $region16: #{resblock_forward.1} parent=11 // pred_fallthru
        _
      // Predicated region
      $region17: #{resblock_forward.1} parent=11 // pred_check
        %p196 = pneg %p110
      $region18: #{resblock_forward.1} parent=11 // pred_check_branch
        %198 = sbr.rel (%p196) target = $region20
      $region19: #{resblock_forward.1} parent=11 // pred_region
        _
      $region20: #{resblock_forward.1} parent=11 // pred_fallthru
        _
      // Predicated region
      $region21: #{resblock_forward.1} parent=11 // pred_check
        %p199 = pneg %p131
      $region22: #{resblock_forward.1} parent=11 // pred_check_branch
        %201 = sbr.rel (%p199) target = $region24
      $region23: #{resblock_forward.1} parent=11 // pred_region
        _
      $region24: #{resblock_forward.1} parent=11 // pred_fallthru
        _
      // Predicated region
      $region25: #{resblock_forward.1} parent=11 // pred_check
        %p202 = pneg %p152
      $region26: #{resblock_forward.1} parent=11 // pred_check_branch
        %204 = sbr.rel (%p202) target = $region28
      $region27: #{resblock_forward.1} parent=11 // pred_region
        _
      $region28: #{resblock_forward.1} parent=11 // pred_fallthru
        _
    $region12: #{resblock_forward.1} parent=5 // pred_fallthru
      _
    %p205 = scmp.lt.s32.totalorder %s12, 2
    // Predicated region
    $region29: #{resblock_forward.1} parent=5 // pred_check
      %p206 = pneg %p205
    $region30: #{resblock_forward.1} parent=5 // pred_check_branch
      %208 = sbr.rel (%p206) target = $region32
    $region31: #{resblock_forward.1} parent=5 // pred_region
      // Predicated region
      $region33: #{resblock_forward.1} parent=31 // pred_check
        %p209 = pneg %p32
      $region34: #{resblock_forward.1} parent=31 // pred_check_branch
        %211 = sbr.rel (%p209) target = $region36
      $region35: #{resblock_forward.1} parent=31 // pred_region
        %s212 = smul.u32 4, %s12
        %s213 = ssub.s32 10, %s212
        %p214 = scmp.lt.s32.totalorder %s213, 4
        %s215 = scalar_select %p214, %s213, 4
        %s216 = smul.u32 64, %s215
        %s217 = smul.u32 %s216, 2
        %p218 = scmp.lt.s32.totalorder %s212, 9
        %s219 = scalar_select %p218, %s212, 9
        %s220 = smul.addr %s219, 2
        %s221 = smul.addr %s220, 4
        %s222 = scalar_lea.vmem %s0, %s221
        %s223 = smul.u32 4, %s12
        %s224 = ssub.s32 10, %s223
        %p225 = scmp.lt.s32.totalorder %s224, 4
        %s226 = scalar_select %p225, %s224, 4
        %s227 = smul.u32 64, %s226
        %s228 = smul.u32 %s227, 2
      $region36: #{resblock_forward.1} parent=31 // pred_fallthru
        _
      // Predicated region
      $region37: #{resblock_forward.1} parent=31 // pred_check
        %p229 = pneg %p62
      $region38: #{resblock_forward.1} parent=31 // pred_check_branch
        %231 = sbr.rel (%p229) target = $region40
      $region39: #{resblock_forward.1} parent=31 // pred_region
        %s232 = smul.u32 %s12, 2
        %s233 = sadd.s32 %s232, 2
        %s234 = smul.u32 2, %s233
        %p235 = scmp.lt.s32.totalorder %s234, 9
        %s236 = scalar_select %p235, %s234, 9
        %s237 = smul.addr %s236, 2
        %s238 = smul.addr %s237, 4
        %s239 = scalar_lea.vmem %s1, %s238
        %s240 = smul.u32 %s12, 2
        %s241 = sadd.s32 %s240, 2
        %s242 = smul.u32 2, %s241
      $region40: #{resblock_forward.1} parent=31 // pred_fallthru
        _
    $region32: #{resblock_forward.1} parent=5 // pred_fallthru
      _
    %p243 = scmp.le.s32.totalorder 1, %s12
    %p244 = scmp.lt.s32.totalorder %s12, 3
    %p245 = pnand %p243, %p244
    %p246 = pneg %p245
    // Predicated region
    $region41: #{resblock_forward.1} parent=5 // pred_check
      _
    $region42: #{resblock_forward.1} parent=5 // pred_check_branch
      %248 = sbr.rel (%p245) target = $region44
    $region43: #{resblock_forward.1} parent=5 // pred_region
      %s249 = ssub.s32 %s12, 1
      %s250 = smul.u32 4, %s17
      %s251 = ssub.s32 10, %s250
      %p252 = scmp.lt.s32.totalorder %s251, 4
      %s253 = scalar_select %p252, %s251, 4
      %s254 = smul.u32 64, %s253
      %s255 = smul.u32 %s254, 2
      %p256 = scmp.lt.s32.totalorder %s250, 9
      %s257 = scalar_select %p256, %s250, 9
      %s258 = smul.addr %s257, 2
      %s259 = smul.addr %s258, 4
      %s260 = scalar_lea.vmem %s0, %s259
      %p261 = pneg %p38
      %p262 = pneg %p35
      %s263 = smul.u32 %s17, 2
      %s264 = sadd.s32 %s263, 2
      %s265 = smul.u32 2, %s264
      %p266 = scmp.lt.s32.totalorder %s265, 9
      %s267 = scalar_select %p266, %s265, 9
      %s268 = smul.addr %s267, 2
      %s269 = smul.addr %s268, 4
      %s270 = scalar_lea.vmem %s1, %s269
      %p271 = pneg %p68
      %p272 = pneg %p65
      %p273 = pneg %p89
      %p274 = pneg %p86
      %p275 = pneg %p110
      %p276 = pneg %p107
      %p277 = pneg %p131
      %p278 = pneg %p128
      %p279 = pneg %p152
      %p280 = pneg %p149
      %p281 = pneg %p178
      %p282 = pneg %p175
      %s283 = smul.u32 4, %s17
      %p284 = scmp.lt.s32.totalorder %s283, 7
      %s285 = scalar_select %p284, %s283, 7
      %s286 = smul.addr %s285, 2
      %s287 = smul.addr %s286, 4
      %s288 = scalar_lea.vmem %s6, %s287
      %s289 = smul.u32 4, %s17
      %s290 = ssub.s32 10, %s289
      %p291 = scmp.lt.s32.totalorder %s290, 4
      %s292 = scalar_select %p291, %s290, 4
      %s293 = smul.u32 64, %s292
      %s294 = smul.u32 %s293, 2
      %p295 = scmp.lt.s32.totalorder %s289, 9
      %s296 = scalar_select %p295, %s289, 9
      %s297 = smul.addr %s296, 2
      %s298 = smul.addr %s297, 4
      %s299 = scalar_lea.vmem %s0, %s298
      %s300 = smul.u32 4, %s17
      %s301 = ssub.s32 10, %s300
      %p302 = scmp.lt.s32.totalorder %s301, 4
      %s303 = scalar_select %p302, %s301, 4
      %s304 = smul.u32 64, %s303
      %s305 = smul.u32 %s304, 2
      %s306 = smul.u32 %s17, 2
      %s307 = sadd.s32 %s306, 2
      %s308 = smul.u32 2, %s307
      %p309 = scmp.lt.s32.totalorder %s308, 9
      %s310 = scalar_select %p309, %s308, 9
      %s311 = smul.addr %s310, 2
      %s312 = smul.addr %s311, 4
      %s313 = scalar_lea.vmem %s1, %s312
      %s314 = smul.u32 %s17, 2
      %s315 = sadd.s32 %s314, 2
      %s316 = smul.u32 2, %s315
      %s317 = smul.u32 4, %s17
      %p318 = scmp.lt.s32.totalorder %s317, 7
      %s319 = scalar_select %p318, %s317, 7
      %s320 = smul.addr %s319, 2
      %s321 = smul.addr %s320, 4
      %s322 = scalar_lea.vmem %s6, %s321
      %s323 = smul.u32 4, %s17
      %v324 = vld [vmem:[%s3] sm:$0xff]
      %v325 = vld [vmem:[%s5] sm:$0xf]
      %v326 = vld [vmem:[%s4] sm:$0xf]
      %v327 = vld [vmem:[%s299] sm:$0xff]
      %v328 = vmax.f32 %v327, 0.0
      %v329 = vld [vmem:[%s2] sm:$0xff]
      %v330 = vld [vmem:[%s2 + $0x8] sm:$0xff]
      %v331 = vld [vmem:[%s2 + $0x10] sm:$0xff]
      %v332 = vld [vmem:[%s2 + $0x18] sm:$0xff]
      %v333 = vld [vmem:[%s2 + $0x20] sm:$0xff]
      %v334 = vld [vmem:[%s2 + $0x28] sm:$0xff]
      %v335 = vld [vmem:[%s2 + $0x30] sm:$0xff]
      %v336 = vld [vmem:[%s2 + $0x38] sm:$0xff]
      %v337 = vld [vmem:[%s2 + $0x40] sm:$0xff]
      %v339 = vcombine.high %v328, %v328
      %vm340 = vcmask 31744
      %v342 = vsel %vm340, %v329, 0
      %v345 = vsel %vm340, %v330, 0
      %v348 = vsel %vm340, %v331, 0
      %v351 = vsel %vm340, %v332, 0
      %v354 = vsel %vm340, %v333, 0
      %v357 = vsel %vm340, %v334, 0
      %v360 = vsel %vm340, %v335, 0
      %v363 = vsel %vm340, %v336, 0
      %v366 = vsel %vm340, %v337, 0
      %vm368 = vcmask 1043456
      %v369 = vsel %vm368, %v328, 0
      %v371 = vsel %vm368, %v339, 0
      %373 = vmatprep.subr.mxu0 0.0
      %374 = vmatpush1.msra.mxu0 0.0
      %375 = vmatprep.subr.mxu0 0.0
      %376 = vmatpush1.msra.mxu0 0.0
      %377 = vmatprep.subr.mxu0 0.0
      %378 = vmatpush1.msra.mxu0 0.0
      %379 = vmatprep.subr.mxu0 0.0
      %380 = vmatpush1.msra.mxu0 0.0
      %381 = vmatprep.subr.mxu0 0.0
      %382 = vmatpush1.msra.mxu0 0.0
      %383 = vmatprep.subr.mxu0 0.0
      %384 = vmatpush1.msra.mxu0 0.0
      %385 = vmatprep.subr.mxu0 0.0
      %386 = vmatpush1.msra.mxu0 0.0
      %387 = vmatprep.subr.mxu0 0.0
      %388 = vmatpush1.msra.mxu0 0.0
      %389 = vmatprep.subr.mxu0 0.0
      %390 = vmatpush1.msra.mxu0 0.0
      %391 = vmatprep.subr.mxu0 0.0
      %392 = vmatpush1.msra.mxu0 0.0
      %393 = vmatprep.subr.mxu0 0.0
      %394 = vmatpush1.msra.mxu0 0.0
      %395 = vmatprep.subr.mxu0 0.0
      %396 = vmatpush1.msra.mxu0 0.0
      %397 = vmatprep.subr.mxu0 0.0
      %398 = vmatpush1.msra.mxu0 0.0
      %399 = vmatprep.subr.mxu0 0.0
      %400 = vmatpush1.msra.mxu0 0.0
      %401 = vmatprep.subr.mxu0 0.0
      %402 = vmatpush1.msra.mxu0 0.0
      %403 = vmatprep.subr.mxu0 %v371
      %404 = vmatpush1.msra.mxu0 %v369
      %405 = vmatprep.subr.mxu0 0.0
      %406 = vmatpush2.msra.mxu0 0.0
      %407 = vmatprep.subr.mxu0 0.0
      %408 = vmatpush2.msra.mxu0 0.0
      %409 = vmatprep.subr.mxu0 0.0
      %410 = vmatpush2.msra.mxu0 0.0
      %411 = vmatprep.subr.mxu0 0.0
      %412 = vmatpush2.msra.mxu0 0.0
      %413 = vmatprep.subr.mxu0 0.0
      %414 = vmatpush2.msra.mxu0 0.0
      %415 = vmatprep.subr.mxu0 0.0
      %416 = vmatpush2.msra.mxu0 0.0
      %417 = vmatprep.subr.mxu0 0.0
      %418 = vmatpush2.msra.mxu0 0.0
      %419 = vmatprep.subr.mxu0 0.0
      %420 = vmatpush2.msra.mxu0 0.0
      %421 = vmatprep.subr.mxu0 0.0
      %422 = vmatpush2.msra.mxu0 0.0
      %423 = vmatprep.subr.mxu0 0.0
      %424 = vmatpush2.msra.mxu0 0.0
      %425 = vmatprep.subr.mxu0 0.0
      %426 = vmatpush2.msra.mxu0 0.0
      %427 = vmatprep.subr.mxu0 0.0
      %428 = vmatpush2.msra.mxu0 0.0
      %429 = vmatprep.subr.mxu0 0.0
      %430 = vmatpush2.msra.mxu0 0.0
      %431 = vmatprep.subr.mxu0 0.0
      %432 = vmatpush2.msra.mxu0 0.0
      %433 = vmatprep.subr.mxu0 0.0
      %434 = vmatpush2.msra.mxu0 0.0
      %435 = vmatprep.subr.mxu0 0.0
      %436 = vmatpush2.msra.mxu0 0.0
      %437 = vmatprep.mubr.f32.mxu0 0.0
      %438 = vmatmul.mubr.f32.gmra.mxu0 %v342
      %v439 = vpop.f32.mrf.mxu0
      %v440 = vadd.f32 0.0, %v439
      %v441 = vpop.f32.mrf.mxu0
      %v442 = vadd.f32 0.0, %v441
      %443 = vmatprep.mubr.f32.mxu0 0.0
      %444 = vmatmul.mubr.f32.gmra.mxu0 %v345
      %v445 = vpop.f32.mrf.mxu0
      %v446 = vadd.f32 0.0, %v445
      %v447 = vpop.f32.mrf.mxu0
      %v448 = vadd.f32 0.0, %v447
      %449 = vmatprep.mubr.f32.mxu0 0.0
      %450 = vmatmul.mubr.f32.gmra.mxu0 %v348
      %v451 = vpop.f32.mrf.mxu0
      %v452 = vadd.f32 0.0, %v451
      %v453 = vpop.f32.mrf.mxu0
      %v454 = vadd.f32 0.0, %v453
      %455 = vmatprep.mubr.f32.mxu0 0.0
      %456 = vmatmul.mubr.f32.gmra.mxu0 %v351
      %v457 = vpop.f32.mrf.mxu0
      %v458 = vadd.f32 0.0, %v457
      %v459 = vpop.f32.mrf.mxu0
      %v460 = vadd.f32 0.0, %v459
      %461 = vmatprep.mubr.f32.mxu0 0.0
      %462 = vmatmul.mubr.f32.gmra.mxu0 %v354
      %v463 = vpop.f32.mrf.mxu0
      %v464 = vadd.f32 0.0, %v463
      %v465 = vpop.f32.mrf.mxu0
      %v466 = vadd.f32 0.0, %v465
      %467 = vmatprep.mubr.f32.mxu0 0.0
      %468 = vmatmul.mubr.f32.gmra.mxu0 %v357
      %v469 = vpop.f32.mrf.mxu0
      %v470 = vadd.f32 0.0, %v469
      %v471 = vpop.f32.mrf.mxu0
      %v472 = vadd.f32 0.0, %v471
      %473 = vmatprep.mubr.f32.mxu0 0.0
      %474 = vmatmul.mubr.f32.gmra.mxu0 %v360
      %v475 = vpop.f32.mrf.mxu0
      %v476 = vadd.f32 0.0, %v475
      %v477 = vpop.f32.mrf.mxu0
      %v478 = vadd.f32 0.0, %v477
      %479 = vmatprep.mubr.f32.mxu0 0.0
      %480 = vmatmul.mubr.f32.gmra.mxu0 %v363
      %v481 = vpop.f32.mrf.mxu0
      %v482 = vadd.f32 0.0, %v481
      %v483 = vpop.f32.mrf.mxu0
      %v484 = vadd.f32 0.0, %v483
      %485 = vmatprep.mubr.f32.mxu0 0.0
      %486 = vmatmul.mubr.f32.gmra.mxu0 %v366
      %v487 = vpop.f32.mrf.mxu0
      %v488 = vadd.f32 0.0, %v487
      %v489 = vpop.f32.mrf.mxu0
      %v490 = vadd.f32 0.0, %v489
      %491 = vdwg.mxu0
      %v492 = vadd.f32 %v440, 0.0
      %v493 = vadd.f32 %v442, 0.0
      %496 = vrot.lane.b32.xlu0 %v446, 127
      %v497 = vpop.permute.xlu0 %496
      %498 = vrot.lane.b32.xlu0 %v448, 127
      %v499 = vpop.permute.xlu0 %498
      %vm500 = vcmask 1039360
      %v501 = vsel %vm500, %v497, %v499
      %v504 = vadd.f32 %v492, %v501
      %v505 = vadd.f32 %v493, %v499
      %508 = vrot.lane.b32.xlu0 %v452, 126
      %v509 = vpop.permute.xlu0 %508
      %510 = vrot.lane.b32.xlu0 %v454, 126
      %v511 = vpop.permute.xlu0 %510
      %vm512 = vcmask 1031168
      %v513 = vsel %vm512, %v509, %v511
      %v516 = vadd.f32 %v504, %v513
      %v517 = vadd.f32 %v505, %v511
      %520 = vrot.lane.b32.xlu0 %v458, 118
      %v521 = vpop.permute.xlu0 %520
      %522 = vrot.lane.b32.xlu0 %v460, 118
      %v523 = vpop.permute.xlu0 %522
      %vm524 = vcmask 965632
      %v525 = vsel %vm524, %v521, %v523
      %v528 = vadd.f32 %v516, %v525
      %v529 = vadd.f32 %v517, %v523
      %532 = vrot.lane.b32.xlu0 %v464, 117
      %v533 = vpop.permute.xlu0 %532
      %534 = vrot.lane.b32.xlu0 %v466, 117
      %v535 = vpop.permute.xlu0 %534
      %vm536 = vcmask 957440
      %v537 = vsel %vm536, %v533, %v535
      %v540 = vadd.f32 %v528, %v537
      %v541 = vadd.f32 %v529, %v535
      %544 = vrot.lane.b32.xlu0 %v470, 116
      %v545 = vpop.permute.xlu0 %544
      %546 = vrot.lane.b32.xlu0 %v472, 116
      %v547 = vpop.permute.xlu0 %546
      %vm548 = vcmask 949248
      %v549 = vsel %vm548, %v545, %v547
      %v552 = vadd.f32 %v540, %v549
      %v553 = vadd.f32 %v541, %v547
      %556 = vrot.lane.b32.xlu0 %v476, 108
      %v557 = vpop.permute.xlu0 %556
      %558 = vrot.lane.b32.xlu0 %v478, 108
      %v559 = vpop.permute.xlu0 %558
      %vm560 = vcmask 883712
      %v561 = vsel %vm560, %v557, %v559
      %v564 = vadd.f32 %v552, %v561
      %v565 = vadd.f32 %v553, %v559
      %568 = vrot.lane.b32.xlu0 %v482, 107
      %v569 = vpop.permute.xlu0 %568
      %570 = vrot.lane.b32.xlu0 %v484, 107
      %v571 = vpop.permute.xlu0 %570
      %vm572 = vcmask 875520
      %v573 = vsel %vm572, %v569, %v571
      %v576 = vadd.f32 %v564, %v573
      %v577 = vadd.f32 %v565, %v571
      %580 = vrot.lane.b32.xlu0 %v488, 106
      %v581 = vpop.permute.xlu0 %580
      %582 = vrot.lane.b32.xlu0 %v490, 106
      %v583 = vpop.permute.xlu0 %582
      %vm584 = vcmask 867328
      %v585 = vsel %vm584, %v581, %v583
      %v588 = vadd.f32 %v576, %v585
      %v589 = vadd.f32 %v577, %v583
      %s590 = scalar_lea.vmem %s299, 8
      %v591 = vld [vmem:[%s590] sm:$0xff]
      %v592 = vmax.f32 %v591, 0.0
      %v594 = vcombine.high %v592, %v592
      %v595 = vsel %vm368, %v592, 0
      %v597 = vsel %vm368, %v594, 0
      %599 = vmatprep.subr.mxu0 0.0
      %600 = vmatpush1.msra.mxu0 0.0
      %601 = vmatprep.subr.mxu0 0.0
      %602 = vmatpush1.msra.mxu0 0.0
      %603 = vmatprep.subr.mxu0 0.0
      %604 = vmatpush1.msra.mxu0 0.0
      %605 = vmatprep.subr.mxu0 0.0
      %606 = vmatpush1.msra.mxu0 0.0
      %607 = vmatprep.subr.mxu0 0.0
      %608 = vmatpush1.msra.mxu0 0.0
      %609 = vmatprep.subr.mxu0 0.0
      %610 = vmatpush1.msra.mxu0 0.0
      %611 = vmatprep.subr.mxu0 0.0
      %612 = vmatpush1.msra.mxu0 0.0
      %613 = vmatprep.subr.mxu0 0.0
      %614 = vmatpush1.msra.mxu0 0.0
      %615 = vmatprep.subr.mxu0 0.0
      %616 = vmatpush1.msra.mxu0 0.0
      %617 = vmatprep.subr.mxu0 0.0
      %618 = vmatpush1.msra.mxu0 0.0
      %619 = vmatprep.subr.mxu0 0.0
      %620 = vmatpush1.msra.mxu0 0.0
      %621 = vmatprep.subr.mxu0 0.0
      %622 = vmatpush1.msra.mxu0 0.0
      %623 = vmatprep.subr.mxu0 0.0
      %624 = vmatpush1.msra.mxu0 0.0
      %625 = vmatprep.subr.mxu0 0.0
      %626 = vmatpush1.msra.mxu0 0.0
      %627 = vmatprep.subr.mxu0 0.0
      %628 = vmatpush1.msra.mxu0 0.0
      %629 = vmatprep.subr.mxu0 %v597
      %630 = vmatpush1.msra.mxu0 %v595
      %631 = vmatprep.subr.mxu0 0.0
      %632 = vmatpush2.msra.mxu0 0.0
      %633 = vmatprep.subr.mxu0 0.0
      %634 = vmatpush2.msra.mxu0 0.0
      %635 = vmatprep.subr.mxu0 0.0
      %636 = vmatpush2.msra.mxu0 0.0
      %637 = vmatprep.subr.mxu0 0.0
      %638 = vmatpush2.msra.mxu0 0.0
      %639 = vmatprep.subr.mxu0 0.0
      %640 = vmatpush2.msra.mxu0 0.0
      %641 = vmatprep.subr.mxu0 0.0
      %642 = vmatpush2.msra.mxu0 0.0
      %643 = vmatprep.subr.mxu0 0.0
      %644 = vmatpush2.msra.mxu0 0.0
      %645 = vmatprep.subr.mxu0 0.0
      %646 = vmatpush2.msra.mxu0 0.0
      %647 = vmatprep.subr.mxu0 0.0
      %648 = vmatpush2.msra.mxu0 0.0
      %649 = vmatprep.subr.mxu0 0.0
      %650 = vmatpush2.msra.mxu0 0.0
      %651 = vmatprep.subr.mxu0 0.0
      %652 = vmatpush2.msra.mxu0 0.0
      %653 = vmatprep.subr.mxu0 0.0
      %654 = vmatpush2.msra.mxu0 0.0
      %655 = vmatprep.subr.mxu0 0.0
      %656 = vmatpush2.msra.mxu0 0.0
      %657 = vmatprep.subr.mxu0 0.0
      %658 = vmatpush2.msra.mxu0 0.0
      %659 = vmatprep.subr.mxu0 0.0
      %660 = vmatpush2.msra.mxu0 0.0
      %661 = vmatprep.subr.mxu0 0.0
      %662 = vmatpush2.msra.mxu0 0.0
      %663 = vmatprep.mubr.f32.mxu0 0.0
      %664 = vmatmul.mubr.f32.gmra.mxu0 %v342
      %v665 = vpop.f32.mrf.mxu0
      %v666 = vadd.f32 0.0, %v665
      %v667 = vpop.f32.mrf.mxu0
      %v668 = vadd.f32 0.0, %v667
      %669 = vmatprep.mubr.f32.mxu0 0.0
      %670 = vmatmul.mubr.f32.gmra.mxu0 %v345
      %v671 = vpop.f32.mrf.mxu0
      %v672 = vadd.f32 0.0, %v671
      %v673 = vpop.f32.mrf.mxu0
      %v674 = vadd.f32 0.0, %v673
      %675 = vmatprep.mubr.f32.mxu0 0.0
      %676 = vmatmul.mubr.f32.gmra.mxu0 %v348
      %v677 = vpop.f32.mrf.mxu0
      %v678 = vadd.f32 0.0, %v677
      %v679 = vpop.f32.mrf.mxu0
      %v680 = vadd.f32 0.0, %v679
      %681 = vmatprep.mubr.f32.mxu0 0.0
      %682 = vmatmul.mubr.f32.gmra.mxu0 %v351
      %v683 = vpop.f32.mrf.mxu0
      %v684 = vadd.f32 0.0, %v683
      %v685 = vpop.f32.mrf.mxu0
      %v686 = vadd.f32 0.0, %v685
      %687 = vmatprep.mubr.f32.mxu0 0.0
      %688 = vmatmul.mubr.f32.gmra.mxu0 %v354
      %v689 = vpop.f32.mrf.mxu0
      %v690 = vadd.f32 0.0, %v689
      %v691 = vpop.f32.mrf.mxu0
      %v692 = vadd.f32 0.0, %v691
      %693 = vmatprep.mubr.f32.mxu0 0.0
      %694 = vmatmul.mubr.f32.gmra.mxu0 %v357
      %v695 = vpop.f32.mrf.mxu0
      %v696 = vadd.f32 0.0, %v695
      %v697 = vpop.f32.mrf.mxu0
      %v698 = vadd.f32 0.0, %v697
      %699 = vmatprep.mubr.f32.mxu0 0.0
      %700 = vmatmul.mubr.f32.gmra.mxu0 %v360
      %v701 = vpop.f32.mrf.mxu0
      %v702 = vadd.f32 0.0, %v701
      %v703 = vpop.f32.mrf.mxu0
      %v704 = vadd.f32 0.0, %v703
      %705 = vmatprep.mubr.f32.mxu0 0.0
      %706 = vmatmul.mubr.f32.gmra.mxu0 %v363
      %v707 = vpop.f32.mrf.mxu0
      %v708 = vadd.f32 0.0, %v707
      %v709 = vpop.f32.mrf.mxu0
      %v710 = vadd.f32 0.0, %v709
      %711 = vmatprep.mubr.f32.mxu0 0.0
      %712 = vmatmul.mubr.f32.gmra.mxu0 %v366
      %v713 = vpop.f32.mrf.mxu0
      %v714 = vadd.f32 0.0, %v713
      %v715 = vpop.f32.mrf.mxu0
      %v716 = vadd.f32 0.0, %v715
      %717 = vdwg.mxu0
      %v718 = vadd.f32 %v666, 0.0
      %v719 = vadd.f32 %v668, 0.0
      %722 = vrot.lane.b32.xlu0 %v672, 127
      %v723 = vpop.permute.xlu0 %722
      %724 = vrot.lane.b32.xlu0 %v674, 127
      %v725 = vpop.permute.xlu0 %724
      %v726 = vsel %vm500, %v723, %v725
      %v729 = vadd.f32 %v718, %v726
      %v730 = vadd.f32 %v719, %v725
      %733 = vrot.lane.b32.xlu0 %v678, 126
      %v734 = vpop.permute.xlu0 %733
      %735 = vrot.lane.b32.xlu0 %v680, 126
      %v736 = vpop.permute.xlu0 %735
      %v737 = vsel %vm512, %v734, %v736
      %v740 = vadd.f32 %v729, %v737
      %v741 = vadd.f32 %v730, %v736
      %744 = vrot.lane.b32.xlu0 %v684, 118
      %v745 = vpop.permute.xlu0 %744
      %746 = vrot.lane.b32.xlu0 %v686, 118
      %v747 = vpop.permute.xlu0 %746
      %v748 = vsel %vm524, %v745, %v747
      %v751 = vadd.f32 %v740, %v748
      %v752 = vadd.f32 %v741, %v747
      %755 = vrot.lane.b32.xlu0 %v690, 117
      %v756 = vpop.permute.xlu0 %755
      %757 = vrot.lane.b32.xlu0 %v692, 117
      %v758 = vpop.permute.xlu0 %757
      %v759 = vsel %vm536, %v756, %v758
      %v762 = vadd.f32 %v751, %v759
      %v763 = vadd.f32 %v752, %v758
      %766 = vrot.lane.b32.xlu0 %v696, 116
      %v767 = vpop.permute.xlu0 %766
      %768 = vrot.lane.b32.xlu0 %v698, 116
      %v769 = vpop.permute.xlu0 %768
      %v770 = vsel %vm548, %v767, %v769
      %v773 = vadd.f32 %v762, %v770
      %v774 = vadd.f32 %v763, %v769
      %777 = vrot.lane.b32.xlu0 %v702, 108
      %v778 = vpop.permute.xlu0 %777
      %779 = vrot.lane.b32.xlu0 %v704, 108
      %v780 = vpop.permute.xlu0 %779
      %v781 = vsel %vm560, %v778, %v780
      %v784 = vadd.f32 %v773, %v781
      %v785 = vadd.f32 %v774, %v780
      %788 = vrot.lane.b32.xlu0 %v708, 107
      %v789 = vpop.permute.xlu0 %788
      %790 = vrot.lane.b32.xlu0 %v710, 107
      %v791 = vpop.permute.xlu0 %790
      %v792 = vsel %vm572, %v789, %v791
      %v795 = vadd.f32 %v784, %v792
      %v796 = vadd.f32 %v785, %v791
      %799 = vrot.lane.b32.xlu0 %v714, 106
      %v800 = vpop.permute.xlu0 %799
      %801 = vrot.lane.b32.xlu0 %v716, 106
      %v802 = vpop.permute.xlu0 %801
      %v803 = vsel %vm584, %v800, %v802
      %v806 = vadd.f32 %v795, %v803
      %v807 = vadd.f32 %v796, %v802
      %s808 = scalar_lea.vmem %s2, 72
      %v809 = vld [vmem:[%s808] sm:$0xff]
      %v810 = vld [vmem:[%s808 + $0x8] sm:$0xff]
      %v811 = vld [vmem:[%s808 + $0x10] sm:$0xff]
      %v812 = vld [vmem:[%s808 + $0x18] sm:$0xff]
      %v813 = vld [vmem:[%s808 + $0x20] sm:$0xff]
      %v814 = vld [vmem:[%s808 + $0x28] sm:$0xff]
      %v815 = vld [vmem:[%s808 + $0x30] sm:$0xff]
      %v816 = vld [vmem:[%s808 + $0x38] sm:$0xff]
      %v817 = vld [vmem:[%s808 + $0x40] sm:$0xff]
      %v819 = vsel %vm340, %v809, 0
      %v822 = vsel %vm340, %v810, 0
      %v825 = vsel %vm340, %v811, 0
      %v828 = vsel %vm340, %v812, 0
      %v831 = vsel %vm340, %v813, 0
      %v834 = vsel %vm340, %v814, 0
      %v837 = vsel %vm340, %v815, 0
      %v840 = vsel %vm340, %v816, 0
      %v843 = vsel %vm340, %v817, 0
      %845 = vmatprep.subr.mxu0 0.0
      %846 = vmatpush1.msra.mxu0 0.0
      %847 = vmatprep.subr.mxu0 0.0
      %848 = vmatpush1.msra.mxu0 0.0
      %849 = vmatprep.subr.mxu0 0.0
      %850 = vmatpush1.msra.mxu0 0.0
      %851 = vmatprep.subr.mxu0 0.0
      %852 = vmatpush1.msra.mxu0 0.0
      %853 = vmatprep.subr.mxu0 0.0
      %854 = vmatpush1.msra.mxu0 0.0
      %855 = vmatprep.subr.mxu0 0.0
      %856 = vmatpush1.msra.mxu0 0.0
      %857 = vmatprep.subr.mxu0 0.0
      %858 = vmatpush1.msra.mxu0 0.0
      %859 = vmatprep.subr.mxu0 0.0
      %860 = vmatpush1.msra.mxu0 0.0
      %861 = vmatprep.subr.mxu0 0.0
      %862 = vmatpush1.msra.mxu0 0.0
      %863 = vmatprep.subr.mxu0 0.0
      %864 = vmatpush1.msra.mxu0 0.0
      %865 = vmatprep.subr.mxu0 0.0
      %866 = vmatpush1.msra.mxu0 0.0
      %867 = vmatprep.subr.mxu0 0.0
      %868 = vmatpush1.msra.mxu0 0.0
      %869 = vmatprep.subr.mxu0 0.0
      %870 = vmatpush1.msra.mxu0 0.0
      %871 = vmatprep.subr.mxu0 0.0
      %872 = vmatpush1.msra.mxu0 0.0
      %873 = vmatprep.subr.mxu0 0.0
      %874 = vmatpush1.msra.mxu0 0.0
      %875 = vmatprep.subr.mxu0 %v597
      %876 = vmatpush1.msra.mxu0 %v595
      %877 = vmatprep.subr.mxu0 0.0
      %878 = vmatpush2.msra.mxu0 0.0
      %879 = vmatprep.subr.mxu0 0.0
      %880 = vmatpush2.msra.mxu0 0.0
      %881 = vmatprep.subr.mxu0 0.0
      %882 = vmatpush2.msra.mxu0 0.0
      %883 = vmatprep.subr.mxu0 0.0
      %884 = vmatpush2.msra.mxu0 0.0
      %885 = vmatprep.subr.mxu0 0.0
      %886 = vmatpush2.msra.mxu0 0.0
      %887 = vmatprep.subr.mxu0 0.0
      %888 = vmatpush2.msra.mxu0 0.0
      %889 = vmatprep.subr.mxu0 0.0
      %890 = vmatpush2.msra.mxu0 0.0
      %891 = vmatprep.subr.mxu0 0.0
      %892 = vmatpush2.msra.mxu0 0.0
      %893 = vmatprep.subr.mxu0 0.0
      %894 = vmatpush2.msra.mxu0 0.0
      %895 = vmatprep.subr.mxu0 0.0
      %896 = vmatpush2.msra.mxu0 0.0
      %897 = vmatprep.subr.mxu0 0.0
      %898 = vmatpush2.msra.mxu0 0.0
      %899 = vmatprep.subr.mxu0 0.0
      %900 = vmatpush2.msra.mxu0 0.0
      %901 = vmatprep.subr.mxu0 0.0
      %902 = vmatpush2.msra.mxu0 0.0
      %903 = vmatprep.subr.mxu0 0.0
      %904 = vmatpush2.msra.mxu0 0.0
      %905 = vmatprep.subr.mxu0 0.0
      %906 = vmatpush2.msra.mxu0 0.0
      %907 = vmatprep.subr.mxu0 0.0
      %908 = vmatpush2.msra.mxu0 0.0
      %909 = vmatprep.mubr.f32.mxu0 0.0
      %910 = vmatmul.mubr.f32.gmra.mxu0 %v819
      %v911 = vpop.f32.mrf.mxu0
      %v912 = vadd.f32 0.0, %v911
      %v913 = vpop.f32.mrf.mxu0
      %v914 = vadd.f32 0.0, %v913
      %915 = vmatprep.mubr.f32.mxu0 0.0
      %916 = vmatmul.mubr.f32.gmra.mxu0 %v822
      %v917 = vpop.f32.mrf.mxu0
      %v918 = vadd.f32 0.0, %v917
      %v919 = vpop.f32.mrf.mxu0
      %v920 = vadd.f32 0.0, %v919
      %921 = vmatprep.mubr.f32.mxu0 0.0
      %922 = vmatmul.mubr.f32.gmra.mxu0 %v825
      %v923 = vpop.f32.mrf.mxu0
      %v924 = vadd.f32 0.0, %v923
      %v925 = vpop.f32.mrf.mxu0
      %v926 = vadd.f32 0.0, %v925
      %927 = vmatprep.mubr.f32.mxu0 0.0
      %928 = vmatmul.mubr.f32.gmra.mxu0 %v828
      %v929 = vpop.f32.mrf.mxu0
      %v930 = vadd.f32 0.0, %v929
      %v931 = vpop.f32.mrf.mxu0
      %v932 = vadd.f32 0.0, %v931
      %933 = vmatprep.mubr.f32.mxu0 0.0
      %934 = vmatmul.mubr.f32.gmra.mxu0 %v831
      %v935 = vpop.f32.mrf.mxu0
      %v936 = vadd.f32 0.0, %v935
      %v937 = vpop.f32.mrf.mxu0
      %v938 = vadd.f32 0.0, %v937
      %939 = vmatprep.mubr.f32.mxu0 0.0
      %940 = vmatmul.mubr.f32.gmra.mxu0 %v834
      %v941 = vpop.f32.mrf.mxu0
      %v942 = vadd.f32 0.0, %v941
      %v943 = vpop.f32.mrf.mxu0
      %v944 = vadd.f32 0.0, %v943
      %945 = vmatprep.mubr.f32.mxu0 0.0
      %946 = vmatmul.mubr.f32.gmra.mxu0 %v837
      %v947 = vpop.f32.mrf.mxu0
      %v948 = vadd.f32 0.0, %v947
      %v949 = vpop.f32.mrf.mxu0
      %v950 = vadd.f32 0.0, %v949
      %951 = vmatprep.mubr.f32.mxu0 0.0
      %952 = vmatmul.mubr.f32.gmra.mxu0 %v840
      %v953 = vpop.f32.mrf.mxu0
      %v954 = vadd.f32 0.0, %v953
      %v955 = vpop.f32.mrf.mxu0
      %v956 = vadd.f32 0.0, %v955
      %957 = vmatprep.mubr.f32.mxu0 0.0
      %958 = vmatmul.mubr.f32.gmra.mxu0 %v843
      %v959 = vpop.f32.mrf.mxu0
      %v960 = vadd.f32 0.0, %v959
      %v961 = vpop.f32.mrf.mxu0
      %v962 = vadd.f32 0.0, %v961
      %963 = vdwg.mxu0
      %v964 = vadd.f32 %v588, %v912
      %v965 = vadd.f32 %v589, %v914
      %968 = vrot.lane.b32.xlu0 %v918, 127
      %v969 = vpop.permute.xlu0 %968
      %970 = vrot.lane.b32.xlu0 %v920, 127
      %v971 = vpop.permute.xlu0 %970
      %v972 = vsel %vm500, %v969, %v971
      %v975 = vadd.f32 %v964, %v972
      %v976 = vadd.f32 %v965, %v971
      %979 = vrot.lane.b32.xlu0 %v924, 126
      %v980 = vpop.permute.xlu0 %979
      %981 = vrot.lane.b32.xlu0 %v926, 126
      %v982 = vpop.permute.xlu0 %981
      %v983 = vsel %vm512, %v980, %v982
      %v986 = vadd.f32 %v975, %v983
      %v987 = vadd.f32 %v976, %v982
      %990 = vrot.lane.b32.xlu0 %v930, 118
      %v991 = vpop.permute.xlu0 %990
      %992 = vrot.lane.b32.xlu0 %v932, 118
      %v993 = vpop.permute.xlu0 %992
      %v994 = vsel %vm524, %v991, %v993
      %v997 = vadd.f32 %v986, %v994
      %v998 = vadd.f32 %v987, %v993
      %1001 = vrot.lane.b32.xlu0 %v936, 117
      %v1002 = vpop.permute.xlu0 %1001
      %1003 = vrot.lane.b32.xlu0 %v938, 117
      %v1004 = vpop.permute.xlu0 %1003
      %v1005 = vsel %vm536, %v1002, %v1004
      %v1008 = vadd.f32 %v997, %v1005
      %v1009 = vadd.f32 %v998, %v1004
      %1012 = vrot.lane.b32.xlu0 %v942, 116
      %v1013 = vpop.permute.xlu0 %1012
      %1014 = vrot.lane.b32.xlu0 %v944, 116
      %v1015 = vpop.permute.xlu0 %1014
      %v1016 = vsel %vm548, %v1013, %v1015
      %v1019 = vadd.f32 %v1008, %v1016
      %v1020 = vadd.f32 %v1009, %v1015
      %1023 = vrot.lane.b32.xlu0 %v948, 108
      %v1024 = vpop.permute.xlu0 %1023
      %1025 = vrot.lane.b32.xlu0 %v950, 108
      %v1026 = vpop.permute.xlu0 %1025
      %v1027 = vsel %vm560, %v1024, %v1026
      %v1030 = vadd.f32 %v1019, %v1027
      %v1031 = vadd.f32 %v1020, %v1026
      %1034 = vrot.lane.b32.xlu0 %v954, 107
      %v1035 = vpop.permute.xlu0 %1034
      %1036 = vrot.lane.b32.xlu0 %v956, 107
      %v1037 = vpop.permute.xlu0 %1036
      %v1038 = vsel %vm572, %v1035, %v1037
      %v1041 = vadd.f32 %v1030, %v1038
      %v1042 = vadd.f32 %v1031, %v1037
      %1045 = vrot.lane.b32.xlu0 %v960, 106
      %v1046 = vpop.permute.xlu0 %1045
      %1047 = vrot.lane.b32.xlu0 %v962, 106
      %v1048 = vpop.permute.xlu0 %1047
      %v1049 = vsel %vm584, %v1046, %v1048
      %v1052 = vadd.f32 %v1041, %v1049
      %v1053 = vadd.f32 %v1042, %v1048
      %s1054 = scalar_lea.vmem %s299, 16
      %v1055 = vld [vmem:[%s1054] sm:$0xff]
      %v1056 = vmax.f32 %v1055, 0.0
      %v1058 = vcombine.high %v1056, %v1056
      %v1059 = vsel %vm368, %v1056, 0
      %v1061 = vsel %vm368, %v1058, 0
      %1063 = vmatprep.subr.mxu0 0.0
      %1064 = vmatpush1.msra.mxu0 0.0
      %1065 = vmatprep.subr.mxu0 0.0
      %1066 = vmatpush1.msra.mxu0 0.0
      %1067 = vmatprep.subr.mxu0 0.0
      %1068 = vmatpush1.msra.mxu0 0.0
      %1069 = vmatprep.subr.mxu0 0.0
      %1070 = vmatpush1.msra.mxu0 0.0
      %1071 = vmatprep.subr.mxu0 0.0
      %1072 = vmatpush1.msra.mxu0 0.0
      %1073 = vmatprep.subr.mxu0 0.0
      %1074 = vmatpush1.msra.mxu0 0.0
      %1075 = vmatprep.subr.mxu0 0.0
      %1076 = vmatpush1.msra.mxu0 0.0
      %1077 = vmatprep.subr.mxu0 0.0
      %1078 = vmatpush1.msra.mxu0 0.0
      %1079 = vmatprep.subr.mxu0 0.0
      %1080 = vmatpush1.msra.mxu0 0.0
      %1081 = vmatprep.subr.mxu0 0.0
      %1082 = vmatpush1.msra.mxu0 0.0
      %1083 = vmatprep.subr.mxu0 0.0
      %1084 = vmatpush1.msra.mxu0 0.0
      %1085 = vmatprep.subr.mxu0 0.0
      %1086 = vmatpush1.msra.mxu0 0.0
      %1087 = vmatprep.subr.mxu0 0.0
      %1088 = vmatpush1.msra.mxu0 0.0
      %1089 = vmatprep.subr.mxu0 0.0
      %1090 = vmatpush1.msra.mxu0 0.0
      %1091 = vmatprep.subr.mxu0 0.0
      %1092 = vmatpush1.msra.mxu0 0.0
      %1093 = vmatprep.subr.mxu0 %v1061
      %1094 = vmatpush1.msra.mxu0 %v1059
      %1095 = vmatprep.subr.mxu0 0.0
      %1096 = vmatpush2.msra.mxu0 0.0
      %1097 = vmatprep.subr.mxu0 0.0
      %1098 = vmatpush2.msra.mxu0 0.0
      %1099 = vmatprep.subr.mxu0 0.0
      %1100 = vmatpush2.msra.mxu0 0.0
      %1101 = vmatprep.subr.mxu0 0.0
      %1102 = vmatpush2.msra.mxu0 0.0
      %1103 = vmatprep.subr.mxu0 0.0
      %1104 = vmatpush2.msra.mxu0 0.0
      %1105 = vmatprep.subr.mxu0 0.0
      %1106 = vmatpush2.msra.mxu0 0.0
      %1107 = vmatprep.subr.mxu0 0.0
      %1108 = vmatpush2.msra.mxu0 0.0
      %1109 = vmatprep.subr.mxu0 0.0
      %1110 = vmatpush2.msra.mxu0 0.0
      %1111 = vmatprep.subr.mxu0 0.0
      %1112 = vmatpush2.msra.mxu0 0.0
      %1113 = vmatprep.subr.mxu0 0.0
      %1114 = vmatpush2.msra.mxu0 0.0
      %1115 = vmatprep.subr.mxu0 0.0
      %1116 = vmatpush2.msra.mxu0 0.0
      %1117 = vmatprep.subr.mxu0 0.0
      %1118 = vmatpush2.msra.mxu0 0.0
      %1119 = vmatprep.subr.mxu0 0.0
      %1120 = vmatpush2.msra.mxu0 0.0
      %1121 = vmatprep.subr.mxu0 0.0
      %1122 = vmatpush2.msra.mxu0 0.0
      %1123 = vmatprep.subr.mxu0 0.0
      %1124 = vmatpush2.msra.mxu0 0.0
      %1125 = vmatprep.subr.mxu0 0.0
      %1126 = vmatpush2.msra.mxu0 0.0
      %1127 = vmatprep.mubr.f32.mxu0 0.0
      %1128 = vmatmul.mubr.f32.gmra.mxu0 %v342
      %v1129 = vpop.f32.mrf.mxu0
      %v1130 = vadd.f32 0.0, %v1129
      %v1131 = vpop.f32.mrf.mxu0
      %v1132 = vadd.f32 0.0, %v1131
      %1133 = vmatprep.mubr.f32.mxu0 0.0
      %1134 = vmatmul.mubr.f32.gmra.mxu0 %v345
      %v1135 = vpop.f32.mrf.mxu0
      %v1136 = vadd.f32 0.0, %v1135
      %v1137 = vpop.f32.mrf.mxu0
      %v1138 = vadd.f32 0.0, %v1137
      %1139 = vmatprep.mubr.f32.mxu0 0.0
      %1140 = vmatmul.mubr.f32.gmra.mxu0 %v348
      %v1141 = vpop.f32.mrf.mxu0
      %v1142 = vadd.f32 0.0, %v1141
      %v1143 = vpop.f32.mrf.mxu0
      %v1144 = vadd.f32 0.0, %v1143
      %1145 = vmatprep.mubr.f32.mxu0 0.0
      %1146 = vmatmul.mubr.f32.gmra.mxu0 %v351
      %v1147 = vpop.f32.mrf.mxu0
      %v1148 = vadd.f32 0.0, %v1147
      %v1149 = vpop.f32.mrf.mxu0
      %v1150 = vadd.f32 0.0, %v1149
      %1151 = vmatprep.mubr.f32.mxu0 0.0
      %1152 = vmatmul.mubr.f32.gmra.mxu0 %v354
      %v1153 = vpop.f32.mrf.mxu0
      %v1154 = vadd.f32 0.0, %v1153
      %v1155 = vpop.f32.mrf.mxu0
      %v1156 = vadd.f32 0.0, %v1155
      %1157 = vmatprep.mubr.f32.mxu0 0.0
      %1158 = vmatmul.mubr.f32.gmra.mxu0 %v357
      %v1159 = vpop.f32.mrf.mxu0
      %v1160 = vadd.f32 0.0, %v1159
      %v1161 = vpop.f32.mrf.mxu0
      %v1162 = vadd.f32 0.0, %v1161
      %1163 = vmatprep.mubr.f32.mxu0 0.0
      %1164 = vmatmul.mubr.f32.gmra.mxu0 %v360
      %v1165 = vpop.f32.mrf.mxu0
      %v1166 = vadd.f32 0.0, %v1165
      %v1167 = vpop.f32.mrf.mxu0
      %v1168 = vadd.f32 0.0, %v1167
      %1169 = vmatprep.mubr.f32.mxu0 0.0
      %1170 = vmatmul.mubr.f32.gmra.mxu0 %v363
      %v1171 = vpop.f32.mrf.mxu0
      %v1172 = vadd.f32 0.0, %v1171
      %v1173 = vpop.f32.mrf.mxu0
      %v1174 = vadd.f32 0.0, %v1173
      %1175 = vmatprep.mubr.f32.mxu0 0.0
      %1176 = vmatmul.mubr.f32.gmra.mxu0 %v366
      %v1177 = vpop.f32.mrf.mxu0
      %v1178 = vadd.f32 0.0, %v1177
      %v1179 = vpop.f32.mrf.mxu0
      %v1180 = vadd.f32 0.0, %v1179
      %1181 = vdwg.mxu0
      %v1182 = vadd.f32 %v1130, 0.0
      %v1183 = vadd.f32 %v1132, 0.0
      %1186 = vrot.lane.b32.xlu0 %v1136, 127
      %v1187 = vpop.permute.xlu0 %1186
      %1188 = vrot.lane.b32.xlu0 %v1138, 127
      %v1189 = vpop.permute.xlu0 %1188
      %v1190 = vsel %vm500, %v1187, %v1189
      %v1193 = vadd.f32 %v1182, %v1190
      %v1194 = vadd.f32 %v1183, %v1189
      %1197 = vrot.lane.b32.xlu0 %v1142, 126
      %v1198 = vpop.permute.xlu0 %1197
      %1199 = vrot.lane.b32.xlu0 %v1144, 126
      %v1200 = vpop.permute.xlu0 %1199
      %v1201 = vsel %vm512, %v1198, %v1200
      %v1204 = vadd.f32 %v1193, %v1201
      %v1205 = vadd.f32 %v1194, %v1200
      %1208 = vrot.lane.b32.xlu0 %v1148, 118
      %v1209 = vpop.permute.xlu0 %1208
      %1210 = vrot.lane.b32.xlu0 %v1150, 118
      %v1211 = vpop.permute.xlu0 %1210
      %v1212 = vsel %vm524, %v1209, %v1211
      %v1215 = vadd.f32 %v1204, %v1212
      %v1216 = vadd.f32 %v1205, %v1211
      %1219 = vrot.lane.b32.xlu0 %v1154, 117
      %v1220 = vpop.permute.xlu0 %1219
      %1221 = vrot.lane.b32.xlu0 %v1156, 117
      %v1222 = vpop.permute.xlu0 %1221
      %v1223 = vsel %vm536, %v1220, %v1222
      %v1226 = vadd.f32 %v1215, %v1223
      %v1227 = vadd.f32 %v1216, %v1222
      %1230 = vrot.lane.b32.xlu0 %v1160, 116
      %v1231 = vpop.permute.xlu0 %1230
      %1232 = vrot.lane.b32.xlu0 %v1162, 116
      %v1233 = vpop.permute.xlu0 %1232
      %v1234 = vsel %vm548, %v1231, %v1233
      %v1237 = vadd.f32 %v1226, %v1234
      %v1238 = vadd.f32 %v1227, %v1233
      %1241 = vrot.lane.b32.xlu0 %v1166, 108
      %v1242 = vpop.permute.xlu0 %1241
      %1243 = vrot.lane.b32.xlu0 %v1168, 108
      %v1244 = vpop.permute.xlu0 %1243
      %v1245 = vsel %vm560, %v1242, %v1244
      %v1248 = vadd.f32 %v1237, %v1245
      %v1249 = vadd.f32 %v1238, %v1244
      %1252 = vrot.lane.b32.xlu0 %v1172, 107
      %v1253 = vpop.permute.xlu0 %1252
      %1254 = vrot.lane.b32.xlu0 %v1174, 107
      %v1255 = vpop.permute.xlu0 %1254
      %v1256 = vsel %vm572, %v1253, %v1255
      %v1259 = vadd.f32 %v1248, %v1256
      %v1260 = vadd.f32 %v1249, %v1255
      %1263 = vrot.lane.b32.xlu0 %v1178, 106
      %v1264 = vpop.permute.xlu0 %1263
      %1265 = vrot.lane.b32.xlu0 %v1180, 106
      %v1266 = vpop.permute.xlu0 %1265
      %v1267 = vsel %vm584, %v1264, %v1266
      %v1270 = vadd.f32 %v1259, %v1267
      %v1271 = vadd.f32 %v1260, %v1266
      %1272 = vmatprep.subr.mxu0 0.0
      %1273 = vmatpush1.msra.mxu0 0.0
      %1274 = vmatprep.subr.mxu0 0.0
      %1275 = vmatpush1.msra.mxu0 0.0
      %1276 = vmatprep.subr.mxu0 0.0
      %1277 = vmatpush1.msra.mxu0 0.0
      %1278 = vmatprep.subr.mxu0 0.0
      %1279 = vmatpush1.msra.mxu0 0.0
      %1280 = vmatprep.subr.mxu0 0.0
      %1281 = vmatpush1.msra.mxu0 0.0
      %1282 = vmatprep.subr.mxu0 0.0
      %1283 = vmatpush1.msra.mxu0 0.0
      %1284 = vmatprep.subr.mxu0 0.0
      %1285 = vmatpush1.msra.mxu0 0.0
      %1286 = vmatprep.subr.mxu0 0.0
      %1287 = vmatpush1.msra.mxu0 0.0
      %1288 = vmatprep.subr.mxu0 0.0
      %1289 = vmatpush1.msra.mxu0 0.0
      %1290 = vmatprep.subr.mxu0 0.0
      %1291 = vmatpush1.msra.mxu0 0.0
      %1292 = vmatprep.subr.mxu0 0.0
      %1293 = vmatpush1.msra.mxu0 0.0
      %1294 = vmatprep.subr.mxu0 0.0
      %1295 = vmatpush1.msra.mxu0 0.0
      %1296 = vmatprep.subr.mxu0 0.0
      %1297 = vmatpush1.msra.mxu0 0.0
      %1298 = vmatprep.subr.mxu0 0.0
      %1299 = vmatpush1.msra.mxu0 0.0
      %1300 = vmatprep.subr.mxu0 0.0
      %1301 = vmatpush1.msra.mxu0 0.0
      %1302 = vmatprep.subr.mxu0 %v1061
      %1303 = vmatpush1.msra.mxu0 %v1059
      %1304 = vmatprep.subr.mxu0 0.0
      %1305 = vmatpush2.msra.mxu0 0.0
      %1306 = vmatprep.subr.mxu0 0.0
      %1307 = vmatpush2.msra.mxu0 0.0
      %1308 = vmatprep.subr.mxu0 0.0
      %1309 = vmatpush2.msra.mxu0 0.0
      %1310 = vmatprep.subr.mxu0 0.0
      %1311 = vmatpush2.msra.mxu0 0.0
      %1312 = vmatprep.subr.mxu0 0.0
      %1313 = vmatpush2.msra.mxu0 0.0
      %1314 = vmatprep.subr.mxu0 0.0
      %1315 = vmatpush2.msra.mxu0 0.0
      %1316 = vmatprep.subr.mxu0 0.0
      %1317 = vmatpush2.msra.mxu0 0.0
      %1318 = vmatprep.subr.mxu0 0.0
      %1319 = vmatpush2.msra.mxu0 0.0
      %1320 = vmatprep.subr.mxu0 0.0
      %1321 = vmatpush2.msra.mxu0 0.0
      %1322 = vmatprep.subr.mxu0 0.0
      %1323 = vmatpush2.msra.mxu0 0.0
      %1324 = vmatprep.subr.mxu0 0.0
      %1325 = vmatpush2.msra.mxu0 0.0
      %1326 = vmatprep.subr.mxu0 0.0
      %1327 = vmatpush2.msra.mxu0 0.0
      %1328 = vmatprep.subr.mxu0 0.0
      %1329 = vmatpush2.msra.mxu0 0.0
      %1330 = vmatprep.subr.mxu0 0.0
      %1331 = vmatpush2.msra.mxu0 0.0
      %1332 = vmatprep.subr.mxu0 0.0
      %1333 = vmatpush2.msra.mxu0 0.0
      %1334 = vmatprep.subr.mxu0 0.0
      %1335 = vmatpush2.msra.mxu0 0.0
      %1336 = vmatprep.mubr.f32.mxu0 0.0
      %1337 = vmatmul.mubr.f32.gmra.mxu0 %v819
      %v1338 = vpop.f32.mrf.mxu0
      %v1339 = vadd.f32 0.0, %v1338
      %v1340 = vpop.f32.mrf.mxu0
      %v1341 = vadd.f32 0.0, %v1340
      %1342 = vmatprep.mubr.f32.mxu0 0.0
      %1343 = vmatmul.mubr.f32.gmra.mxu0 %v822
      %v1344 = vpop.f32.mrf.mxu0
      %v1345 = vadd.f32 0.0, %v1344
      %v1346 = vpop.f32.mrf.mxu0
      %v1347 = vadd.f32 0.0, %v1346
      %1348 = vmatprep.mubr.f32.mxu0 0.0
      %1349 = vmatmul.mubr.f32.gmra.mxu0 %v825
      %v1350 = vpop.f32.mrf.mxu0
      %v1351 = vadd.f32 0.0, %v1350
      %v1352 = vpop.f32.mrf.mxu0
      %v1353 = vadd.f32 0.0, %v1352
      %1354 = vmatprep.mubr.f32.mxu0 0.0
      %1355 = vmatmul.mubr.f32.gmra.mxu0 %v828
      %v1356 = vpop.f32.mrf.mxu0
      %v1357 = vadd.f32 0.0, %v1356
      %v1358 = vpop.f32.mrf.mxu0
      %v1359 = vadd.f32 0.0, %v1358
      %1360 = vmatprep.mubr.f32.mxu0 0.0
      %1361 = vmatmul.mubr.f32.gmra.mxu0 %v831
      %v1362 = vpop.f32.mrf.mxu0
      %v1363 = vadd.f32 0.0, %v1362
      %v1364 = vpop.f32.mrf.mxu0
      %v1365 = vadd.f32 0.0, %v1364
      %1366 = vmatprep.mubr.f32.mxu0 0.0
      %1367 = vmatmul.mubr.f32.gmra.mxu0 %v834
      %v1368 = vpop.f32.mrf.mxu0
      %v1369 = vadd.f32 0.0, %v1368
      %v1370 = vpop.f32.mrf.mxu0
      %v1371 = vadd.f32 0.0, %v1370
      %1372 = vmatprep.mubr.f32.mxu0 0.0
      %1373 = vmatmul.mubr.f32.gmra.mxu0 %v837
      %v1374 = vpop.f32.mrf.mxu0
      %v1375 = vadd.f32 0.0, %v1374
      %v1376 = vpop.f32.mrf.mxu0
      %v1377 = vadd.f32 0.0, %v1376
      %1378 = vmatprep.mubr.f32.mxu0 0.0
      %1379 = vmatmul.mubr.f32.gmra.mxu0 %v840
      %v1380 = vpop.f32.mrf.mxu0
      %v1381 = vadd.f32 0.0, %v1380
      %v1382 = vpop.f32.mrf.mxu0
      %v1383 = vadd.f32 0.0, %v1382
      %1384 = vmatprep.mubr.f32.mxu0 0.0
      %1385 = vmatmul.mubr.f32.gmra.mxu0 %v843
      %v1386 = vpop.f32.mrf.mxu0
      %v1387 = vadd.f32 0.0, %v1386
      %v1388 = vpop.f32.mrf.mxu0
      %v1389 = vadd.f32 0.0, %v1388
      %1390 = vdwg.mxu0
      %v1391 = vadd.f32 %v806, %v1339
      %v1392 = vadd.f32 %v807, %v1341
      %1395 = vrot.lane.b32.xlu0 %v1345, 127
      %v1396 = vpop.permute.xlu0 %1395
      %1397 = vrot.lane.b32.xlu0 %v1347, 127
      %v1398 = vpop.permute.xlu0 %1397
      %v1399 = vsel %vm500, %v1396, %v1398
      %v1402 = vadd.f32 %v1391, %v1399
      %v1403 = vadd.f32 %v1392, %v1398
      %1406 = vrot.lane.b32.xlu0 %v1351, 126
      %v1407 = vpop.permute.xlu0 %1406
      %1408 = vrot.lane.b32.xlu0 %v1353, 126
      %v1409 = vpop.permute.xlu0 %1408
      %v1410 = vsel %vm512, %v1407, %v1409
      %v1413 = vadd.f32 %v1402, %v1410
      %v1414 = vadd.f32 %v1403, %v1409
      %1417 = vrot.lane.b32.xlu0 %v1357, 118
      %v1418 = vpop.permute.xlu0 %1417
      %1419 = vrot.lane.b32.xlu0 %v1359, 118
      %v1420 = vpop.permute.xlu0 %1419
      %v1421 = vsel %vm524, %v1418, %v1420
      %v1424 = vadd.f32 %v1413, %v1421
      %v1425 = vadd.f32 %v1414, %v1420
      %1428 = vrot.lane.b32.xlu0 %v1363, 117
      %v1429 = vpop.permute.xlu0 %1428
      %1430 = vrot.lane.b32.xlu0 %v1365, 117
      %v1431 = vpop.permute.xlu0 %1430
      %v1432 = vsel %vm536, %v1429, %v1431
      %v1435 = vadd.f32 %v1424, %v1432
      %v1436 = vadd.f32 %v1425, %v1431
      %1439 = vrot.lane.b32.xlu0 %v1369, 116
      %v1440 = vpop.permute.xlu0 %1439
      %1441 = vrot.lane.b32.xlu0 %v1371, 116
      %v1442 = vpop.permute.xlu0 %1441
      %v1443 = vsel %vm548, %v1440, %v1442
      %v1446 = vadd.f32 %v1435, %v1443
      %v1447 = vadd.f32 %v1436, %v1442
      %1450 = vrot.lane.b32.xlu0 %v1375, 108
      %v1451 = vpop.permute.xlu0 %1450
      %1452 = vrot.lane.b32.xlu0 %v1377, 108
      %v1453 = vpop.permute.xlu0 %1452
      %v1454 = vsel %vm560, %v1451, %v1453
      %v1457 = vadd.f32 %v1446, %v1454
      %v1458 = vadd.f32 %v1447, %v1453
      %1461 = vrot.lane.b32.xlu0 %v1381, 107
      %v1462 = vpop.permute.xlu0 %1461
      %1463 = vrot.lane.b32.xlu0 %v1383, 107
      %v1464 = vpop.permute.xlu0 %1463
      %v1465 = vsel %vm572, %v1462, %v1464
      %v1468 = vadd.f32 %v1457, %v1465
      %v1469 = vadd.f32 %v1458, %v1464
      %1472 = vrot.lane.b32.xlu0 %v1387, 106
      %v1473 = vpop.permute.xlu0 %1472
      %1474 = vrot.lane.b32.xlu0 %v1389, 106
      %v1475 = vpop.permute.xlu0 %1474
      %v1476 = vsel %vm584, %v1473, %v1475
      %v1479 = vadd.f32 %v1468, %v1476
      %v1480 = vadd.f32 %v1469, %v1475
      %s1481 = scalar_lea.vmem %s2, 144
      %v1482 = vld [vmem:[%s1481] sm:$0xff]
      %v1483 = vld [vmem:[%s1481 + $0x8] sm:$0xff]
      %v1484 = vld [vmem:[%s1481 + $0x10] sm:$0xff]
      %v1485 = vld [vmem:[%s1481 + $0x18] sm:$0xff]
      %v1486 = vld [vmem:[%s1481 + $0x20] sm:$0xff]
      %v1487 = vld [vmem:[%s1481 + $0x28] sm:$0xff]
      %v1488 = vld [vmem:[%s1481 + $0x30] sm:$0xff]
      %v1489 = vld [vmem:[%s1481 + $0x38] sm:$0xff]
      %v1490 = vld [vmem:[%s1481 + $0x40] sm:$0xff]
      %v1492 = vsel %vm340, %v1482, 0
      %v1495 = vsel %vm340, %v1483, 0
      %v1498 = vsel %vm340, %v1484, 0
      %v1501 = vsel %vm340, %v1485, 0
      %v1504 = vsel %vm340, %v1486, 0
      %v1507 = vsel %vm340, %v1487, 0
      %v1510 = vsel %vm340, %v1488, 0
      %v1513 = vsel %vm340, %v1489, 0
      %v1516 = vsel %vm340, %v1490, 0
      %1518 = vmatprep.subr.mxu0 0.0
      %1519 = vmatpush1.msra.mxu0 0.0
      %1520 = vmatprep.subr.mxu0 0.0
      %1521 = vmatpush1.msra.mxu0 0.0
      %1522 = vmatprep.subr.mxu0 0.0
      %1523 = vmatpush1.msra.mxu0 0.0
      %1524 = vmatprep.subr.mxu0 0.0
      %1525 = vmatpush1.msra.mxu0 0.0
      %1526 = vmatprep.subr.mxu0 0.0
      %1527 = vmatpush1.msra.mxu0 0.0
      %1528 = vmatprep.subr.mxu0 0.0
      %1529 = vmatpush1.msra.mxu0 0.0
      %1530 = vmatprep.subr.mxu0 0.0
      %1531 = vmatpush1.msra.mxu0 0.0
      %1532 = vmatprep.subr.mxu0 0.0
      %1533 = vmatpush1.msra.mxu0 0.0
      %1534 = vmatprep.subr.mxu0 0.0
      %1535 = vmatpush1.msra.mxu0 0.0
      %1536 = vmatprep.subr.mxu0 0.0
      %1537 = vmatpush1.msra.mxu0 0.0
      %1538 = vmatprep.subr.mxu0 0.0
      %1539 = vmatpush1.msra.mxu0 0.0
      %1540 = vmatprep.subr.mxu0 0.0
      %1541 = vmatpush1.msra.mxu0 0.0
      %1542 = vmatprep.subr.mxu0 0.0
      %1543 = vmatpush1.msra.mxu0 0.0
      %1544 = vmatprep.subr.mxu0 0.0
      %1545 = vmatpush1.msra.mxu0 0.0
      %1546 = vmatprep.subr.mxu0 0.0
      %1547 = vmatpush1.msra.mxu0 0.0
      %1548 = vmatprep.subr.mxu0 %v1061
      %1549 = vmatpush1.msra.mxu0 %v1059
      %1550 = vmatprep.subr.mxu0 0.0
      %1551 = vmatpush2.msra.mxu0 0.0
      %1552 = vmatprep.subr.mxu0 0.0
      %1553 = vmatpush2.msra.mxu0 0.0
      %1554 = vmatprep.subr.mxu0 0.0
      %1555 = vmatpush2.msra.mxu0 0.0
      %1556 = vmatprep.subr.mxu0 0.0
      %1557 = vmatpush2.msra.mxu0 0.0
      %1558 = vmatprep.subr.mxu0 0.0
      %1559 = vmatpush2.msra.mxu0 0.0
      %1560 = vmatprep.subr.mxu0 0.0
      %1561 = vmatpush2.msra.mxu0 0.0
      %1562 = vmatprep.subr.mxu0 0.0
      %1563 = vmatpush2.msra.mxu0 0.0
      %1564 = vmatprep.subr.mxu0 0.0
      %1565 = vmatpush2.msra.mxu0 0.0
      %1566 = vmatprep.subr.mxu0 0.0
      %1567 = vmatpush2.msra.mxu0 0.0
      %1568 = vmatprep.subr.mxu0 0.0
      %1569 = vmatpush2.msra.mxu0 0.0
      %1570 = vmatprep.subr.mxu0 0.0
      %1571 = vmatpush2.msra.mxu0 0.0
      %1572 = vmatprep.subr.mxu0 0.0
      %1573 = vmatpush2.msra.mxu0 0.0
      %1574 = vmatprep.subr.mxu0 0.0
      %1575 = vmatpush2.msra.mxu0 0.0
      %1576 = vmatprep.subr.mxu0 0.0
      %1577 = vmatpush2.msra.mxu0 0.0
      %1578 = vmatprep.subr.mxu0 0.0
      %1579 = vmatpush2.msra.mxu0 0.0
      %1580 = vmatprep.subr.mxu0 0.0
      %1581 = vmatpush2.msra.mxu0 0.0
      %1582 = vmatprep.mubr.f32.mxu0 0.0
      %1583 = vmatmul.mubr.f32.gmra.mxu0 %v1492
      %v1584 = vpop.f32.mrf.mxu0
      %v1585 = vadd.f32 0.0, %v1584
      %v1586 = vpop.f32.mrf.mxu0
      %v1587 = vadd.f32 0.0, %v1586
      %1588 = vmatprep.mubr.f32.mxu0 0.0
      %1589 = vmatmul.mubr.f32.gmra.mxu0 %v1495
      %v1590 = vpop.f32.mrf.mxu0
      %v1591 = vadd.f32 0.0, %v1590
      %v1592 = vpop.f32.mrf.mxu0
      %v1593 = vadd.f32 0.0, %v1592
      %1594 = vmatprep.mubr.f32.mxu0 0.0
      %1595 = vmatmul.mubr.f32.gmra.mxu0 %v1498
      %v1596 = vpop.f32.mrf.mxu0
      %v1597 = vadd.f32 0.0, %v1596
      %v1598 = vpop.f32.mrf.mxu0
      %v1599 = vadd.f32 0.0, %v1598
      %1600 = vmatprep.mubr.f32.mxu0 0.0
      %1601 = vmatmul.mubr.f32.gmra.mxu0 %v1501
      %v1602 = vpop.f32.mrf.mxu0
      %v1603 = vadd.f32 0.0, %v1602
      %v1604 = vpop.f32.mrf.mxu0
      %v1605 = vadd.f32 0.0, %v1604
      %1606 = vmatprep.mubr.f32.mxu0 0.0
      %1607 = vmatmul.mubr.f32.gmra.mxu0 %v1504
      %v1608 = vpop.f32.mrf.mxu0
      %v1609 = vadd.f32 0.0, %v1608
      %v1610 = vpop.f32.mrf.mxu0
      %v1611 = vadd.f32 0.0, %v1610
      %1612 = vmatprep.mubr.f32.mxu0 0.0
      %1613 = vmatmul.mubr.f32.gmra.mxu0 %v1507
      %v1614 = vpop.f32.mrf.mxu0
      %v1615 = vadd.f32 0.0, %v1614
      %v1616 = vpop.f32.mrf.mxu0
      %v1617 = vadd.f32 0.0, %v1616
      %1618 = vmatprep.mubr.f32.mxu0 0.0
      %1619 = vmatmul.mubr.f32.gmra.mxu0 %v1510
      %v1620 = vpop.f32.mrf.mxu0
      %v1621 = vadd.f32 0.0, %v1620
      %v1622 = vpop.f32.mrf.mxu0
      %v1623 = vadd.f32 0.0, %v1622
      %1624 = vmatprep.mubr.f32.mxu0 0.0
      %1625 = vmatmul.mubr.f32.gmra.mxu0 %v1513
      %v1626 = vpop.f32.mrf.mxu0
      %v1627 = vadd.f32 0.0, %v1626
      %v1628 = vpop.f32.mrf.mxu0
      %v1629 = vadd.f32 0.0, %v1628
      %1630 = vmatprep.mubr.f32.mxu0 0.0
      %1631 = vmatmul.mubr.f32.gmra.mxu0 %v1516
      %v1632 = vpop.f32.mrf.mxu0
      %v1633 = vadd.f32 0.0, %v1632
      %v1634 = vpop.f32.mrf.mxu0
      %v1635 = vadd.f32 0.0, %v1634
      %1636 = vdwg.mxu0
      %v1637 = vadd.f32 %v1052, %v1585
      %v1638 = vadd.f32 %v1053, %v1587
      %1641 = vrot.lane.b32.xlu0 %v1591, 127
      %v1642 = vpop.permute.xlu0 %1641
      %1643 = vrot.lane.b32.xlu0 %v1593, 127
      %v1644 = vpop.permute.xlu0 %1643
      %v1645 = vsel %vm500, %v1642, %v1644
      %v1648 = vadd.f32 %v1637, %v1645
      %v1649 = vadd.f32 %v1638, %v1644
      %1652 = vrot.lane.b32.xlu0 %v1597, 126
      %v1653 = vpop.permute.xlu0 %1652
      %1654 = vrot.lane.b32.xlu0 %v1599, 126
      %v1655 = vpop.permute.xlu0 %1654
      %v1656 = vsel %vm512, %v1653, %v1655
      %v1659 = vadd.f32 %v1648, %v1656
      %v1660 = vadd.f32 %v1649, %v1655
      %1663 = vrot.lane.b32.xlu0 %v1603, 118
      %v1664 = vpop.permute.xlu0 %1663
      %1665 = vrot.lane.b32.xlu0 %v1605, 118
      %v1666 = vpop.permute.xlu0 %1665
      %v1667 = vsel %vm524, %v1664, %v1666
      %v1670 = vadd.f32 %v1659, %v1667
      %v1671 = vadd.f32 %v1660, %v1666
      %1674 = vrot.lane.b32.xlu0 %v1609, 117
      %v1675 = vpop.permute.xlu0 %1674
      %1676 = vrot.lane.b32.xlu0 %v1611, 117
      %v1677 = vpop.permute.xlu0 %1676
      %v1678 = vsel %vm536, %v1675, %v1677
      %v1681 = vadd.f32 %v1670, %v1678
      %v1682 = vadd.f32 %v1671, %v1677
      %1685 = vrot.lane.b32.xlu0 %v1615, 116
      %v1686 = vpop.permute.xlu0 %1685
      %1687 = vrot.lane.b32.xlu0 %v1617, 116
      %v1688 = vpop.permute.xlu0 %1687
      %v1689 = vsel %vm548, %v1686, %v1688
      %v1692 = vadd.f32 %v1681, %v1689
      %v1693 = vadd.f32 %v1682, %v1688
      %1696 = vrot.lane.b32.xlu0 %v1621, 108
      %v1697 = vpop.permute.xlu0 %1696
      %1698 = vrot.lane.b32.xlu0 %v1623, 108
      %v1699 = vpop.permute.xlu0 %1698
      %v1700 = vsel %vm560, %v1697, %v1699
      %v1703 = vadd.f32 %v1692, %v1700
      %v1704 = vadd.f32 %v1693, %v1699
      %1707 = vrot.lane.b32.xlu0 %v1627, 107
      %v1708 = vpop.permute.xlu0 %1707
      %1709 = vrot.lane.b32.xlu0 %v1629, 107
      %v1710 = vpop.permute.xlu0 %1709
      %v1711 = vsel %vm572, %v1708, %v1710
      %v1714 = vadd.f32 %v1703, %v1711
      %v1715 = vadd.f32 %v1704, %v1710
      %1718 = vrot.lane.b32.xlu0 %v1633, 106
      %v1719 = vpop.permute.xlu0 %1718
      %1720 = vrot.lane.b32.xlu0 %v1635, 106
      %v1721 = vpop.permute.xlu0 %1720
      %v1722 = vsel %vm584, %v1719, %v1721
      %v1725 = vadd.f32 %v1714, %v1722
      %v1726 = vadd.f32 %v1715, %v1721
      %s1727 = scalar_lea.vmem %s299, 24
      %v1728 = vld [vmem:[%s1727] sm:$0xff]
      %v1729 = vmax.f32 %v1728, 0.0
      %v1731 = vcombine.high %v1729, %v1729
      %v1732 = vsel %vm368, %v1729, 0
      %v1734 = vsel %vm368, %v1731, 0
      %1736 = vmatprep.subr.mxu0 0.0
      %1737 = vmatpush1.msra.mxu0 0.0
      %1738 = vmatprep.subr.mxu0 0.0
      %1739 = vmatpush1.msra.mxu0 0.0
      %1740 = vmatprep.subr.mxu0 0.0
      %1741 = vmatpush1.msra.mxu0 0.0
      %1742 = vmatprep.subr.mxu0 0.0
      %1743 = vmatpush1.msra.mxu0 0.0
      %1744 = vmatprep.subr.mxu0 0.0
      %1745 = vmatpush1.msra.mxu0 0.0
      %1746 = vmatprep.subr.mxu0 0.0
      %1747 = vmatpush1.msra.mxu0 0.0
      %1748 = vmatprep.subr.mxu0 0.0
      %1749 = vmatpush1.msra.mxu0 0.0
      %1750 = vmatprep.subr.mxu0 0.0
      %1751 = vmatpush1.msra.mxu0 0.0
      %1752 = vmatprep.subr.mxu0 0.0
      %1753 = vmatpush1.msra.mxu0 0.0
      %1754 = vmatprep.subr.mxu0 0.0
      %1755 = vmatpush1.msra.mxu0 0.0
      %1756 = vmatprep.subr.mxu0 0.0
      %1757 = vmatpush1.msra.mxu0 0.0
      %1758 = vmatprep.subr.mxu0 0.0
      %1759 = vmatpush1.msra.mxu0 0.0
      %1760 = vmatprep.subr.mxu0 0.0
      %1761 = vmatpush1.msra.mxu0 0.0
      %1762 = vmatprep.subr.mxu0 0.0
      %1763 = vmatpush1.msra.mxu0 0.0
      %1764 = vmatprep.subr.mxu0 0.0
      %1765 = vmatpush1.msra.mxu0 0.0
      %1766 = vmatprep.subr.mxu0 %v1734
      %1767 = vmatpush1.msra.mxu0 %v1732
      %1768 = vmatprep.subr.mxu0 0.0
      %1769 = vmatpush2.msra.mxu0 0.0
      %1770 = vmatprep.subr.mxu0 0.0
      %1771 = vmatpush2.msra.mxu0 0.0
      %1772 = vmatprep.subr.mxu0 0.0
      %1773 = vmatpush2.msra.mxu0 0.0
      %1774 = vmatprep.subr.mxu0 0.0
      %1775 = vmatpush2.msra.mxu0 0.0
      %1776 = vmatprep.subr.mxu0 0.0
      %1777 = vmatpush2.msra.mxu0 0.0
      %1778 = vmatprep.subr.mxu0 0.0
      %1779 = vmatpush2.msra.mxu0 0.0
      %1780 = vmatprep.subr.mxu0 0.0
      %1781 = vmatpush2.msra.mxu0 0.0
      %1782 = vmatprep.subr.mxu0 0.0
      %1783 = vmatpush2.msra.mxu0 0.0
      %1784 = vmatprep.subr.mxu0 0.0
      %1785 = vmatpush2.msra.mxu0 0.0
      %1786 = vmatprep.subr.mxu0 0.0
      %1787 = vmatpush2.msra.mxu0 0.0
      %1788 = vmatprep.subr.mxu0 0.0
      %1789 = vmatpush2.msra.mxu0 0.0
      %1790 = vmatprep.subr.mxu0 0.0
      %1791 = vmatpush2.msra.mxu0 0.0
      %1792 = vmatprep.subr.mxu0 0.0
      %1793 = vmatpush2.msra.mxu0 0.0
      %1794 = vmatprep.subr.mxu0 0.0
      %1795 = vmatpush2.msra.mxu0 0.0
      %1796 = vmatprep.subr.mxu0 0.0
      %1797 = vmatpush2.msra.mxu0 0.0
      %1798 = vmatprep.subr.mxu0 0.0
      %1799 = vmatpush2.msra.mxu0 0.0
      %1800 = vmatprep.mubr.f32.mxu0 0.0
      %1801 = vmatmul.mubr.f32.gmra.mxu0 %v342
      %v1802 = vpop.f32.mrf.mxu0
      %v1803 = vadd.f32 0.0, %v1802
      %v1804 = vpop.f32.mrf.mxu0
      %v1805 = vadd.f32 0.0, %v1804
      %1806 = vmatprep.mubr.f32.mxu0 0.0
      %1807 = vmatmul.mubr.f32.gmra.mxu0 %v345
      %v1808 = vpop.f32.mrf.mxu0
      %v1809 = vadd.f32 0.0, %v1808
      %v1810 = vpop.f32.mrf.mxu0
      %v1811 = vadd.f32 0.0, %v1810
      %1812 = vmatprep.mubr.f32.mxu0 0.0
      %1813 = vmatmul.mubr.f32.gmra.mxu0 %v348
      %v1814 = vpop.f32.mrf.mxu0
      %v1815 = vadd.f32 0.0, %v1814
      %v1816 = vpop.f32.mrf.mxu0
      %v1817 = vadd.f32 0.0, %v1816
      %1818 = vmatprep.mubr.f32.mxu0 0.0
      %1819 = vmatmul.mubr.f32.gmra.mxu0 %v351
      %v1820 = vpop.f32.mrf.mxu0
      %v1821 = vadd.f32 0.0, %v1820
      %v1822 = vpop.f32.mrf.mxu0
      %v1823 = vadd.f32 0.0, %v1822
      %1824 = vmatprep.mubr.f32.mxu0 0.0
      %1825 = vmatmul.mubr.f32.gmra.mxu0 %v354
      %v1826 = vpop.f32.mrf.mxu0
      %v1827 = vadd.f32 0.0, %v1826
      %v1828 = vpop.f32.mrf.mxu0
      %v1829 = vadd.f32 0.0, %v1828
      %1830 = vmatprep.mubr.f32.mxu0 0.0
      %1831 = vmatmul.mubr.f32.gmra.mxu0 %v357
      %v1832 = vpop.f32.mrf.mxu0
      %v1833 = vadd.f32 0.0, %v1832
      %v1834 = vpop.f32.mrf.mxu0
      %v1835 = vadd.f32 0.0, %v1834
      %1836 = vmatprep.mubr.f32.mxu0 0.0
      %1837 = vmatmul.mubr.f32.gmra.mxu0 %v360
      %v1838 = vpop.f32.mrf.mxu0
      %v1839 = vadd.f32 0.0, %v1838
      %v1840 = vpop.f32.mrf.mxu0
      %v1841 = vadd.f32 0.0, %v1840
      %1842 = vmatprep.mubr.f32.mxu0 0.0
      %1843 = vmatmul.mubr.f32.gmra.mxu0 %v363
      %v1844 = vpop.f32.mrf.mxu0
      %v1845 = vadd.f32 0.0, %v1844
      %v1846 = vpop.f32.mrf.mxu0
      %v1847 = vadd.f32 0.0, %v1846
      %1848 = vmatprep.mubr.f32.mxu0 0.0
      %1849 = vmatmul.mubr.f32.gmra.mxu0 %v366
      %v1850 = vpop.f32.mrf.mxu0
      %v1851 = vadd.f32 0.0, %v1850
      %v1852 = vpop.f32.mrf.mxu0
      %v1853 = vadd.f32 0.0, %v1852
      %1854 = vdwg.mxu0
      %v1855 = vadd.f32 %v1803, 0.0
      %v1856 = vadd.f32 %v1805, 0.0
      %1859 = vrot.lane.b32.xlu0 %v1809, 127
      %v1860 = vpop.permute.xlu0 %1859
      %1861 = vrot.lane.b32.xlu0 %v1811, 127
      %v1862 = vpop.permute.xlu0 %1861
      %v1863 = vsel %vm500, %v1860, %v1862
      %v1866 = vadd.f32 %v1855, %v1863
      %v1867 = vadd.f32 %v1856, %v1862
      %1870 = vrot.lane.b32.xlu0 %v1815, 126
      %v1871 = vpop.permute.xlu0 %1870
      %1872 = vrot.lane.b32.xlu0 %v1817, 126
      %v1873 = vpop.permute.xlu0 %1872
      %v1874 = vsel %vm512, %v1871, %v1873
      %v1877 = vadd.f32 %v1866, %v1874
      %v1878 = vadd.f32 %v1867, %v1873
      %1881 = vrot.lane.b32.xlu0 %v1821, 118
      %v1882 = vpop.permute.xlu0 %1881
      %1883 = vrot.lane.b32.xlu0 %v1823, 118
      %v1884 = vpop.permute.xlu0 %1883
      %v1885 = vsel %vm524, %v1882, %v1884
      %v1888 = vadd.f32 %v1877, %v1885
      %v1889 = vadd.f32 %v1878, %v1884
      %1892 = vrot.lane.b32.xlu0 %v1827, 117
      %v1893 = vpop.permute.xlu0 %1892
      %1894 = vrot.lane.b32.xlu0 %v1829, 117
      %v1895 = vpop.permute.xlu0 %1894
      %v1896 = vsel %vm536, %v1893, %v1895
      %v1899 = vadd.f32 %v1888, %v1896
      %v1900 = vadd.f32 %v1889, %v1895
      %1903 = vrot.lane.b32.xlu0 %v1833, 116
      %v1904 = vpop.permute.xlu0 %1903
      %1905 = vrot.lane.b32.xlu0 %v1835, 116
      %v1906 = vpop.permute.xlu0 %1905
      %v1907 = vsel %vm548, %v1904, %v1906
      %v1910 = vadd.f32 %v1899, %v1907
      %v1911 = vadd.f32 %v1900, %v1906
      %1914 = vrot.lane.b32.xlu0 %v1839, 108
      %v1915 = vpop.permute.xlu0 %1914
      %1916 = vrot.lane.b32.xlu0 %v1841, 108
      %v1917 = vpop.permute.xlu0 %1916
      %v1918 = vsel %vm560, %v1915, %v1917
      %v1921 = vadd.f32 %v1910, %v1918
      %v1922 = vadd.f32 %v1911, %v1917
      %1925 = vrot.lane.b32.xlu0 %v1845, 107
      %v1926 = vpop.permute.xlu0 %1925
      %1927 = vrot.lane.b32.xlu0 %v1847, 107
      %v1928 = vpop.permute.xlu0 %1927
      %v1929 = vsel %vm572, %v1926, %v1928
      %v1932 = vadd.f32 %v1921, %v1929
      %v1933 = vadd.f32 %v1922, %v1928
      %1936 = vrot.lane.b32.xlu0 %v1851, 106
      %v1937 = vpop.permute.xlu0 %1936
      %1938 = vrot.lane.b32.xlu0 %v1853, 106
      %v1939 = vpop.permute.xlu0 %1938
      %v1940 = vsel %vm584, %v1937, %v1939
      %v1943 = vadd.f32 %v1932, %v1940
      %v1944 = vadd.f32 %v1933, %v1939
      %1945 = vmatprep.subr.mxu0 0.0
      %1946 = vmatpush1.msra.mxu0 0.0
      %1947 = vmatprep.subr.mxu0 0.0
      %1948 = vmatpush1.msra.mxu0 0.0
      %1949 = vmatprep.subr.mxu0 0.0
      %1950 = vmatpush1.msra.mxu0 0.0
      %1951 = vmatprep.subr.mxu0 0.0
      %1952 = vmatpush1.msra.mxu0 0.0
      %1953 = vmatprep.subr.mxu0 0.0
      %1954 = vmatpush1.msra.mxu0 0.0
      %1955 = vmatprep.subr.mxu0 0.0
      %1956 = vmatpush1.msra.mxu0 0.0
      %1957 = vmatprep.subr.mxu0 0.0
      %1958 = vmatpush1.msra.mxu0 0.0
      %1959 = vmatprep.subr.mxu0 0.0
      %1960 = vmatpush1.msra.mxu0 0.0
      %1961 = vmatprep.subr.mxu0 0.0
      %1962 = vmatpush1.msra.mxu0 0.0
      %1963 = vmatprep.subr.mxu0 0.0
      %1964 = vmatpush1.msra.mxu0 0.0
      %1965 = vmatprep.subr.mxu0 0.0
      %1966 = vmatpush1.msra.mxu0 0.0
      %1967 = vmatprep.subr.mxu0 0.0
      %1968 = vmatpush1.msra.mxu0 0.0
      %1969 = vmatprep.subr.mxu0 0.0
      %1970 = vmatpush1.msra.mxu0 0.0
      %1971 = vmatprep.subr.mxu0 0.0
      %1972 = vmatpush1.msra.mxu0 0.0
      %1973 = vmatprep.subr.mxu0 0.0
      %1974 = vmatpush1.msra.mxu0 0.0
      %1975 = vmatprep.subr.mxu0 %v1734
      %1976 = vmatpush1.msra.mxu0 %v1732
      %1977 = vmatprep.subr.mxu0 0.0
      %1978 = vmatpush2.msra.mxu0 0.0
      %1979 = vmatprep.subr.mxu0 0.0
      %1980 = vmatpush2.msra.mxu0 0.0
      %1981 = vmatprep.subr.mxu0 0.0
      %1982 = vmatpush2.msra.mxu0 0.0
      %1983 = vmatprep.subr.mxu0 0.0
      %1984 = vmatpush2.msra.mxu0 0.0
      %1985 = vmatprep.subr.mxu0 0.0
      %1986 = vmatpush2.msra.mxu0 0.0
      %1987 = vmatprep.subr.mxu0 0.0
      %1988 = vmatpush2.msra.mxu0 0.0
      %1989 = vmatprep.subr.mxu0 0.0
      %1990 = vmatpush2.msra.mxu0 0.0
      %1991 = vmatprep.subr.mxu0 0.0
      %1992 = vmatpush2.msra.mxu0 0.0
      %1993 = vmatprep.subr.mxu0 0.0
      %1994 = vmatpush2.msra.mxu0 0.0
      %1995 = vmatprep.subr.mxu0 0.0
      %1996 = vmatpush2.msra.mxu0 0.0
      %1997 = vmatprep.subr.mxu0 0.0
      %1998 = vmatpush2.msra.mxu0 0.0
      %1999 = vmatprep.subr.mxu0 0.0
      %2000 = vmatpush2.msra.mxu0 0.0
      %2001 = vmatprep.subr.mxu0 0.0
      %2002 = vmatpush2.msra.mxu0 0.0
      %2003 = vmatprep.subr.mxu0 0.0
      %2004 = vmatpush2.msra.mxu0 0.0
      %2005 = vmatprep.subr.mxu0 0.0
      %2006 = vmatpush2.msra.mxu0 0.0
      %2007 = vmatprep.subr.mxu0 0.0
      %2008 = vmatpush2.msra.mxu0 0.0
      %2009 = vmatprep.mubr.f32.mxu0 0.0
      %2010 = vmatmul.mubr.f32.gmra.mxu0 %v819
      %v2011 = vpop.f32.mrf.mxu0
      %v2012 = vadd.f32 0.0, %v2011
      %v2013 = vpop.f32.mrf.mxu0
      %v2014 = vadd.f32 0.0, %v2013
      %2015 = vmatprep.mubr.f32.mxu0 0.0
      %2016 = vmatmul.mubr.f32.gmra.mxu0 %v822
      %v2017 = vpop.f32.mrf.mxu0
      %v2018 = vadd.f32 0.0, %v2017
      %v2019 = vpop.f32.mrf.mxu0
      %v2020 = vadd.f32 0.0, %v2019
      %2021 = vmatprep.mubr.f32.mxu0 0.0
      %2022 = vmatmul.mubr.f32.gmra.mxu0 %v825
      %v2023 = vpop.f32.mrf.mxu0
      %v2024 = vadd.f32 0.0, %v2023
      %v2025 = vpop.f32.mrf.mxu0
      %v2026 = vadd.f32 0.0, %v2025
      %2027 = vmatprep.mubr.f32.mxu0 0.0
      %2028 = vmatmul.mubr.f32.gmra.mxu0 %v828
      %v2029 = vpop.f32.mrf.mxu0
      %v2030 = vadd.f32 0.0, %v2029
      %v2031 = vpop.f32.mrf.mxu0
      %v2032 = vadd.f32 0.0, %v2031
      %2033 = vmatprep.mubr.f32.mxu0 0.0
      %2034 = vmatmul.mubr.f32.gmra.mxu0 %v831
      %v2035 = vpop.f32.mrf.mxu0
      %v2036 = vadd.f32 0.0, %v2035
      %v2037 = vpop.f32.mrf.mxu0
      %v2038 = vadd.f32 0.0, %v2037
      %2039 = vmatprep.mubr.f32.mxu0 0.0
      %2040 = vmatmul.mubr.f32.gmra.mxu0 %v834
      %v2041 = vpop.f32.mrf.mxu0
      %v2042 = vadd.f32 0.0, %v2041
      %v2043 = vpop.f32.mrf.mxu0
      %v2044 = vadd.f32 0.0, %v2043
      %2045 = vmatprep.mubr.f32.mxu0 0.0
      %2046 = vmatmul.mubr.f32.gmra.mxu0 %v837
      %v2047 = vpop.f32.mrf.mxu0
      %v2048 = vadd.f32 0.0, %v2047
      %v2049 = vpop.f32.mrf.mxu0
      %v2050 = vadd.f32 0.0, %v2049
      %2051 = vmatprep.mubr.f32.mxu0 0.0
      %2052 = vmatmul.mubr.f32.gmra.mxu0 %v840
      %v2053 = vpop.f32.mrf.mxu0
      %v2054 = vadd.f32 0.0, %v2053
      %v2055 = vpop.f32.mrf.mxu0
      %v2056 = vadd.f32 0.0, %v2055
      %2057 = vmatprep.mubr.f32.mxu0 0.0
      %2058 = vmatmul.mubr.f32.gmra.mxu0 %v843
      %v2059 = vpop.f32.mrf.mxu0
      %v2060 = vadd.f32 0.0, %v2059
      %v2061 = vpop.f32.mrf.mxu0
      %v2062 = vadd.f32 0.0, %v2061
      %2063 = vdwg.mxu0
      %v2064 = vadd.f32 %v1270, %v2012
      %v2065 = vadd.f32 %v1271, %v2014
      %2068 = vrot.lane.b32.xlu0 %v2018, 127
      %v2069 = vpop.permute.xlu0 %2068
      %2070 = vrot.lane.b32.xlu0 %v2020, 127
      %v2071 = vpop.permute.xlu0 %2070
      %v2072 = vsel %vm500, %v2069, %v2071
      %v2075 = vadd.f32 %v2064, %v2072
      %v2076 = vadd.f32 %v2065, %v2071
      %2079 = vrot.lane.b32.xlu0 %v2024, 126
      %v2080 = vpop.permute.xlu0 %2079
      %2081 = vrot.lane.b32.xlu0 %v2026, 126
      %v2082 = vpop.permute.xlu0 %2081
      %v2083 = vsel %vm512, %v2080, %v2082
      %v2086 = vadd.f32 %v2075, %v2083
      %v2087 = vadd.f32 %v2076, %v2082
      %2090 = vrot.lane.b32.xlu0 %v2030, 118
      %v2091 = vpop.permute.xlu0 %2090
      %2092 = vrot.lane.b32.xlu0 %v2032, 118
      %v2093 = vpop.permute.xlu0 %2092
      %v2094 = vsel %vm524, %v2091, %v2093
      %v2097 = vadd.f32 %v2086, %v2094
      %v2098 = vadd.f32 %v2087, %v2093
      %2101 = vrot.lane.b32.xlu0 %v2036, 117
      %v2102 = vpop.permute.xlu0 %2101
      %2103 = vrot.lane.b32.xlu0 %v2038, 117
      %v2104 = vpop.permute.xlu0 %2103
      %v2105 = vsel %vm536, %v2102, %v2104
      %v2108 = vadd.f32 %v2097, %v2105
      %v2109 = vadd.f32 %v2098, %v2104
      %2112 = vrot.lane.b32.xlu0 %v2042, 116
      %v2113 = vpop.permute.xlu0 %2112
      %2114 = vrot.lane.b32.xlu0 %v2044, 116
      %v2115 = vpop.permute.xlu0 %2114
      %v2116 = vsel %vm548, %v2113, %v2115
      %v2119 = vadd.f32 %v2108, %v2116
      %v2120 = vadd.f32 %v2109, %v2115
      %2123 = vrot.lane.b32.xlu0 %v2048, 108
      %v2124 = vpop.permute.xlu0 %2123
      %2125 = vrot.lane.b32.xlu0 %v2050, 108
      %v2126 = vpop.permute.xlu0 %2125
      %v2127 = vsel %vm560, %v2124, %v2126
      %v2130 = vadd.f32 %v2119, %v2127
      %v2131 = vadd.f32 %v2120, %v2126
      %2134 = vrot.lane.b32.xlu0 %v2054, 107
      %v2135 = vpop.permute.xlu0 %2134
      %2136 = vrot.lane.b32.xlu0 %v2056, 107
      %v2137 = vpop.permute.xlu0 %2136
      %v2138 = vsel %vm572, %v2135, %v2137
      %v2141 = vadd.f32 %v2130, %v2138
      %v2142 = vadd.f32 %v2131, %v2137
      %2145 = vrot.lane.b32.xlu0 %v2060, 106
      %v2146 = vpop.permute.xlu0 %2145
      %2147 = vrot.lane.b32.xlu0 %v2062, 106
      %v2148 = vpop.permute.xlu0 %2147
      %v2149 = vsel %vm584, %v2146, %v2148
      %v2152 = vadd.f32 %v2141, %v2149
      %v2153 = vadd.f32 %v2142, %v2148
      %2154 = vmatprep.subr.mxu0 0.0
      %2155 = vmatpush1.msra.mxu0 0.0
      %2156 = vmatprep.subr.mxu0 0.0
      %2157 = vmatpush1.msra.mxu0 0.0
      %2158 = vmatprep.subr.mxu0 0.0
      %2159 = vmatpush1.msra.mxu0 0.0
      %2160 = vmatprep.subr.mxu0 0.0
      %2161 = vmatpush1.msra.mxu0 0.0
      %2162 = vmatprep.subr.mxu0 0.0
      %2163 = vmatpush1.msra.mxu0 0.0
      %2164 = vmatprep.subr.mxu0 0.0
      %2165 = vmatpush1.msra.mxu0 0.0
      %2166 = vmatprep.subr.mxu0 0.0
      %2167 = vmatpush1.msra.mxu0 0.0
      %2168 = vmatprep.subr.mxu0 0.0
      %2169 = vmatpush1.msra.mxu0 0.0
      %2170 = vmatprep.subr.mxu0 0.0
      %2171 = vmatpush1.msra.mxu0 0.0
      %2172 = vmatprep.subr.mxu0 0.0
      %2173 = vmatpush1.msra.mxu0 0.0
      %2174 = vmatprep.subr.mxu0 0.0
      %2175 = vmatpush1.msra.mxu0 0.0
      %2176 = vmatprep.subr.mxu0 0.0
      %2177 = vmatpush1.msra.mxu0 0.0
      %2178 = vmatprep.subr.mxu0 0.0
      %2179 = vmatpush1.msra.mxu0 0.0
      %2180 = vmatprep.subr.mxu0 0.0
      %2181 = vmatpush1.msra.mxu0 0.0
      %2182 = vmatprep.subr.mxu0 0.0
      %2183 = vmatpush1.msra.mxu0 0.0
      %2184 = vmatprep.subr.mxu0 %v1734
      %2185 = vmatpush1.msra.mxu0 %v1732
      %2186 = vmatprep.subr.mxu0 0.0
      %2187 = vmatpush2.msra.mxu0 0.0
      %2188 = vmatprep.subr.mxu0 0.0
      %2189 = vmatpush2.msra.mxu0 0.0
      %2190 = vmatprep.subr.mxu0 0.0
      %2191 = vmatpush2.msra.mxu0 0.0
      %2192 = vmatprep.subr.mxu0 0.0
      %2193 = vmatpush2.msra.mxu0 0.0
      %2194 = vmatprep.subr.mxu0 0.0
      %2195 = vmatpush2.msra.mxu0 0.0
      %2196 = vmatprep.subr.mxu0 0.0
      %2197 = vmatpush2.msra.mxu0 0.0
      %2198 = vmatprep.subr.mxu0 0.0
      %2199 = vmatpush2.msra.mxu0 0.0
      %2200 = vmatprep.subr.mxu0 0.0
      %2201 = vmatpush2.msra.mxu0 0.0
      %2202 = vmatprep.subr.mxu0 0.0
      %2203 = vmatpush2.msra.mxu0 0.0
      %2204 = vmatprep.subr.mxu0 0.0
      %2205 = vmatpush2.msra.mxu0 0.0
      %2206 = vmatprep.subr.mxu0 0.0
      %2207 = vmatpush2.msra.mxu0 0.0
      %2208 = vmatprep.subr.mxu0 0.0
      %2209 = vmatpush2.msra.mxu0 0.0
      %2210 = vmatprep.subr.mxu0 0.0
      %2211 = vmatpush2.msra.mxu0 0.0
      %2212 = vmatprep.subr.mxu0 0.0
      %2213 = vmatpush2.msra.mxu0 0.0
      %2214 = vmatprep.subr.mxu0 0.0
      %2215 = vmatpush2.msra.mxu0 0.0
      %2216 = vmatprep.subr.mxu0 0.0
      %2217 = vmatpush2.msra.mxu0 0.0
      %2218 = vmatprep.mubr.f32.mxu0 0.0
      %2219 = vmatmul.mubr.f32.gmra.mxu0 %v1492
      %v2220 = vpop.f32.mrf.mxu0
      %v2221 = vadd.f32 0.0, %v2220
      %v2222 = vpop.f32.mrf.mxu0
      %v2223 = vadd.f32 0.0, %v2222
      %2224 = vmatprep.mubr.f32.mxu0 0.0
      %2225 = vmatmul.mubr.f32.gmra.mxu0 %v1495
      %v2226 = vpop.f32.mrf.mxu0
      %v2227 = vadd.f32 0.0, %v2226
      %v2228 = vpop.f32.mrf.mxu0
      %v2229 = vadd.f32 0.0, %v2228
      %2230 = vmatprep.mubr.f32.mxu0 0.0
      %2231 = vmatmul.mubr.f32.gmra.mxu0 %v1498
      %v2232 = vpop.f32.mrf.mxu0
      %v2233 = vadd.f32 0.0, %v2232
      %v2234 = vpop.f32.mrf.mxu0
      %v2235 = vadd.f32 0.0, %v2234
      %2236 = vmatprep.mubr.f32.mxu0 0.0
      %2237 = vmatmul.mubr.f32.gmra.mxu0 %v1501
      %v2238 = vpop.f32.mrf.mxu0
      %v2239 = vadd.f32 0.0, %v2238
      %v2240 = vpop.f32.mrf.mxu0
      %v2241 = vadd.f32 0.0, %v2240
      %2242 = vmatprep.mubr.f32.mxu0 0.0
      %2243 = vmatmul.mubr.f32.gmra.mxu0 %v1504
      %v2244 = vpop.f32.mrf.mxu0
      %v2245 = vadd.f32 0.0, %v2244
      %v2246 = vpop.f32.mrf.mxu0
      %v2247 = vadd.f32 0.0, %v2246
      %2248 = vmatprep.mubr.f32.mxu0 0.0
      %2249 = vmatmul.mubr.f32.gmra.mxu0 %v1507
      %v2250 = vpop.f32.mrf.mxu0
      %v2251 = vadd.f32 0.0, %v2250
      %v2252 = vpop.f32.mrf.mxu0
      %v2253 = vadd.f32 0.0, %v2252
      %2254 = vmatprep.mubr.f32.mxu0 0.0
      %2255 = vmatmul.mubr.f32.gmra.mxu0 %v1510
      %v2256 = vpop.f32.mrf.mxu0
      %v2257 = vadd.f32 0.0, %v2256
      %v2258 = vpop.f32.mrf.mxu0
      %v2259 = vadd.f32 0.0, %v2258
      %2260 = vmatprep.mubr.f32.mxu0 0.0
      %2261 = vmatmul.mubr.f32.gmra.mxu0 %v1513
      %v2262 = vpop.f32.mrf.mxu0
      %v2263 = vadd.f32 0.0, %v2262
      %v2264 = vpop.f32.mrf.mxu0
      %v2265 = vadd.f32 0.0, %v2264
      %2266 = vmatprep.mubr.f32.mxu0 0.0
      %2267 = vmatmul.mubr.f32.gmra.mxu0 %v1516
      %v2268 = vpop.f32.mrf.mxu0
      %v2269 = vadd.f32 0.0, %v2268
      %v2270 = vpop.f32.mrf.mxu0
      %v2271 = vadd.f32 0.0, %v2270
      %2272 = vdwg.mxu0
      %v2273 = vadd.f32 %v1479, %v2221
      %v2274 = vadd.f32 %v1480, %v2223
      %2277 = vrot.lane.b32.xlu0 %v2227, 127
      %v2278 = vpop.permute.xlu0 %2277
      %2279 = vrot.lane.b32.xlu0 %v2229, 127
      %v2280 = vpop.permute.xlu0 %2279
      %v2281 = vsel %vm500, %v2278, %v2280
      %v2284 = vadd.f32 %v2273, %v2281
      %v2285 = vadd.f32 %v2274, %v2280
      %2288 = vrot.lane.b32.xlu0 %v2233, 126
      %v2289 = vpop.permute.xlu0 %2288
      %2290 = vrot.lane.b32.xlu0 %v2235, 126
      %v2291 = vpop.permute.xlu0 %2290
      %v2292 = vsel %vm512, %v2289, %v2291
      %v2295 = vadd.f32 %v2284, %v2292
      %v2296 = vadd.f32 %v2285, %v2291
      %2299 = vrot.lane.b32.xlu0 %v2239, 118
      %v2300 = vpop.permute.xlu0 %2299
      %2301 = vrot.lane.b32.xlu0 %v2241, 118
      %v2302 = vpop.permute.xlu0 %2301
      %v2303 = vsel %vm524, %v2300, %v2302
      %v2306 = vadd.f32 %v2295, %v2303
      %v2307 = vadd.f32 %v2296, %v2302
      %2310 = vrot.lane.b32.xlu0 %v2245, 117
      %v2311 = vpop.permute.xlu0 %2310
      %2312 = vrot.lane.b32.xlu0 %v2247, 117
      %v2313 = vpop.permute.xlu0 %2312
      %v2314 = vsel %vm536, %v2311, %v2313
      %v2317 = vadd.f32 %v2306, %v2314
      %v2318 = vadd.f32 %v2307, %v2313
      %2321 = vrot.lane.b32.xlu0 %v2251, 116
      %v2322 = vpop.permute.xlu0 %2321
      %2323 = vrot.lane.b32.xlu0 %v2253, 116
      %v2324 = vpop.permute.xlu0 %2323
      %v2325 = vsel %vm548, %v2322, %v2324
      %v2328 = vadd.f32 %v2317, %v2325
      %v2329 = vadd.f32 %v2318, %v2324
      %2332 = vrot.lane.b32.xlu0 %v2257, 108
      %v2333 = vpop.permute.xlu0 %2332
      %2334 = vrot.lane.b32.xlu0 %v2259, 108
      %v2335 = vpop.permute.xlu0 %2334
      %v2336 = vsel %vm560, %v2333, %v2335
      %v2339 = vadd.f32 %v2328, %v2336
      %v2340 = vadd.f32 %v2329, %v2335
      %2343 = vrot.lane.b32.xlu0 %v2263, 107
      %v2344 = vpop.permute.xlu0 %2343
      %2345 = vrot.lane.b32.xlu0 %v2265, 107
      %v2346 = vpop.permute.xlu0 %2345
      %v2347 = vsel %vm572, %v2344, %v2346
      %v2350 = vadd.f32 %v2339, %v2347
      %v2351 = vadd.f32 %v2340, %v2346
      %2354 = vrot.lane.b32.xlu0 %v2269, 106
      %v2355 = vpop.permute.xlu0 %2354
      %2356 = vrot.lane.b32.xlu0 %v2271, 106
      %v2357 = vpop.permute.xlu0 %2356
      %v2358 = vsel %vm584, %v2355, %v2357
      %v2361 = vadd.f32 %v2350, %v2358
      %v2362 = vadd.f32 %v2351, %v2357
      %v2363 = vld [vmem:[%s313] sm:$0xff]
      %v2364 = vmax.f32 %v2363, 0.0
      %v2366 = vcombine.high %v2364, %v2364
      %v2367 = vsel %vm368, %v2364, 0
      %v2369 = vsel %vm368, %v2366, 0
      %2371 = vmatprep.subr.mxu0 0.0
      %2372 = vmatpush1.msra.mxu0 0.0
      %2373 = vmatprep.subr.mxu0 0.0
      %2374 = vmatpush1.msra.mxu0 0.0
      %2375 = vmatprep.subr.mxu0 0.0
      %2376 = vmatpush1.msra.mxu0 0.0
      %2377 = vmatprep.subr.mxu0 0.0
      %2378 = vmatpush1.msra.mxu0 0.0
      %2379 = vmatprep.subr.mxu0 0.0
      %2380 = vmatpush1.msra.mxu0 0.0
      %2381 = vmatprep.subr.mxu0 0.0
      %2382 = vmatpush1.msra.mxu0 0.0
      %2383 = vmatprep.subr.mxu0 0.0
      %2384 = vmatpush1.msra.mxu0 0.0
      %2385 = vmatprep.subr.mxu0 0.0
      %2386 = vmatpush1.msra.mxu0 0.0
      %2387 = vmatprep.subr.mxu0 0.0
      %2388 = vmatpush1.msra.mxu0 0.0
      %2389 = vmatprep.subr.mxu0 0.0
      %2390 = vmatpush1.msra.mxu0 0.0
      %2391 = vmatprep.subr.mxu0 0.0
      %2392 = vmatpush1.msra.mxu0 0.0
      %2393 = vmatprep.subr.mxu0 0.0
      %2394 = vmatpush1.msra.mxu0 0.0
      %2395 = vmatprep.subr.mxu0 0.0
      %2396 = vmatpush1.msra.mxu0 0.0
      %2397 = vmatprep.subr.mxu0 0.0
      %2398 = vmatpush1.msra.mxu0 0.0
      %2399 = vmatprep.subr.mxu0 0.0
      %2400 = vmatpush1.msra.mxu0 0.0
      %2401 = vmatprep.subr.mxu0 %v2369
      %2402 = vmatpush1.msra.mxu0 %v2367
      %2403 = vmatprep.subr.mxu0 0.0
      %2404 = vmatpush2.msra.mxu0 0.0
      %2405 = vmatprep.subr.mxu0 0.0
      %2406 = vmatpush2.msra.mxu0 0.0
      %2407 = vmatprep.subr.mxu0 0.0
      %2408 = vmatpush2.msra.mxu0 0.0
      %2409 = vmatprep.subr.mxu0 0.0
      %2410 = vmatpush2.msra.mxu0 0.0
      %2411 = vmatprep.subr.mxu0 0.0
      %2412 = vmatpush2.msra.mxu0 0.0
      %2413 = vmatprep.subr.mxu0 0.0
      %2414 = vmatpush2.msra.mxu0 0.0
      %2415 = vmatprep.subr.mxu0 0.0
      %2416 = vmatpush2.msra.mxu0 0.0
      %2417 = vmatprep.subr.mxu0 0.0
      %2418 = vmatpush2.msra.mxu0 0.0
      %2419 = vmatprep.subr.mxu0 0.0
      %2420 = vmatpush2.msra.mxu0 0.0
      %2421 = vmatprep.subr.mxu0 0.0
      %2422 = vmatpush2.msra.mxu0 0.0
      %2423 = vmatprep.subr.mxu0 0.0
      %2424 = vmatpush2.msra.mxu0 0.0
      %2425 = vmatprep.subr.mxu0 0.0
      %2426 = vmatpush2.msra.mxu0 0.0
      %2427 = vmatprep.subr.mxu0 0.0
      %2428 = vmatpush2.msra.mxu0 0.0
      %2429 = vmatprep.subr.mxu0 0.0
      %2430 = vmatpush2.msra.mxu0 0.0
      %2431 = vmatprep.subr.mxu0 0.0
      %2432 = vmatpush2.msra.mxu0 0.0
      %2433 = vmatprep.subr.mxu0 0.0
      %2434 = vmatpush2.msra.mxu0 0.0
      %2435 = vmatprep.mubr.f32.mxu0 0.0
      %2436 = vmatmul.mubr.f32.gmra.mxu0 %v819
      %v2437 = vpop.f32.mrf.mxu0
      %v2438 = vadd.f32 0.0, %v2437
      %v2439 = vpop.f32.mrf.mxu0
      %v2440 = vadd.f32 0.0, %v2439
      %2441 = vmatprep.mubr.f32.mxu0 0.0
      %2442 = vmatmul.mubr.f32.gmra.mxu0 %v822
      %v2443 = vpop.f32.mrf.mxu0
      %v2444 = vadd.f32 0.0, %v2443
      %v2445 = vpop.f32.mrf.mxu0
      %v2446 = vadd.f32 0.0, %v2445
      %2447 = vmatprep.mubr.f32.mxu0 0.0
      %2448 = vmatmul.mubr.f32.gmra.mxu0 %v825
      %v2449 = vpop.f32.mrf.mxu0
      %v2450 = vadd.f32 0.0, %v2449
      %v2451 = vpop.f32.mrf.mxu0
      %v2452 = vadd.f32 0.0, %v2451
      %2453 = vmatprep.mubr.f32.mxu0 0.0
      %2454 = vmatmul.mubr.f32.gmra.mxu0 %v828
      %v2455 = vpop.f32.mrf.mxu0
      %v2456 = vadd.f32 0.0, %v2455
      %v2457 = vpop.f32.mrf.mxu0
      %v2458 = vadd.f32 0.0, %v2457
      %2459 = vmatprep.mubr.f32.mxu0 0.0
      %2460 = vmatmul.mubr.f32.gmra.mxu0 %v831
      %v2461 = vpop.f32.mrf.mxu0
      %v2462 = vadd.f32 0.0, %v2461
      %v2463 = vpop.f32.mrf.mxu0
      %v2464 = vadd.f32 0.0, %v2463
      %2465 = vmatprep.mubr.f32.mxu0 0.0
      %2466 = vmatmul.mubr.f32.gmra.mxu0 %v834
      %v2467 = vpop.f32.mrf.mxu0
      %v2468 = vadd.f32 0.0, %v2467
      %v2469 = vpop.f32.mrf.mxu0
      %v2470 = vadd.f32 0.0, %v2469
      %2471 = vmatprep.mubr.f32.mxu0 0.0
      %2472 = vmatmul.mubr.f32.gmra.mxu0 %v837
      %v2473 = vpop.f32.mrf.mxu0
      %v2474 = vadd.f32 0.0, %v2473
      %v2475 = vpop.f32.mrf.mxu0
      %v2476 = vadd.f32 0.0, %v2475
      %2477 = vmatprep.mubr.f32.mxu0 0.0
      %2478 = vmatmul.mubr.f32.gmra.mxu0 %v840
      %v2479 = vpop.f32.mrf.mxu0
      %v2480 = vadd.f32 0.0, %v2479
      %v2481 = vpop.f32.mrf.mxu0
      %v2482 = vadd.f32 0.0, %v2481
      %2483 = vmatprep.mubr.f32.mxu0 0.0
      %2484 = vmatmul.mubr.f32.gmra.mxu0 %v843
      %v2485 = vpop.f32.mrf.mxu0
      %v2486 = vadd.f32 0.0, %v2485
      %v2487 = vpop.f32.mrf.mxu0
      %v2488 = vadd.f32 0.0, %v2487
      %2489 = vdwg.mxu0
      %v2490 = vadd.f32 %v1943, %v2438
      %v2491 = vadd.f32 %v1944, %v2440
      %2494 = vrot.lane.b32.xlu0 %v2444, 127
      %v2495 = vpop.permute.xlu0 %2494
      %2496 = vrot.lane.b32.xlu0 %v2446, 127
      %v2497 = vpop.permute.xlu0 %2496
      %v2498 = vsel %vm500, %v2495, %v2497
      %v2501 = vadd.f32 %v2490, %v2498
      %v2502 = vadd.f32 %v2491, %v2497
      %2505 = vrot.lane.b32.xlu0 %v2450, 126
      %v2506 = vpop.permute.xlu0 %2505
      %2507 = vrot.lane.b32.xlu0 %v2452, 126
      %v2508 = vpop.permute.xlu0 %2507
      %v2509 = vsel %vm512, %v2506, %v2508
      %v2512 = vadd.f32 %v2501, %v2509
      %v2513 = vadd.f32 %v2502, %v2508
      %2516 = vrot.lane.b32.xlu0 %v2456, 118
      %v2517 = vpop.permute.xlu0 %2516
      %2518 = vrot.lane.b32.xlu0 %v2458, 118
      %v2519 = vpop.permute.xlu0 %2518
      %v2520 = vsel %vm524, %v2517, %v2519
      %v2523 = vadd.f32 %v2512, %v2520
      %v2524 = vadd.f32 %v2513, %v2519
      %2527 = vrot.lane.b32.xlu0 %v2462, 117
      %v2528 = vpop.permute.xlu0 %2527
      %2529 = vrot.lane.b32.xlu0 %v2464, 117
      %v2530 = vpop.permute.xlu0 %2529
      %v2531 = vsel %vm536, %v2528, %v2530
      %v2534 = vadd.f32 %v2523, %v2531
      %v2535 = vadd.f32 %v2524, %v2530
      %2538 = vrot.lane.b32.xlu0 %v2468, 116
      %v2539 = vpop.permute.xlu0 %2538
      %2540 = vrot.lane.b32.xlu0 %v2470, 116
      %v2541 = vpop.permute.xlu0 %2540
      %v2542 = vsel %vm548, %v2539, %v2541
      %v2545 = vadd.f32 %v2534, %v2542
      %v2546 = vadd.f32 %v2535, %v2541
      %2549 = vrot.lane.b32.xlu0 %v2474, 108
      %v2550 = vpop.permute.xlu0 %2549
      %2551 = vrot.lane.b32.xlu0 %v2476, 108
      %v2552 = vpop.permute.xlu0 %2551
      %v2553 = vsel %vm560, %v2550, %v2552
      %v2556 = vadd.f32 %v2545, %v2553
      %v2557 = vadd.f32 %v2546, %v2552
      %2560 = vrot.lane.b32.xlu0 %v2480, 107
      %v2561 = vpop.permute.xlu0 %2560
      %2562 = vrot.lane.b32.xlu0 %v2482, 107
      %v2563 = vpop.permute.xlu0 %2562
      %v2564 = vsel %vm572, %v2561, %v2563
      %v2567 = vadd.f32 %v2556, %v2564
      %v2568 = vadd.f32 %v2557, %v2563
      %2571 = vrot.lane.b32.xlu0 %v2486, 106
      %v2572 = vpop.permute.xlu0 %2571
      %2573 = vrot.lane.b32.xlu0 %v2488, 106
      %v2574 = vpop.permute.xlu0 %2573
      %v2575 = vsel %vm584, %v2572, %v2574
      %v2578 = vadd.f32 %v2567, %v2575
      %v2579 = vadd.f32 %v2568, %v2574
      %2580 = vmatprep.subr.mxu0 0.0
      %2581 = vmatpush1.msra.mxu0 0.0
      %2582 = vmatprep.subr.mxu0 0.0
      %2583 = vmatpush1.msra.mxu0 0.0
      %2584 = vmatprep.subr.mxu0 0.0
      %2585 = vmatpush1.msra.mxu0 0.0
      %2586 = vmatprep.subr.mxu0 0.0
      %2587 = vmatpush1.msra.mxu0 0.0
      %2588 = vmatprep.subr.mxu0 0.0
      %2589 = vmatpush1.msra.mxu0 0.0
      %2590 = vmatprep.subr.mxu0 0.0
      %2591 = vmatpush1.msra.mxu0 0.0
      %2592 = vmatprep.subr.mxu0 0.0
      %2593 = vmatpush1.msra.mxu0 0.0
      %2594 = vmatprep.subr.mxu0 0.0
      %2595 = vmatpush1.msra.mxu0 0.0
      %2596 = vmatprep.subr.mxu0 0.0
      %2597 = vmatpush1.msra.mxu0 0.0
      %2598 = vmatprep.subr.mxu0 0.0
      %2599 = vmatpush1.msra.mxu0 0.0
      %2600 = vmatprep.subr.mxu0 0.0
      %2601 = vmatpush1.msra.mxu0 0.0
      %2602 = vmatprep.subr.mxu0 0.0
      %2603 = vmatpush1.msra.mxu0 0.0
      %2604 = vmatprep.subr.mxu0 0.0
      %2605 = vmatpush1.msra.mxu0 0.0
      %2606 = vmatprep.subr.mxu0 0.0
      %2607 = vmatpush1.msra.mxu0 0.0
      %2608 = vmatprep.subr.mxu0 0.0
      %2609 = vmatpush1.msra.mxu0 0.0
      %2610 = vmatprep.subr.mxu0 %v2369
      %2611 = vmatpush1.msra.mxu0 %v2367
      %2612 = vmatprep.subr.mxu0 0.0
      %2613 = vmatpush2.msra.mxu0 0.0
      %2614 = vmatprep.subr.mxu0 0.0
      %2615 = vmatpush2.msra.mxu0 0.0
      %2616 = vmatprep.subr.mxu0 0.0
      %2617 = vmatpush2.msra.mxu0 0.0
      %2618 = vmatprep.subr.mxu0 0.0
      %2619 = vmatpush2.msra.mxu0 0.0
      %2620 = vmatprep.subr.mxu0 0.0
      %2621 = vmatpush2.msra.mxu0 0.0
      %2622 = vmatprep.subr.mxu0 0.0
      %2623 = vmatpush2.msra.mxu0 0.0
      %2624 = vmatprep.subr.mxu0 0.0
      %2625 = vmatpush2.msra.mxu0 0.0
      %2626 = vmatprep.subr.mxu0 0.0
      %2627 = vmatpush2.msra.mxu0 0.0
      %2628 = vmatprep.subr.mxu0 0.0
      %2629 = vmatpush2.msra.mxu0 0.0
      %2630 = vmatprep.subr.mxu0 0.0
      %2631 = vmatpush2.msra.mxu0 0.0
      %2632 = vmatprep.subr.mxu0 0.0
      %2633 = vmatpush2.msra.mxu0 0.0
      %2634 = vmatprep.subr.mxu0 0.0
      %2635 = vmatpush2.msra.mxu0 0.0
      %2636 = vmatprep.subr.mxu0 0.0
      %2637 = vmatpush2.msra.mxu0 0.0
      %2638 = vmatprep.subr.mxu0 0.0
      %2639 = vmatpush2.msra.mxu0 0.0
      %2640 = vmatprep.subr.mxu0 0.0
      %2641 = vmatpush2.msra.mxu0 0.0
      %2642 = vmatprep.subr.mxu0 0.0
      %2643 = vmatpush2.msra.mxu0 0.0
      %2644 = vmatprep.mubr.f32.mxu0 0.0
      %2645 = vmatmul.mubr.f32.gmra.mxu0 %v1492
      %v2646 = vpop.f32.mrf.mxu0
      %v2647 = vadd.f32 0.0, %v2646
      %v2648 = vpop.f32.mrf.mxu0
      %v2649 = vadd.f32 0.0, %v2648
      %2650 = vmatprep.mubr.f32.mxu0 0.0
      %2651 = vmatmul.mubr.f32.gmra.mxu0 %v1495
      %v2652 = vpop.f32.mrf.mxu0
      %v2653 = vadd.f32 0.0, %v2652
      %v2654 = vpop.f32.mrf.mxu0
      %v2655 = vadd.f32 0.0, %v2654
      %2656 = vmatprep.mubr.f32.mxu0 0.0
      %2657 = vmatmul.mubr.f32.gmra.mxu0 %v1498
      %v2658 = vpop.f32.mrf.mxu0
      %v2659 = vadd.f32 0.0, %v2658
      %v2660 = vpop.f32.mrf.mxu0
      %v2661 = vadd.f32 0.0, %v2660
      %2662 = vmatprep.mubr.f32.mxu0 0.0
      %2663 = vmatmul.mubr.f32.gmra.mxu0 %v1501
      %v2664 = vpop.f32.mrf.mxu0
      %v2665 = vadd.f32 0.0, %v2664
      %v2666 = vpop.f32.mrf.mxu0
      %v2667 = vadd.f32 0.0, %v2666
      %2668 = vmatprep.mubr.f32.mxu0 0.0
      %2669 = vmatmul.mubr.f32.gmra.mxu0 %v1504
      %v2670 = vpop.f32.mrf.mxu0
      %v2671 = vadd.f32 0.0, %v2670
      %v2672 = vpop.f32.mrf.mxu0
      %v2673 = vadd.f32 0.0, %v2672
      %2674 = vmatprep.mubr.f32.mxu0 0.0
      %2675 = vmatmul.mubr.f32.gmra.mxu0 %v1507
      %v2676 = vpop.f32.mrf.mxu0
      %v2677 = vadd.f32 0.0, %v2676
      %v2678 = vpop.f32.mrf.mxu0
      %v2679 = vadd.f32 0.0, %v2678
      %2680 = vmatprep.mubr.f32.mxu0 0.0
      %2681 = vmatmul.mubr.f32.gmra.mxu0 %v1510
      %v2682 = vpop.f32.mrf.mxu0
      %v2683 = vadd.f32 0.0, %v2682
      %v2684 = vpop.f32.mrf.mxu0
      %v2685 = vadd.f32 0.0, %v2684
      %2686 = vmatprep.mubr.f32.mxu0 0.0
      %2687 = vmatmul.mubr.f32.gmra.mxu0 %v1513
      %v2688 = vpop.f32.mrf.mxu0
      %v2689 = vadd.f32 0.0, %v2688
      %v2690 = vpop.f32.mrf.mxu0
      %v2691 = vadd.f32 0.0, %v2690
      %2692 = vmatprep.mubr.f32.mxu0 0.0
      %2693 = vmatmul.mubr.f32.gmra.mxu0 %v1516
      %v2694 = vpop.f32.mrf.mxu0
      %v2695 = vadd.f32 0.0, %v2694
      %v2696 = vpop.f32.mrf.mxu0
      %v2697 = vadd.f32 0.0, %v2696
      %2698 = vdwg.mxu0
      %v2699 = vadd.f32 %v2152, %v2647
      %v2700 = vadd.f32 %v2153, %v2649
      %2703 = vrot.lane.b32.xlu0 %v2653, 127
      %v2704 = vpop.permute.xlu0 %2703
      %2705 = vrot.lane.b32.xlu0 %v2655, 127
      %v2706 = vpop.permute.xlu0 %2705
      %v2707 = vsel %vm500, %v2704, %v2706
      %v2710 = vadd.f32 %v2699, %v2707
      %v2711 = vadd.f32 %v2700, %v2706
      %2714 = vrot.lane.b32.xlu0 %v2659, 126
      %v2715 = vpop.permute.xlu0 %2714
      %2716 = vrot.lane.b32.xlu0 %v2661, 126
      %v2717 = vpop.permute.xlu0 %2716
      %v2718 = vsel %vm512, %v2715, %v2717
      %v2721 = vadd.f32 %v2710, %v2718
      %v2722 = vadd.f32 %v2711, %v2717
      %2725 = vrot.lane.b32.xlu0 %v2665, 118
      %v2726 = vpop.permute.xlu0 %2725
      %2727 = vrot.lane.b32.xlu0 %v2667, 118
      %v2728 = vpop.permute.xlu0 %2727
      %v2729 = vsel %vm524, %v2726, %v2728
      %v2732 = vadd.f32 %v2721, %v2729
      %v2733 = vadd.f32 %v2722, %v2728
      %2736 = vrot.lane.b32.xlu0 %v2671, 117
      %v2737 = vpop.permute.xlu0 %2736
      %2738 = vrot.lane.b32.xlu0 %v2673, 117
      %v2739 = vpop.permute.xlu0 %2738
      %v2740 = vsel %vm536, %v2737, %v2739
      %v2743 = vadd.f32 %v2732, %v2740
      %v2744 = vadd.f32 %v2733, %v2739
      %2747 = vrot.lane.b32.xlu0 %v2677, 116
      %v2748 = vpop.permute.xlu0 %2747
      %2749 = vrot.lane.b32.xlu0 %v2679, 116
      %v2750 = vpop.permute.xlu0 %2749
      %v2751 = vsel %vm548, %v2748, %v2750
      %v2754 = vadd.f32 %v2743, %v2751
      %v2755 = vadd.f32 %v2744, %v2750
      %2758 = vrot.lane.b32.xlu0 %v2683, 108
      %v2759 = vpop.permute.xlu0 %2758
      %2760 = vrot.lane.b32.xlu0 %v2685, 108
      %v2761 = vpop.permute.xlu0 %2760
      %v2762 = vsel %vm560, %v2759, %v2761
      %v2765 = vadd.f32 %v2754, %v2762
      %v2766 = vadd.f32 %v2755, %v2761
      %2769 = vrot.lane.b32.xlu0 %v2689, 107
      %v2770 = vpop.permute.xlu0 %2769
      %2771 = vrot.lane.b32.xlu0 %v2691, 107
      %v2772 = vpop.permute.xlu0 %2771
      %v2773 = vsel %vm572, %v2770, %v2772
      %v2776 = vadd.f32 %v2765, %v2773
      %v2777 = vadd.f32 %v2766, %v2772
      %2780 = vrot.lane.b32.xlu0 %v2695, 106
      %v2781 = vpop.permute.xlu0 %2780
      %2782 = vrot.lane.b32.xlu0 %v2697, 106
      %v2783 = vpop.permute.xlu0 %2782
      %v2784 = vsel %vm584, %v2781, %v2783
      %v2787 = vadd.f32 %v2776, %v2784
      %v2788 = vadd.f32 %v2777, %v2783
      %s2789 = scalar_lea.vmem %s313, 8
      %v2790 = vld [vmem:[%s2789] sm:$0xff]
      %v2791 = vmax.f32 %v2790, 0.0
      %v2793 = vcombine.high %v2791, %v2791
      %v2794 = vsel %vm368, %v2791, 0
      %v2796 = vsel %vm368, %v2793, 0
      %2798 = vmatprep.subr.mxu0 0.0
      %2799 = vmatpush1.msra.mxu0 0.0
      %2800 = vmatprep.subr.mxu0 0.0
      %2801 = vmatpush1.msra.mxu0 0.0
      %2802 = vmatprep.subr.mxu0 0.0
      %2803 = vmatpush1.msra.mxu0 0.0
      %2804 = vmatprep.subr.mxu0 0.0
      %2805 = vmatpush1.msra.mxu0 0.0
      %2806 = vmatprep.subr.mxu0 0.0
      %2807 = vmatpush1.msra.mxu0 0.0
      %2808 = vmatprep.subr.mxu0 0.0
      %2809 = vmatpush1.msra.mxu0 0.0
      %2810 = vmatprep.subr.mxu0 0.0
      %2811 = vmatpush1.msra.mxu0 0.0
      %2812 = vmatprep.subr.mxu0 0.0
      %2813 = vmatpush1.msra.mxu0 0.0
      %2814 = vmatprep.subr.mxu0 0.0
      %2815 = vmatpush1.msra.mxu0 0.0
      %2816 = vmatprep.subr.mxu0 0.0
      %2817 = vmatpush1.msra.mxu0 0.0
      %2818 = vmatprep.subr.mxu0 0.0
      %2819 = vmatpush1.msra.mxu0 0.0
      %2820 = vmatprep.subr.mxu0 0.0
      %2821 = vmatpush1.msra.mxu0 0.0
      %2822 = vmatprep.subr.mxu0 0.0
      %2823 = vmatpush1.msra.mxu0 0.0
      %2824 = vmatprep.subr.mxu0 0.0
      %2825 = vmatpush1.msra.mxu0 0.0
      %2826 = vmatprep.subr.mxu0 0.0
      %2827 = vmatpush1.msra.mxu0 0.0
      %2828 = vmatprep.subr.mxu0 %v2796
      %2829 = vmatpush1.msra.mxu0 %v2794
      %2830 = vmatprep.subr.mxu0 0.0
      %2831 = vmatpush2.msra.mxu0 0.0
      %2832 = vmatprep.subr.mxu0 0.0
      %2833 = vmatpush2.msra.mxu0 0.0
      %2834 = vmatprep.subr.mxu0 0.0
      %2835 = vmatpush2.msra.mxu0 0.0
      %2836 = vmatprep.subr.mxu0 0.0
      %2837 = vmatpush2.msra.mxu0 0.0
      %2838 = vmatprep.subr.mxu0 0.0
      %2839 = vmatpush2.msra.mxu0 0.0
      %2840 = vmatprep.subr.mxu0 0.0
      %2841 = vmatpush2.msra.mxu0 0.0
      %2842 = vmatprep.subr.mxu0 0.0
      %2843 = vmatpush2.msra.mxu0 0.0
      %2844 = vmatprep.subr.mxu0 0.0
      %2845 = vmatpush2.msra.mxu0 0.0
      %2846 = vmatprep.subr.mxu0 0.0
      %2847 = vmatpush2.msra.mxu0 0.0
      %2848 = vmatprep.subr.mxu0 0.0
      %2849 = vmatpush2.msra.mxu0 0.0
      %2850 = vmatprep.subr.mxu0 0.0
      %2851 = vmatpush2.msra.mxu0 0.0
      %2852 = vmatprep.subr.mxu0 0.0
      %2853 = vmatpush2.msra.mxu0 0.0
      %2854 = vmatprep.subr.mxu0 0.0
      %2855 = vmatpush2.msra.mxu0 0.0
      %2856 = vmatprep.subr.mxu0 0.0
      %2857 = vmatpush2.msra.mxu0 0.0
      %2858 = vmatprep.subr.mxu0 0.0
      %2859 = vmatpush2.msra.mxu0 0.0
      %2860 = vmatprep.subr.mxu0 0.0
      %2861 = vmatpush2.msra.mxu0 0.0
      %2862 = vmatprep.mubr.f32.mxu0 0.0
      %2863 = vmatmul.mubr.f32.gmra.mxu0 %v1492
      %v2864 = vpop.f32.mrf.mxu0
      %v2865 = vadd.f32 0.0, %v2864
      %v2866 = vpop.f32.mrf.mxu0
      %v2867 = vadd.f32 0.0, %v2866
      %2868 = vmatprep.mubr.f32.mxu0 0.0
      %2869 = vmatmul.mubr.f32.gmra.mxu0 %v1495
      %v2870 = vpop.f32.mrf.mxu0
      %v2871 = vadd.f32 0.0, %v2870
      %v2872 = vpop.f32.mrf.mxu0
      %v2873 = vadd.f32 0.0, %v2872
      %2874 = vmatprep.mubr.f32.mxu0 0.0
      %2875 = vmatmul.mubr.f32.gmra.mxu0 %v1498
      %v2876 = vpop.f32.mrf.mxu0
      %v2877 = vadd.f32 0.0, %v2876
      %v2878 = vpop.f32.mrf.mxu0
      %v2879 = vadd.f32 0.0, %v2878
      %2880 = vmatprep.mubr.f32.mxu0 0.0
      %2881 = vmatmul.mubr.f32.gmra.mxu0 %v1501
      %v2882 = vpop.f32.mrf.mxu0
      %v2883 = vadd.f32 0.0, %v2882
      %v2884 = vpop.f32.mrf.mxu0
      %v2885 = vadd.f32 0.0, %v2884
      %2886 = vmatprep.mubr.f32.mxu0 0.0
      %2887 = vmatmul.mubr.f32.gmra.mxu0 %v1504
      %v2888 = vpop.f32.mrf.mxu0
      %v2889 = vadd.f32 0.0, %v2888
      %v2890 = vpop.f32.mrf.mxu0
      %v2891 = vadd.f32 0.0, %v2890
      %2892 = vmatprep.mubr.f32.mxu0 0.0
      %2893 = vmatmul.mubr.f32.gmra.mxu0 %v1507
      %v2894 = vpop.f32.mrf.mxu0
      %v2895 = vadd.f32 0.0, %v2894
      %v2896 = vpop.f32.mrf.mxu0
      %v2897 = vadd.f32 0.0, %v2896
      %2898 = vmatprep.mubr.f32.mxu0 0.0
      %2899 = vmatmul.mubr.f32.gmra.mxu0 %v1510
      %v2900 = vpop.f32.mrf.mxu0
      %v2901 = vadd.f32 0.0, %v2900
      %v2902 = vpop.f32.mrf.mxu0
      %v2903 = vadd.f32 0.0, %v2902
      %2904 = vmatprep.mubr.f32.mxu0 0.0
      %2905 = vmatmul.mubr.f32.gmra.mxu0 %v1513
      %v2906 = vpop.f32.mrf.mxu0
      %v2907 = vadd.f32 0.0, %v2906
      %v2908 = vpop.f32.mrf.mxu0
      %v2909 = vadd.f32 0.0, %v2908
      %2910 = vmatprep.mubr.f32.mxu0 0.0
      %2911 = vmatmul.mubr.f32.gmra.mxu0 %v1516
      %v2912 = vpop.f32.mrf.mxu0
      %v2913 = vadd.f32 0.0, %v2912
      %v2914 = vpop.f32.mrf.mxu0
      %v2915 = vadd.f32 0.0, %v2914
      %2916 = vdwg.mxu0
      %v2917 = vadd.f32 %v2578, %v2865
      %v2918 = vadd.f32 %v2579, %v2867
      %2921 = vrot.lane.b32.xlu0 %v2871, 127
      %v2922 = vpop.permute.xlu0 %2921
      %2923 = vrot.lane.b32.xlu0 %v2873, 127
      %v2924 = vpop.permute.xlu0 %2923
      %v2925 = vsel %vm500, %v2922, %v2924
      %v2928 = vadd.f32 %v2917, %v2925
      %v2929 = vadd.f32 %v2918, %v2924
      %2932 = vrot.lane.b32.xlu0 %v2877, 126
      %v2933 = vpop.permute.xlu0 %2932
      %2934 = vrot.lane.b32.xlu0 %v2879, 126
      %v2935 = vpop.permute.xlu0 %2934
      %v2936 = vsel %vm512, %v2933, %v2935
      %v2939 = vadd.f32 %v2928, %v2936
      %v2940 = vadd.f32 %v2929, %v2935
      %2943 = vrot.lane.b32.xlu0 %v2883, 118
      %v2944 = vpop.permute.xlu0 %2943
      %2945 = vrot.lane.b32.xlu0 %v2885, 118
      %v2946 = vpop.permute.xlu0 %2945
      %v2947 = vsel %vm524, %v2944, %v2946
      %v2950 = vadd.f32 %v2939, %v2947
      %v2951 = vadd.f32 %v2940, %v2946
      %2954 = vrot.lane.b32.xlu0 %v2889, 117
      %v2955 = vpop.permute.xlu0 %2954
      %2956 = vrot.lane.b32.xlu0 %v2891, 117
      %v2957 = vpop.permute.xlu0 %2956
      %v2958 = vsel %vm536, %v2955, %v2957
      %v2961 = vadd.f32 %v2950, %v2958
      %v2962 = vadd.f32 %v2951, %v2957
      %2965 = vrot.lane.b32.xlu0 %v2895, 116
      %v2966 = vpop.permute.xlu0 %2965
      %2967 = vrot.lane.b32.xlu0 %v2897, 116
      %v2968 = vpop.permute.xlu0 %2967
      %v2969 = vsel %vm548, %v2966, %v2968
      %v2972 = vadd.f32 %v2961, %v2969
      %v2973 = vadd.f32 %v2962, %v2968
      %2976 = vrot.lane.b32.xlu0 %v2901, 108
      %v2977 = vpop.permute.xlu0 %2976
      %2978 = vrot.lane.b32.xlu0 %v2903, 108
      %v2979 = vpop.permute.xlu0 %2978
      %v2980 = vsel %vm560, %v2977, %v2979
      %v2983 = vadd.f32 %v2972, %v2980
      %v2984 = vadd.f32 %v2973, %v2979
      %2987 = vrot.lane.b32.xlu0 %v2907, 107
      %v2988 = vpop.permute.xlu0 %2987
      %2989 = vrot.lane.b32.xlu0 %v2909, 107
      %v2990 = vpop.permute.xlu0 %2989
      %v2991 = vsel %vm572, %v2988, %v2990
      %v2994 = vadd.f32 %v2983, %v2991
      %v2995 = vadd.f32 %v2984, %v2990
      %2998 = vrot.lane.b32.xlu0 %v2913, 106
      %v2999 = vpop.permute.xlu0 %2998
      %3000 = vrot.lane.b32.xlu0 %v2915, 106
      %v3001 = vpop.permute.xlu0 %3000
      %v3002 = vsel %vm584, %v2999, %v3001
      %v3005 = vadd.f32 %v2994, %v3002
      %v3006 = vadd.f32 %v2995, %v3001
      %3008 = vset.pattern.permute.xlu0 0
      %3009 = vperm.xlu0 %3008, %v324
      %v3010 = vpop.permute.xlu0 %3009
      %v3012 = vadd.f32 %v1725, %v3010
      %v3013 = vadd.f32 %v1726, %v3010
      %v3014 = vmax.f32 %v3012, 0.0
      %v3015 = vmax.f32 %v3013, 0.0
      %3017 = vset.pattern.permute.xlu0 0
      %3018 = vperm.xlu0 %3017, %v325
      %v3019 = vpop.permute.xlu0 %3018
      %vm3021 = vcmask 64512
      %v3023 = vsel %vm3021, %v326, 0
      %3025 = vmatprep.subr.mxu0 0.0
      %3026 = vmatpush1.msra.mxu0 0.0
      %3027 = vmatprep.subr.mxu0 0.0
      %3028 = vmatpush1.msra.mxu0 0.0
      %3029 = vmatprep.subr.mxu0 0.0
      %3030 = vmatpush1.msra.mxu0 0.0
      %3031 = vmatprep.subr.mxu0 0.0
      %3032 = vmatpush1.msra.mxu0 0.0
      %3033 = vmatprep.subr.mxu0 0.0
      %3034 = vmatpush1.msra.mxu0 0.0
      %3035 = vmatprep.subr.mxu0 0.0
      %3036 = vmatpush1.msra.mxu0 0.0
      %3037 = vmatprep.subr.mxu0 0.0
      %3038 = vmatpush1.msra.mxu0 0.0
      %3039 = vmatprep.subr.mxu0 0.0
      %3040 = vmatpush1.msra.mxu0 0.0
      %3041 = vmatprep.subr.mxu0 0.0
      %3042 = vmatpush1.msra.mxu0 0.0
      %3043 = vmatprep.subr.mxu0 0.0
      %3044 = vmatpush1.msra.mxu0 0.0
      %3045 = vmatprep.subr.mxu0 0.0
      %3046 = vmatpush1.msra.mxu0 0.0
      %3047 = vmatprep.subr.mxu0 0.0
      %3048 = vmatpush1.msra.mxu0 0.0
      %3049 = vmatprep.subr.mxu0 0.0
      %3050 = vmatpush1.msra.mxu0 0.0
      %3051 = vmatprep.subr.mxu0 0.0
      %3052 = vmatpush1.msra.mxu0 0.0
      %3053 = vmatprep.subr.mxu0 0.0
      %3054 = vmatpush1.msra.mxu0 0.0
      %3055 = vmatprep.subr.mxu0 %v3015
      %3056 = vmatpush1.msra.mxu0 %v3014
      %3057 = vmatprep.subr.mxu0 0.0
      %3058 = vmatpush2.msra.mxu0 0.0
      %3059 = vmatprep.subr.mxu0 0.0
      %3060 = vmatpush2.msra.mxu0 0.0
      %3061 = vmatprep.subr.mxu0 0.0
      %3062 = vmatpush2.msra.mxu0 0.0
      %3063 = vmatprep.subr.mxu0 0.0
      %3064 = vmatpush2.msra.mxu0 0.0
      %3065 = vmatprep.subr.mxu0 0.0
      %3066 = vmatpush2.msra.mxu0 0.0
      %3067 = vmatprep.subr.mxu0 0.0
      %3068 = vmatpush2.msra.mxu0 0.0
      %3069 = vmatprep.subr.mxu0 0.0
      %3070 = vmatpush2.msra.mxu0 0.0
      %3071 = vmatprep.subr.mxu0 0.0
      %3072 = vmatpush2.msra.mxu0 0.0
      %3073 = vmatprep.subr.mxu0 0.0
      %3074 = vmatpush2.msra.mxu0 0.0
      %3075 = vmatprep.subr.mxu0 0.0
      %3076 = vmatpush2.msra.mxu0 0.0
      %3077 = vmatprep.subr.mxu0 0.0
      %3078 = vmatpush2.msra.mxu0 0.0
      %3079 = vmatprep.subr.mxu0 0.0
      %3080 = vmatpush2.msra.mxu0 0.0
      %3081 = vmatprep.subr.mxu0 0.0
      %3082 = vmatpush2.msra.mxu0 0.0
      %3083 = vmatprep.subr.mxu0 0.0
      %3084 = vmatpush2.msra.mxu0 0.0
      %3085 = vmatprep.subr.mxu0 0.0
      %3086 = vmatpush2.msra.mxu0 0.0
      %3087 = vmatprep.subr.mxu0 0.0
      %3088 = vmatpush2.msra.mxu0 0.0
      %3089 = vmatprep.mubr.f32.mxu0 0.0
      %3090 = vmatmul.mubr.f32.gmra.mxu0 %v3023
      %v3091 = vpop.f32.mrf.mxu0
      %v3092 = vadd.f32 %v3019, %v3091
      %v3093 = vpop.f32.mrf.mxu0
      %v3094 = vadd.f32 %v3019, %v3093
      %3095 = vdwg.mxu0
      %v3097 = vcombine.high %v591, %v591
      %3098 = vrot.lane.b32.xlu0 %v591, 117
      %v3099 = vpop.permute.xlu0 %3098
      %3100 = vrot.lane.b32.xlu0 %v3097, 117
      %v3101 = vpop.permute.xlu0 %3100
      %v3102 = vsel %vm536, %v3099, %v3101
      %v3105 = vadd.f32 %v3092, %v3102
      %v3106 = vadd.f32 %v3094, %v3101
      %v3109 = vcombine.low %v3105, %v3106
      %vm3111 = vcmask 588804
      %vm3112 = vmor %vm3111, %vm368
      %3113 = vst.msk [vmem:[%s322] sm:$0xff] %vm3112, %v3109
      %v3114 = vadd.f32 %v2361, %v3010
      %v3115 = vadd.f32 %v2362, %v3010
      %v3116 = vmax.f32 %v3114, 0.0
      %v3117 = vmax.f32 %v3115, 0.0
      %3118 = vmatprep.subr.mxu0 0.0
      %3119 = vmatpush1.msra.mxu0 0.0
      %3120 = vmatprep.subr.mxu0 0.0
      %3121 = vmatpush1.msra.mxu0 0.0
      %3122 = vmatprep.subr.mxu0 0.0
      %3123 = vmatpush1.msra.mxu0 0.0
      %3124 = vmatprep.subr.mxu0 0.0
      %3125 = vmatpush1.msra.mxu0 0.0
      %3126 = vmatprep.subr.mxu0 0.0
      %3127 = vmatpush1.msra.mxu0 0.0
      %3128 = vmatprep.subr.mxu0 0.0
      %3129 = vmatpush1.msra.mxu0 0.0
      %3130 = vmatprep.subr.mxu0 0.0
      %3131 = vmatpush1.msra.mxu0 0.0
      %3132 = vmatprep.subr.mxu0 0.0
      %3133 = vmatpush1.msra.mxu0 0.0
      %3134 = vmatprep.subr.mxu0 0.0
      %3135 = vmatpush1.msra.mxu0 0.0
      %3136 = vmatprep.subr.mxu0 0.0
      %3137 = vmatpush1.msra.mxu0 0.0
      %3138 = vmatprep.subr.mxu0 0.0
      %3139 = vmatpush1.msra.mxu0 0.0
      %3140 = vmatprep.subr.mxu0 0.0
      %3141 = vmatpush1.msra.mxu0 0.0
      %3142 = vmatprep.subr.mxu0 0.0
      %3143 = vmatpush1.msra.mxu0 0.0
      %3144 = vmatprep.subr.mxu0 0.0
      %3145 = vmatpush1.msra.mxu0 0.0
      %3146 = vmatprep.subr.mxu0 0.0
      %3147 = vmatpush1.msra.mxu0 0.0
      %3148 = vmatprep.subr.mxu0 %v3117
      %3149 = vmatpush1.msra.mxu0 %v3116
      %3150 = vmatprep.subr.mxu0 0.0
      %3151 = vmatpush2.msra.mxu0 0.0
      %3152 = vmatprep.subr.mxu0 0.0
      %3153 = vmatpush2.msra.mxu0 0.0
      %3154 = vmatprep.subr.mxu0 0.0
      %3155 = vmatpush2.msra.mxu0 0.0
      %3156 = vmatprep.subr.mxu0 0.0
      %3157 = vmatpush2.msra.mxu0 0.0
      %3158 = vmatprep.subr.mxu0 0.0
      %3159 = vmatpush2.msra.mxu0 0.0
      %3160 = vmatprep.subr.mxu0 0.0
      %3161 = vmatpush2.msra.mxu0 0.0
      %3162 = vmatprep.subr.mxu0 0.0
      %3163 = vmatpush2.msra.mxu0 0.0
      %3164 = vmatprep.subr.mxu0 0.0
      %3165 = vmatpush2.msra.mxu0 0.0
      %3166 = vmatprep.subr.mxu0 0.0
      %3167 = vmatpush2.msra.mxu0 0.0
      %3168 = vmatprep.subr.mxu0 0.0
      %3169 = vmatpush2.msra.mxu0 0.0
      %3170 = vmatprep.subr.mxu0 0.0
      %3171 = vmatpush2.msra.mxu0 0.0
      %3172 = vmatprep.subr.mxu0 0.0
      %3173 = vmatpush2.msra.mxu0 0.0
      %3174 = vmatprep.subr.mxu0 0.0
      %3175 = vmatpush2.msra.mxu0 0.0
      %3176 = vmatprep.subr.mxu0 0.0
      %3177 = vmatpush2.msra.mxu0 0.0
      %3178 = vmatprep.subr.mxu0 0.0
      %3179 = vmatpush2.msra.mxu0 0.0
      %3180 = vmatprep.subr.mxu0 0.0
      %3181 = vmatpush2.msra.mxu0 0.0
      %3182 = vmatprep.mubr.f32.mxu0 0.0
      %3183 = vmatmul.mubr.f32.gmra.mxu0 %v3023
      %v3184 = vpop.f32.mrf.mxu0
      %v3185 = vadd.f32 %v3019, %v3184
      %v3186 = vpop.f32.mrf.mxu0
      %v3187 = vadd.f32 %v3019, %v3186
      %3188 = vdwg.mxu0
      %v3189 = vld [vmem:[%s1054] sm:$0xff]
      %v3191 = vcombine.high %v3189, %v3189
      %3192 = vrot.lane.b32.xlu0 %v3189, 117
      %v3193 = vpop.permute.xlu0 %3192
      %3194 = vrot.lane.b32.xlu0 %v3191, 117
      %v3195 = vpop.permute.xlu0 %3194
      %v3196 = vsel %vm536, %v3193, %v3195
      %v3199 = vadd.f32 %v3185, %v3196
      %v3200 = vadd.f32 %v3187, %v3195
      %v3203 = vcombine.low %v3199, %v3200
      %s3205 = scalar_lea.vmem %s322, 8
      %3206 = vst.msk [vmem:[%s3205] sm:$0xff] %vm3112, %v3203
      %v3207 = vadd.f32 %v2787, %v3010
      %v3208 = vadd.f32 %v2788, %v3010
      %v3209 = vmax.f32 %v3207, 0.0
      %v3210 = vmax.f32 %v3208, 0.0
      %3211 = vmatprep.subr.mxu0 0.0
      %3212 = vmatpush1.msra.mxu0 0.0
      %3213 = vmatprep.subr.mxu0 0.0
      %3214 = vmatpush1.msra.mxu0 0.0
      %3215 = vmatprep.subr.mxu0 0.0
      %3216 = vmatpush1.msra.mxu0 0.0
      %3217 = vmatprep.subr.mxu0 0.0
      %3218 = vmatpush1.msra.mxu0 0.0
      %3219 = vmatprep.subr.mxu0 0.0
      %3220 = vmatpush1.msra.mxu0 0.0
      %3221 = vmatprep.subr.mxu0 0.0
      %3222 = vmatpush1.msra.mxu0 0.0
      %3223 = vmatprep.subr.mxu0 0.0
      %3224 = vmatpush1.msra.mxu0 0.0
      %3225 = vmatprep.subr.mxu0 0.0
      %3226 = vmatpush1.msra.mxu0 0.0
      %3227 = vmatprep.subr.mxu0 0.0
      %3228 = vmatpush1.msra.mxu0 0.0
      %3229 = vmatprep.subr.mxu0 0.0
      %3230 = vmatpush1.msra.mxu0 0.0
      %3231 = vmatprep.subr.mxu0 0.0
      %3232 = vmatpush1.msra.mxu0 0.0
      %3233 = vmatprep.subr.mxu0 0.0
      %3234 = vmatpush1.msra.mxu0 0.0
      %3235 = vmatprep.subr.mxu0 0.0
      %3236 = vmatpush1.msra.mxu0 0.0
      %3237 = vmatprep.subr.mxu0 0.0
      %3238 = vmatpush1.msra.mxu0 0.0
      %3239 = vmatprep.subr.mxu0 0.0
      %3240 = vmatpush1.msra.mxu0 0.0
      %3241 = vmatprep.subr.mxu0 %v3210
      %3242 = vmatpush1.msra.mxu0 %v3209
      %3243 = vmatprep.subr.mxu0 0.0
      %3244 = vmatpush2.msra.mxu0 0.0
      %3245 = vmatprep.subr.mxu0 0.0
      %3246 = vmatpush2.msra.mxu0 0.0
      %3247 = vmatprep.subr.mxu0 0.0
      %3248 = vmatpush2.msra.mxu0 0.0
      %3249 = vmatprep.subr.mxu0 0.0
      %3250 = vmatpush2.msra.mxu0 0.0
      %3251 = vmatprep.subr.mxu0 0.0
      %3252 = vmatpush2.msra.mxu0 0.0
      %3253 = vmatprep.subr.mxu0 0.0
      %3254 = vmatpush2.msra.mxu0 0.0
      %3255 = vmatprep.subr.mxu0 0.0
      %3256 = vmatpush2.msra.mxu0 0.0
      %3257 = vmatprep.subr.mxu0 0.0
      %3258 = vmatpush2.msra.mxu0 0.0
      %3259 = vmatprep.subr.mxu0 0.0
      %3260 = vmatpush2.msra.mxu0 0.0
      %3261 = vmatprep.subr.mxu0 0.0
      %3262 = vmatpush2.msra.mxu0 0.0
      %3263 = vmatprep.subr.mxu0 0.0
      %3264 = vmatpush2.msra.mxu0 0.0
      %3265 = vmatprep.subr.mxu0 0.0
      %3266 = vmatpush2.msra.mxu0 0.0
      %3267 = vmatprep.subr.mxu0 0.0
      %3268 = vmatpush2.msra.mxu0 0.0
      %3269 = vmatprep.subr.mxu0 0.0
      %3270 = vmatpush2.msra.mxu0 0.0
      %3271 = vmatprep.subr.mxu0 0.0
      %3272 = vmatpush2.msra.mxu0 0.0
      %3273 = vmatprep.subr.mxu0 0.0
      %3274 = vmatpush2.msra.mxu0 0.0
      %3275 = vmatprep.mubr.f32.mxu0 0.0
      %3276 = vmatmul.mubr.f32.gmra.mxu0 %v3023
      %v3277 = vpop.f32.mrf.mxu0
      %v3278 = vadd.f32 %v3019, %v3277
      %v3279 = vpop.f32.mrf.mxu0
      %v3280 = vadd.f32 %v3019, %v3279
      %3281 = vdwg.mxu0
      %v3282 = vld [vmem:[%s1727] sm:$0xff]
      %v3284 = vcombine.high %v3282, %v3282
      %3285 = vrot.lane.b32.xlu0 %v3282, 117
      %v3286 = vpop.permute.xlu0 %3285
      %3287 = vrot.lane.b32.xlu0 %v3284, 117
      %v3288 = vpop.permute.xlu0 %3287
      %v3289 = vsel %vm536, %v3286, %v3288
      %v3292 = vadd.f32 %v3278, %v3289
      %v3293 = vadd.f32 %v3280, %v3288
      %v3296 = vcombine.low %v3292, %v3293
      %s3298 = scalar_lea.vmem %s322, 16
      %3299 = vst.msk [vmem:[%s3298] sm:$0xff] %vm3112, %v3296
      %v3300 = vadd.f32 %v3005, %v3010
      %v3301 = vadd.f32 %v3006, %v3010
      %v3302 = vmax.f32 %v3300, 0.0
      %v3303 = vmax.f32 %v3301, 0.0
      %3304 = vmatprep.subr.mxu0 0.0
      %3305 = vmatpush1.msra.mxu0 0.0
      %3306 = vmatprep.subr.mxu0 0.0
      %3307 = vmatpush1.msra.mxu0 0.0
      %3308 = vmatprep.subr.mxu0 0.0
      %3309 = vmatpush1.msra.mxu0 0.0
      %3310 = vmatprep.subr.mxu0 0.0
      %3311 = vmatpush1.msra.mxu0 0.0
      %3312 = vmatprep.subr.mxu0 0.0
      %3313 = vmatpush1.msra.mxu0 0.0
      %3314 = vmatprep.subr.mxu0 0.0
      %3315 = vmatpush1.msra.mxu0 0.0
      %3316 = vmatprep.subr.mxu0 0.0
      %3317 = vmatpush1.msra.mxu0 0.0
      %3318 = vmatprep.subr.mxu0 0.0
      %3319 = vmatpush1.msra.mxu0 0.0
      %3320 = vmatprep.subr.mxu0 0.0
      %3321 = vmatpush1.msra.mxu0 0.0
      %3322 = vmatprep.subr.mxu0 0.0
      %3323 = vmatpush1.msra.mxu0 0.0
      %3324 = vmatprep.subr.mxu0 0.0
      %3325 = vmatpush1.msra.mxu0 0.0
      %3326 = vmatprep.subr.mxu0 0.0
      %3327 = vmatpush1.msra.mxu0 0.0
      %3328 = vmatprep.subr.mxu0 0.0
      %3329 = vmatpush1.msra.mxu0 0.0
      %3330 = vmatprep.subr.mxu0 0.0
      %3331 = vmatpush1.msra.mxu0 0.0
      %3332 = vmatprep.subr.mxu0 0.0
      %3333 = vmatpush1.msra.mxu0 0.0
      %3334 = vmatprep.subr.mxu0 %v3303
      %3335 = vmatpush1.msra.mxu0 %v3302
      %3336 = vmatprep.subr.mxu0 0.0
      %3337 = vmatpush2.msra.mxu0 0.0
      %3338 = vmatprep.subr.mxu0 0.0
      %3339 = vmatpush2.msra.mxu0 0.0
      %3340 = vmatprep.subr.mxu0 0.0
      %3341 = vmatpush2.msra.mxu0 0.0
      %3342 = vmatprep.subr.mxu0 0.0
      %3343 = vmatpush2.msra.mxu0 0.0
      %3344 = vmatprep.subr.mxu0 0.0
      %3345 = vmatpush2.msra.mxu0 0.0
      %3346 = vmatprep.subr.mxu0 0.0
      %3347 = vmatpush2.msra.mxu0 0.0
      %3348 = vmatprep.subr.mxu0 0.0
      %3349 = vmatpush2.msra.mxu0 0.0
      %3350 = vmatprep.subr.mxu0 0.0
      %3351 = vmatpush2.msra.mxu0 0.0
      %3352 = vmatprep.subr.mxu0 0.0
      %3353 = vmatpush2.msra.mxu0 0.0
      %3354 = vmatprep.subr.mxu0 0.0
      %3355 = vmatpush2.msra.mxu0 0.0
      %3356 = vmatprep.subr.mxu0 0.0
      %3357 = vmatpush2.msra.mxu0 0.0
      %3358 = vmatprep.subr.mxu0 0.0
      %3359 = vmatpush2.msra.mxu0 0.0
      %3360 = vmatprep.subr.mxu0 0.0
      %3361 = vmatpush2.msra.mxu0 0.0
      %3362 = vmatprep.subr.mxu0 0.0
      %3363 = vmatpush2.msra.mxu0 0.0
      %3364 = vmatprep.subr.mxu0 0.0
      %3365 = vmatpush2.msra.mxu0 0.0
      %3366 = vmatprep.subr.mxu0 0.0
      %3367 = vmatpush2.msra.mxu0 0.0
      %3368 = vmatprep.mubr.f32.mxu0 0.0
      %3369 = vmatmul.mubr.f32.gmra.mxu0 %v3023
      %v3370 = vpop.f32.mrf.mxu0
      %v3371 = vadd.f32 %v3019, %v3370
      %v3372 = vpop.f32.mrf.mxu0
      %v3373 = vadd.f32 %v3019, %v3372
      %3374 = vdwg.mxu0
      %v3375 = vld [vmem:[%s313] sm:$0xff]
      %v3377 = vcombine.high %v3375, %v3375
      %3378 = vrot.lane.b32.xlu0 %v3375, 117
      %v3379 = vpop.permute.xlu0 %3378
      %3380 = vrot.lane.b32.xlu0 %v3377, 117
      %v3381 = vpop.permute.xlu0 %3380
      %v3382 = vsel %vm536, %v3379, %v3381
      %v3385 = vadd.f32 %v3371, %v3382
      %v3386 = vadd.f32 %v3373, %v3381
      %v3389 = vcombine.low %v3385, %v3386
      %s3391 = scalar_lea.vmem %s322, 24
      %3392 = vst.msk [vmem:[%s3391] sm:$0xff] %vm3112, %v3389
      %s3393 = smul.u32 4, %s17
      %p3394 = scmp.lt.s32.totalorder %s3393, 7
      %s3395 = scalar_select %p3394, %s3393, 7
      %s3396 = smul.addr %s3395, 2
      %s3397 = smul.addr %s3396, 4
      %s3398 = scalar_lea.vmem %s6, %s3397
      // Predicated region
      $region45: #{resblock_forward.1} parent=43 // pred_check
        %p3399 = pneg %p175
      $region46: #{resblock_forward.1} parent=43 // pred_check_branch
        %3401 = sbr.rel (%p3399) target = $region48
      $region47: #{resblock_forward.1} parent=43 // pred_region
        %s3402 = smul.u32 4, %s17
      $region48: #{resblock_forward.1} parent=43 // pred_fallthru
        _
    $region44: #{resblock_forward.1} parent=5 // pred_fallthru
      _
    %p3403 = scmp.le.s32.totalorder 2, %s12
    // Predicated region
    $region49: #{resblock_forward.1} parent=5 // pred_check
      %p3404 = pneg %p3403
    $region50: #{resblock_forward.1} parent=5 // pred_check_branch
      %3406 = sbr.rel (%p3404) target = $region52
    $region51: #{resblock_forward.1} parent=5 // pred_region
      %s3407 = ssub.s32 %s12, 2
      // Predicated region
      $region53: #{resblock_forward.1} parent=51 // pred_check
        %p3408 = pneg %p181
      $region54: #{resblock_forward.1} parent=51 // pred_check_branch
        %3410 = sbr.rel (%p3408) target = $region56
      $region55: #{resblock_forward.1} parent=51 // pred_region
        %s3411 = smul.u32 4, %s18
        %p3412 = scmp.lt.s32.totalorder %s3411, 7
        %s3413 = scalar_select %p3412, %s3411, 7
        %s3414 = smul.addr %s3413, 2
        %s3415 = smul.addr %s3414, 4
        %s3416 = scalar_lea.vmem %s6, %s3415
      $region56: #{resblock_forward.1} parent=51 // pred_fallthru
        _
    $region52: #{resblock_forward.1} parent=5 // pred_fallthru
      _
  $region6: #{resblock_forward.1} parent=0 // loop_footer
    %s16 = sadd.s32 1, %s12
  $region7: #{resblock_forward.1} parent=0 // loop_footer_branch
    %11 = sbr.rel target = $region3
  $region8: #{resblock_forward.1} parent=0 // loop_exit
    _

</llo_original>
